<compile_context>
chip_gen: v7x
topology: tpu7x:2x2x1
jax: 0.10.0
libtpu: 0.0.40
codegen_flags: <defaults>
</compile_context>

<pallas_src>
import jax
import jax.numpy as jnp
from jax.experimental import pallas as pl
from jax.experimental.pallas import tpu as pltpu


# ----------------------------- fused forward kernel --------------------------
def _ecg_fused_kernel(
    x_ref,
    w1_ref, b1_ref, w2_ref, b2_ref, r1w_ref, r1b_ref,
    w3_ref, b3_ref, w4_ref, b4_ref, r2w_ref, r2b_ref,
    w5_ref, b5_ref, w6_ref, b6_ref, r3w_ref, r3b_ref,
    hw1_ref, hb1_ref, hw2_ref, hb2_ref,
    heads_ref, emb_ref,
):
    f32 = jnp.float32

    def conv_relu_same(v, w_ref, b_ref):
        # v: (l, c_in); w_ref: (K*c_in, c_out) im2col weights.
        # PyTorch-equivalent "same" padding: F.pad(x, (K//2, K//2 - 1)).
        l, c_in = v.shape
        k = w_ref.shape[0] // c_in
        pad_l, pad_r = k // 2, k // 2 - 1
        vp = jnp.concatenate(
            [jnp.zeros((pad_l, c_in), f32), v, jnp.zeros((pad_r, c_in), f32)],
            axis=0)                                              # (l + k - 1, c_in)
        # im2col: one deep matmul instead of k shallow per-tap matmuls.
        cols = jnp.concatenate([vp[t:t + l, :] for t in range(k)], axis=1)
        out = jnp.dot(cols, w_ref[...], preferred_element_type=f32)
        out = out + b_ref[...]
        return jnp.maximum(out, 0.0)                             # ReLU

    def maxpool_8_2(v):
        # nn.MaxPool1d(kernel_size=8, stride=2) with NO strided slices:
        #   1) stride-1 sliding max over 8 taps via log-doubling (3 VPU maxes)
        #   2) exact stride-2 subsample via a 0/1 selection matmul (MXU).
        l, _ = v.shape
        l_m = l - 7
        l_out = (l - 8) // 2 + 1
        m1 = jnp.maximum(v[0:l - 1, :], v[1:l, :])               # window 2
        m2 = jnp.maximum(m1[0:l - 3, :], m1[2:l - 1, :])         # window 4
        m3 = jnp.maximum(m2[0:l - 7, :], m2[4:l - 3, :])         # window 8 -> (l_m, c)
        row = jax.lax.broadcasted_iota(jnp.int32, (l_out, l_m), 0)
        col = jax.lax.broadcasted_iota(jnp.int32, (l_out, l_m), 1)
        sel = (col == 2 * row).astype(f32)
        return jnp.dot(sel, m3, preferred_element_type=f32)      # picks m3[2i] exactly

    x = x_ref[0].astype(f32)                                     # (L, 1)

    # ---- block 1: conv_1, conv_2, residual_conv1, pool_1 ----
    res = x
    h = conv_relu_same(x, w1_ref, b1_ref)
    h = conv_relu_same(h, w2_ref, b2_ref)
    # residual_conv1 is a 1x1 conv on a single input channel -> broadcast MAC.
    h = h + res * r1w_ref[...] + r1b_ref[...]
    h = maxpool_8_2(h)

    # ---- block 2: conv_3, conv_4, residual_conv2, pool_2 ----
    res = h
    h = conv_relu_same(h, w3_ref, b3_ref)
    h = conv_relu_same(h, w4_ref, b4_ref)
    h = h + jnp.dot(res, r2w_ref[...], preferred_element_type=f32) + r2b_ref[...]
    h = maxpool_8_2(h)

    # ---- block 3: conv_5, conv_6, residual_conv3, pool_3 ----
    res = h
    h = conv_relu_same(h, w5_ref, b5_ref)
    h = conv_relu_same(h, w6_ref, b6_ref)
    h = h + jnp.dot(res, r3w_ref[...], preferred_element_type=f32) + r3b_ref[...]

    # pool_3: global max over the remaining temporal axis -> embedding (1, 128)
    # TODO(synk): matches nn.MaxPool1d(635) exactly only when the remaining
    # length equals 635 (true for the intended real ECG input length).
    emb = jnp.max(h, axis=0, keepdims=True)
    emb_ref[0] = emb.astype(emb_ref.dtype)

    # ---- fused task heads: Linear(128,128) -> leaky_relu -> Linear(128,1) ----
    n_heads = heads_ref.shape[2]
    d = emb_ref.shape[2]
    h1 = jnp.dot(emb, hw1_ref[...], preferred_element_type=f32) + hb1_ref[...]
    h1 = jnp.where(h1 >= 0, h1, 0.01 * h1)                       # F.leaky_relu
    prod = h1 * hw2_ref[...]                                     # (1, H*128)
    per_head = [jnp.sum(prod[:, i * d:(i + 1) * d], axis=1, keepdims=True)
                for i in range(n_heads)]
    out = jnp.concatenate(per_head, axis=1) + hb2_ref[...]       # (1, H)
    heads_ref[0] = out.astype(heads_ref.dtype)


def _full_spec(shape):
    nd = len(shape)
    return pl.BlockSpec(tuple(shape), lambda b, _nd=nd: (0,) * _nd)


# ----------------------------- forward wrapper --------------------------------
def ecg_network_forward(x_ncl, p):
    """x_ncl: (B, 1, L) in PyTorch NCL order. Returns (out_stacked, embedding)."""
    x = jnp.transpose(x_ncl, (0, 2, 1)).astype(jnp.float32)      # (B, L, 1)
    B, L, _ = x.shape
    H, D, _ = p["heads_w1"].shape

    def im2col_w(w):                 # (K, c_in, c_out) -> (K*c_in, c_out)
        return w.reshape(-1, w.shape[-1])

    weights = [
        im2col_w(p["conv1_w"]), p["conv1_b"],
        im2col_w(p["conv2_w"]), p["conv2_b"],
        p["res1_w"], p["res1_b"],
        im2col_w(p["conv3_w"]), p["conv3_b"],
        im2col_w(p["conv4_w"]), p["conv4_b"],
        p["res2_w"], p["res2_b"],
        im2col_w(p["conv5_w"]), p["conv5_b"],
        im2col_w(p["conv6_w"]), p["conv6_b"],
        p["res3_w"], p["res3_b"],
        jnp.transpose(p["heads_w1"], (1, 0, 2)).reshape(D, H * D),   # (128, H*128)
        p["heads_b1"].reshape(1, H * D),
        p["heads_w2"].reshape(1, H * D),
        p["heads_b2"].reshape(1, H),
    ]

    in_specs = ([pl.BlockSpec((1, L, 1), lambda b: (b, 0, 0))] +
                [_full_spec(w.shape) for w in weights])

    out_heads, emb = pl.pallas_call(
        _ecg_fused_kernel,
        out_shape=(jax.ShapeDtypeStruct((B, 1, H), jnp.float32),
                   jax.ShapeDtypeStruct((B, 1, D), jnp.float32)),
        grid=(B,),
        in_specs=in_specs,
        out_specs=[pl.BlockSpec((1, 1, H), lambda b: (b, 0, 0)),
                   pl.BlockSpec((1, 1, D), lambda b: (b, 0, 0))],
        compiler_params=pltpu.CompilerParams(
            dimension_semantics=("parallel",),
            vmem_limit_bytes=32 * 1024 * 1024),
    )(x, *weights)

    out_stacked = jnp.transpose(out_heads, (2, 0, 1))            # (H, B, 1)
    embedding = emb[:, 0, :]                                     # (B, 128)
    return out_stacked, embedding
    # TODO(synk): emotion_head (is_pretext=False branch) not exercised; the
    # same fused head path serves it with n_out = n_emotions.


# ----------------------------- pure-JAX reference ------------------------------
def _reference_forward(x_ncl, p):
    """Plain XLA implementation of the same forward (self-check only)."""
    x = jnp.transpose(x_ncl, (0, 2, 1)).astype(jnp.float32)      # (B, L, 1)

    def conv_relu(v, w, b):                                      # w: (K, cin, cout)
        K, l = w.shape[0], v.shape[1]
        vp = jnp.pad(v, ((0, 0), (K // 2, K // 2 - 1), (0, 0)))
        acc = jnp.zeros((v.shape[0], l, w.shape[2]), jnp.float32)
        for k in range(K):
            acc = acc + jnp.einsum("blc,cd->bld", vp[:, k:k + l, :], w[k])
        return jnp.maximum(acc + b, 0.0)

    def pool82(v):
        l_out = (v.shape[1] - 8) // 2 + 1
        return jnp.stack([jnp.max(v[:, 2 * i:2 * i + 8, :], axis=1)
                          for i in range(l_out)], axis=1)

    res = x
    h = conv_relu(x, p["conv1_w"], p["conv1_b"])
    h = conv_relu(h, p["conv2_w"], p["conv2_b"])
    h = h + jnp.einsum("blc,cd->bld", res, p["res1_w"]) + p["res1_b"]
    h = pool82(h)
    res = h
    h = conv_relu(h, p["conv3_w"], p["conv3_b"])
    h = conv_relu(h, p["conv4_w"], p["conv4_b"])
    h = h + jnp.einsum("blc,cd->bld", res, p["res2_w"]) + p["res2_b"]
    h = pool82(h)
    res = h
    h = conv_relu(h, p["conv5_w"], p["conv5_b"])
    h = conv_relu(h, p["conv6_w"], p["conv6_b"])
    h = h + jnp.einsum("blc,cd->bld", res, p["res3_w"]) + p["res3_b"]
    emb = jnp.max(h, axis=1)                                     # (B, 128)

    outs = []
    for i in range(p["heads_w1"].shape[0]):
        hh = emb @ p["heads_w1"][i] + p["heads_b1"][i]
        hh = jnp.where(hh >= 0, hh, 0.01 * hh)
        outs.append(hh @ p["heads_w2"][i][:, None] + p["heads_b2"][i])
    return jnp.stack(outs), emb                                  # (H, B, 1), (B, 128)


# ----------------------------- parameter init ----------------------------------
def init_params(key, n_task_heads=3):
    keys = iter(jax.random.split(key, 32))

    def conv_param(k, K, c_in, c_out):
        kw, kb = jax.random.split(k)
        bound = 1.0 / float(c_in * K) ** 0.5
        w = jax.random.uniform(kw, (K, c_in, c_out), jnp.float32, -bound, bound)
        b = jax.random.uniform(kb, (1, c_out), jnp.float32, -bound, bound)
        return w, b

    def linear_param(k, f_in, f_out):
        kw, kb = jax.random.split(k)
        bound = 1.0 / float(f_in) ** 0.5
        w = jax.random.uniform(kw, (f_in, f_out), jnp.float32, -bound, bound)
        b = jax.random.uniform(kb, (f_out,), jnp.float32, -bound, bound)
        return w, b

    p = {}
    p["conv1_w"], p["conv1_b"] = conv_param(next(keys), 32, 1, 32)
    p["conv2_w"], p["conv2_b"] = conv_param(next(keys), 32, 32, 32)
    rw, rb = conv_param(next(keys), 1, 1, 32)
    p["res1_w"], p["res1_b"] = rw[0], rb             # (1, 32), (1, 32)
    p["conv3_w"], p["conv3_b"] = conv_param(next(keys), 16, 32, 64)
    p["conv4_w"], p["conv4_b"] = conv_param(next(keys), 16, 64, 64)
    rw, rb = conv_param(next(keys), 1, 32, 64)
    p["res2_w"], p["res2_b"] = rw[0], rb             # (32, 64), (1, 64)
    p["conv5_w"], p["conv5_b"] = conv_param(next(keys), 8, 64, 128)
    p["conv6_w"], p["conv6_b"] = conv_param(next(keys), 8, 128, 128)
    rw, rb = conv_param(next(keys), 1, 64, 128)
    p["res3_w"], p["res3_b"] = rw[0], rb             # (64, 128), (1, 128)

    w1s, b1s, w2s, b2s = [], [], [], []
    for _ in range(n_task_heads):
        w1, b1 = linear_param(next(keys), 128, 128)
        w2, b2 = linear_param(next(keys), 128, 1)
        w1s.append(w1); b1s.append(b1); w2s.append(w2[:, 0]); b2s.append(b2[0])
    p["heads_w1"] = jnp.stack(w1s)   # (H, 128, 128)
    p["heads_b1"] = jnp.stack(b1s)   # (H, 128)
    p["heads_w2"] = jnp.stack(w2s)   # (H, 128)
    p["heads_b2"] = jnp.stack(b2s)   # (H,)
    return p


if __name__ == "__main__":
    key = jax.random.PRNGKey(0)
    pkey, xkey = jax.random.split(key)
    n_task_heads = 3
    params = init_params(pkey, n_task_heads=n_task_heads)

    B, L = 2, 64                                          # small synthetic ECG length
    x = jax.random.normal(xkey, (B, 1, L), jnp.float32)   # PyTorch NCL layout

    out_stacked, embedding = jax.jit(ecg_network_forward)(x, params)
    jax.block_until_ready((out_stacked, embedding))

    assert out_stacked.shape == (n_task_heads, B, 1)
    assert embedding.shape == (B, 128)
    assert out_stacked.dtype == jnp.float32 and embedding.dtype == jnp.float32

    # Self-check against a plain-XLA reference (loose tolerance: TPU matmul
    # default precision + different summation order between formulations).
    ref_out, ref_emb = jax.jit(_reference_forward)(x, params)
    jax.block_until_ready((ref_out, ref_emb))
    assert jnp.allclose(out_stacked, ref_out, rtol=5e-2, atol=5e-2)
    assert jnp.allclose(embedding, ref_emb, rtol=5e-2, atol=5e-2)

    print("KERNEL_OK")
</pallas_src>

<mosaic_0001>
module attributes {stable_mosaic.version = 11 : i64} {
  func.func @_ecg_fused_kernel(%arg0: i32, %arg1: memref<1x64x1xf32, #tpu.memory_space<vmem>>, %arg2: memref<32x32xf32, #tpu.memory_space<vmem>>, %arg3: memref<1x32xf32, #tpu.memory_space<vmem>>, %arg4: memref<1024x32xf32, #tpu.memory_space<vmem>>, %arg5: memref<1x32xf32, #tpu.memory_space<vmem>>, %arg6: memref<1x32xf32, #tpu.memory_space<vmem>>, %arg7: memref<1x32xf32, #tpu.memory_space<vmem>>, %arg8: memref<512x64xf32, #tpu.memory_space<vmem>>, %arg9: memref<1x64xf32, #tpu.memory_space<vmem>>, %arg10: memref<1024x64xf32, #tpu.memory_space<vmem>>, %arg11: memref<1x64xf32, #tpu.memory_space<vmem>>, %arg12: memref<32x64xf32, #tpu.memory_space<vmem>>, %arg13: memref<1x64xf32, #tpu.memory_space<vmem>>, %arg14: memref<512x128xf32, #tpu.memory_space<vmem>>, %arg15: memref<1x128xf32, #tpu.memory_space<vmem>>, %arg16: memref<1024x128xf32, #tpu.memory_space<vmem>>, %arg17: memref<1x128xf32, #tpu.memory_space<vmem>>, %arg18: memref<64x128xf32, #tpu.memory_space<vmem>>, %arg19: memref<1x128xf32, #tpu.memory_space<vmem>>, %arg20: memref<128x384xf32, #tpu.memory_space<vmem>>, %arg21: memref<1x384xf32, #tpu.memory_space<vmem>>, %arg22: memref<1x384xf32, #tpu.memory_space<vmem>>, %arg23: memref<1x3xf32, #tpu.memory_space<vmem>>, %arg24: memref<1x1x3xf32, #tpu.memory_space<vmem>>, %arg25: memref<1x1x128xf32, #tpu.memory_space<vmem>>) attributes {dimension_semantics = [#tpu.dimension_semantics<parallel>], iteration_bounds = array<i64: 2>, scalar_prefetch = 0 : i64, scratch_operands = 0 : i64, tpu.core_type = #tpu.core_type<tc>, window_params = [{transform_indices = @transform_0, window_bounds = array<i64: 1, 64, 1>}, {pipeline_mode = #tpu.pipeline_mode<synchronous>, transform_indices = @transform_1, window_bounds = array<i64: 32, 32>}, {pipeline_mode = #tpu.pipeline_mode<synchronous>, transform_indices = @transform_2, window_bounds = array<i64: 1, 32>}, {pipeline_mode = #tpu.pipeline_mode<synchronous>, transform_indices = @transform_3, window_bounds = array<i64: 1024, 32>}, {pipeline_mode = #tpu.pipeline_mode<synchronous>, transform_indices = @transform_4, window_bounds = array<i64: 1, 32>}, {pipeline_mode = #tpu.pipeline_mode<synchronous>, transform_indices = @transform_5, window_bounds = array<i64: 1, 32>}, {pipeline_mode = #tpu.pipeline_mode<synchronous>, transform_indices = @transform_6, window_bounds = array<i64: 1, 32>}, {pipeline_mode = #tpu.pipeline_mode<synchronous>, transform_indices = @transform_7, window_bounds = array<i64: 512, 64>}, {pipeline_mode = #tpu.pipeline_mode<synchronous>, transform_indices = @transform_8, window_bounds = array<i64: 1, 64>}, {pipeline_mode = #tpu.pipeline_mode<synchronous>, transform_indices = @transform_9, window_bounds = array<i64: 1024, 64>}, {pipeline_mode = #tpu.pipeline_mode<synchronous>, transform_indices = @transform_10, window_bounds = array<i64: 1, 64>}, {pipeline_mode = #tpu.pipeline_mode<synchronous>, transform_indices = @transform_11, window_bounds = array<i64: 32, 64>}, {pipeline_mode = #tpu.pipeline_mode<synchronous>, transform_indices = @transform_12, window_bounds = array<i64: 1, 64>}, {pipeline_mode = #tpu.pipeline_mode<synchronous>, transform_indices = @transform_13, window_bounds = array<i64: 512, 128>}, {pipeline_mode = #tpu.pipeline_mode<synchronous>, transform_indices = @transform_14, window_bounds = array<i64: 1, 128>}, {pipeline_mode = #tpu.pipeline_mode<synchronous>, transform_indices = @transform_15, window_bounds = array<i64: 1024, 128>}, {pipeline_mode = #tpu.pipeline_mode<synchronous>, transform_indices = @transform_16, window_bounds = array<i64: 1, 128>}, {pipeline_mode = #tpu.pipeline_mode<synchronous>, transform_indices = @transform_17, window_bounds = array<i64: 64, 128>}, {pipeline_mode = #tpu.pipeline_mode<synchronous>, transform_indices = @transform_18, window_bounds = array<i64: 1, 128>}, {pipeline_mode = #tpu.pipeline_mode<synchronous>, transform_indices = @transform_19, window_bounds = array<i64: 128, 384>}, {pipeline_mode = #tpu.pipeline_mode<synchronous>, transform_indices = @transform_20, window_bounds = array<i64: 1, 384>}, {pipeline_mode = #tpu.pipeline_mode<synchronous>, transform_indices = @transform_21, window_bounds = array<i64: 1, 384>}, {pipeline_mode = #tpu.pipeline_mode<synchronous>, transform_indices = @transform_22, window_bounds = array<i64: 1, 3>}, {transform_indices = @transform_23, window_bounds = array<i64: 1, 1, 3>}, {transform_indices = @transform_24, window_bounds = array<i64: 1, 1, 128>}]} {
    %c0 = arith.constant 0 : index
    %c0_0 = arith.constant 0 : index
    %c0_1 = arith.constant 0 : index
    %0 = vector.load %arg1[%c0, %c0_0, %c0_1] : memref<1x64x1xf32, #tpu.memory_space<vmem>>, vector<1x64x1xf32>
    %1 = vector.shape_cast %0 : vector<1x64x1xf32> to vector<64x1xf32>
    %cst = arith.constant 0.000000e+00 : f32
    %2 = vector.broadcast %cst : f32 to vector<16x1xf32>
    %cst_2 = arith.constant 0.000000e+00 : f32
    %3 = vector.broadcast %cst_2 : f32 to vector<15x1xf32>
    %4 = tpu.concatenate %2, %1, %3 in 0 : vector<16x1xf32>, vector<64x1xf32>, vector<15x1xf32> -> vector<95x1xf32>
    %5 = vector.extract_strided_slice %4 {offsets = [0, 0], sizes = [64, 1], strides = [1, 1]} : vector<95x1xf32> to vector<64x1xf32>
    %6 = vector.extract_strided_slice %4 {offsets = [1, 0], sizes = [64, 1], strides = [1, 1]} : vector<95x1xf32> to vector<64x1xf32>
    %7 = vector.extract_strided_slice %4 {offsets = [2, 0], sizes = [64, 1], strides = [1, 1]} : vector<95x1xf32> to vector<64x1xf32>
    %8 = vector.extract_strided_slice %4 {offsets = [3, 0], sizes = [64, 1], strides = [1, 1]} : vector<95x1xf32> to vector<64x1xf32>
    %9 = vector.extract_strided_slice %4 {offsets = [4, 0], sizes = [64, 1], strides = [1, 1]} : vector<95x1xf32> to vector<64x1xf32>
    %10 = vector.extract_strided_slice %4 {offsets = [5, 0], sizes = [64, 1], strides = [1, 1]} : vector<95x1xf32> to vector<64x1xf32>
    %11 = vector.extract_strided_slice %4 {offsets = [6, 0], sizes = [64, 1], strides = [1, 1]} : vector<95x1xf32> to vector<64x1xf32>
    %12 = vector.extract_strided_slice %4 {offsets = [7, 0], sizes = [64, 1], strides = [1, 1]} : vector<95x1xf32> to vector<64x1xf32>
    %13 = vector.extract_strided_slice %4 {offsets = [8, 0], sizes = [64, 1], strides = [1, 1]} : vector<95x1xf32> to vector<64x1xf32>
    %14 = vector.extract_strided_slice %4 {offsets = [9, 0], sizes = [64, 1], strides = [1, 1]} : vector<95x1xf32> to vector<64x1xf32>
    %15 = vector.extract_strided_slice %4 {offsets = [10, 0], sizes = [64, 1], strides = [1, 1]} : vector<95x1xf32> to vector<64x1xf32>
    %16 = vector.extract_strided_slice %4 {offsets = [11, 0], sizes = [64, 1], strides = [1, 1]} : vector<95x1xf32> to vector<64x1xf32>
    %17 = vector.extract_strided_slice %4 {offsets = [12, 0], sizes = [64, 1], strides = [1, 1]} : vector<95x1xf32> to vector<64x1xf32>
    %18 = vector.extract_strided_slice %4 {offsets = [13, 0], sizes = [64, 1], strides = [1, 1]} : vector<95x1xf32> to vector<64x1xf32>
    %19 = vector.extract_strided_slice %4 {offsets = [14, 0], sizes = [64, 1], strides = [1, 1]} : vector<95x1xf32> to vector<64x1xf32>
    %20 = vector.extract_strided_slice %4 {offsets = [15, 0], sizes = [64, 1], strides = [1, 1]} : vector<95x1xf32> to vector<64x1xf32>
    %21 = vector.extract_strided_slice %4 {offsets = [16, 0], sizes = [64, 1], strides = [1, 1]} : vector<95x1xf32> to vector<64x1xf32>
    %22 = vector.extract_strided_slice %4 {offsets = [17, 0], sizes = [64, 1], strides = [1, 1]} : vector<95x1xf32> to vector<64x1xf32>
    %23 = vector.extract_strided_slice %4 {offsets = [18, 0], sizes = [64, 1], strides = [1, 1]} : vector<95x1xf32> to vector<64x1xf32>
    %24 = vector.extract_strided_slice %4 {offsets = [19, 0], sizes = [64, 1], strides = [1, 1]} : vector<95x1xf32> to vector<64x1xf32>
    %25 = vector.extract_strided_slice %4 {offsets = [20, 0], sizes = [64, 1], strides = [1, 1]} : vector<95x1xf32> to vector<64x1xf32>
    %26 = vector.extract_strided_slice %4 {offsets = [21, 0], sizes = [64, 1], strides = [1, 1]} : vector<95x1xf32> to vector<64x1xf32>
    %27 = vector.extract_strided_slice %4 {offsets = [22, 0], sizes = [64, 1], strides = [1, 1]} : vector<95x1xf32> to vector<64x1xf32>
    %28 = vector.extract_strided_slice %4 {offsets = [23, 0], sizes = [64, 1], strides = [1, 1]} : vector<95x1xf32> to vector<64x1xf32>
    %29 = vector.extract_strided_slice %4 {offsets = [24, 0], sizes = [64, 1], strides = [1, 1]} : vector<95x1xf32> to vector<64x1xf32>
    %30 = vector.extract_strided_slice %4 {offsets = [25, 0], sizes = [64, 1], strides = [1, 1]} : vector<95x1xf32> to vector<64x1xf32>
    %31 = vector.extract_strided_slice %4 {offsets = [26, 0], sizes = [64, 1], strides = [1, 1]} : vector<95x1xf32> to vector<64x1xf32>
    %32 = vector.extract_strided_slice %4 {offsets = [27, 0], sizes = [64, 1], strides = [1, 1]} : vector<95x1xf32> to vector<64x1xf32>
    %33 = vector.extract_strided_slice %4 {offsets = [28, 0], sizes = [64, 1], strides = [1, 1]} : vector<95x1xf32> to vector<64x1xf32>
    %34 = vector.extract_strided_slice %4 {offsets = [29, 0], sizes = [64, 1], strides = [1, 1]} : vector<95x1xf32> to vector<64x1xf32>
    %35 = vector.extract_strided_slice %4 {offsets = [30, 0], sizes = [64, 1], strides = [1, 1]} : vector<95x1xf32> to vector<64x1xf32>
    %36 = vector.extract_strided_slice %4 {offsets = [31, 0], sizes = [64, 1], strides = [1, 1]} : vector<95x1xf32> to vector<64x1xf32>
    %37 = tpu.concatenate %5, %6, %7, %8, %9, %10, %11, %12, %13, %14, %15, %16, %17, %18, %19, %20 in 1 : vector<64x1xf32>, vector<64x1xf32>, vector<64x1xf32>, vector<64x1xf32>, vector<64x1xf32>, vector<64x1xf32>, vector<64x1xf32>, vector<64x1xf32>, vector<64x1xf32>, vector<64x1xf32>, vector<64x1xf32>, vector<64x1xf32>, vector<64x1xf32>, vector<64x1xf32>, vector<64x1xf32>, vector<64x1xf32> -> vector<64x16xf32>
    %38 = tpu.concatenate %21, %22, %23, %24, %25, %26, %27, %28, %29, %30, %31, %32, %33, %34, %35, %36 in 1 : vector<64x1xf32>, vector<64x1xf32>, vector<64x1xf32>, vector<64x1xf32>, vector<64x1xf32>, vector<64x1xf32>, vector<64x1xf32>, vector<64x1xf32>, vector<64x1xf32>, vector<64x1xf32>, vector<64x1xf32>, vector<64x1xf32>, vector<64x1xf32>, vector<64x1xf32>, vector<64x1xf32>, vector<64x1xf32> -> vector<64x16xf32>
    %39 = tpu.concatenate %37, %38 in 1 : vector<64x16xf32>, vector<64x16xf32> -> vector<64x32xf32>
    %c0_3 = arith.constant 0 : index
    %c0_4 = arith.constant 0 : index
    %40 = vector.load %arg2[%c0_3, %c0_4] : memref<32x32xf32, #tpu.memory_space<vmem>>, vector<32x32xf32>
    %cst_5 = arith.constant dense<0.000000e+00> : vector<64x32xf32>
    %41 = tpu.matmul %39, %40, %cst_5 {dimension_numbers = #tpu.dot_dimension_numbers<[1], [0], [0], [1], [0, 0, 1, 1], [], []>} : vector<64x32xf32>, vector<32x32xf32>, vector<64x32xf32> -> vector<64x32xf32>
    %c0_6 = arith.constant 0 : index
    %c0_7 = arith.constant 0 : index
    %42 = vector.load %arg3[%c0_6, %c0_7] : memref<1x32xf32, #tpu.memory_space<vmem>>, vector<1x32xf32>
    %43 = vector.broadcast %42 : vector<1x32xf32> to vector<64x32xf32>
    %44 = arith.addf %41, %43 : vector<64x32xf32>
    %cst_8 = arith.constant 0.000000e+00 : f32
    %45 = vector.broadcast %cst_8 : f32 to vector<64x32xf32>
    %46 = arith.maximumf %44, %45 : vector<64x32xf32>
    %cst_9 = arith.constant 0.000000e+00 : f32
    %47 = vector.broadcast %cst_9 : f32 to vector<16x32xf32>
    %cst_10 = arith.constant 0.000000e+00 : f32
    %48 = vector.broadcast %cst_10 : f32 to vector<15x32xf32>
    %49 = tpu.concatenate %47, %46, %48 in 0 : vector<16x32xf32>, vector<64x32xf32>, vector<15x32xf32> -> vector<95x32xf32>
    %50 = vector.extract_strided_slice %49 {offsets = [0, 0], sizes = [64, 32], strides = [1, 1]} : vector<95x32xf32> to vector<64x32xf32>
    %51 = vector.extract_strided_slice %49 {offsets = [1, 0], sizes = [64, 32], strides = [1, 1]} : vector<95x32xf32> to vector<64x32xf32>
    %52 = vector.extract_strided_slice %49 {offsets = [2, 0], sizes = [64, 32], strides = [1, 1]} : vector<95x32xf32> to vector<64x32xf32>
    %53 = vector.extract_strided_slice %49 {offsets = [3, 0], sizes = [64, 32], strides = [1, 1]} : vector<95x32xf32> to vector<64x32xf32>
    %54 = vector.extract_strided_slice %49 {offsets = [4, 0], sizes = [64, 32], strides = [1, 1]} : vector<95x32xf32> to vector<64x32xf32>
    %55 = vector.extract_strided_slice %49 {offsets = [5, 0], sizes = [64, 32], strides = [1, 1]} : vector<95x32xf32> to vector<64x32xf32>
    %56 = vector.extract_strided_slice %49 {offsets = [6, 0], sizes = [64, 32], strides = [1, 1]} : vector<95x32xf32> to vector<64x32xf32>
    %57 = vector.extract_strided_slice %49 {offsets = [7, 0], sizes = [64, 32], strides = [1, 1]} : vector<95x32xf32> to vector<64x32xf32>
    %58 = vector.extract_strided_slice %49 {offsets = [8, 0], sizes = [64, 32], strides = [1, 1]} : vector<95x32xf32> to vector<64x32xf32>
    %59 = vector.extract_strided_slice %49 {offsets = [9, 0], sizes = [64, 32], strides = [1, 1]} : vector<95x32xf32> to vector<64x32xf32>
    %60 = vector.extract_strided_slice %49 {offsets = [10, 0], sizes = [64, 32], strides = [1, 1]} : vector<95x32xf32> to vector<64x32xf32>
    %61 = vector.extract_strided_slice %49 {offsets = [11, 0], sizes = [64, 32], strides = [1, 1]} : vector<95x32xf32> to vector<64x32xf32>
    %62 = vector.extract_strided_slice %49 {offsets = [12, 0], sizes = [64, 32], strides = [1, 1]} : vector<95x32xf32> to vector<64x32xf32>
    %63 = vector.extract_strided_slice %49 {offsets = [13, 0], sizes = [64, 32], strides = [1, 1]} : vector<95x32xf32> to vector<64x32xf32>
    %64 = vector.extract_strided_slice %49 {offsets = [14, 0], sizes = [64, 32], strides = [1, 1]} : vector<95x32xf32> to vector<64x32xf32>
    %65 = vector.extract_strided_slice %49 {offsets = [15, 0], sizes = [64, 32], strides = [1, 1]} : vector<95x32xf32> to vector<64x32xf32>
    %66 = vector.extract_strided_slice %49 {offsets = [16, 0], sizes = [64, 32], strides = [1, 1]} : vector<95x32xf32> to vector<64x32xf32>
    %67 = vector.extract_strided_slice %49 {offsets = [17, 0], sizes = [64, 32], strides = [1, 1]} : vector<95x32xf32> to vector<64x32xf32>
    %68 = vector.extract_strided_slice %49 {offsets = [18, 0], sizes = [64, 32], strides = [1, 1]} : vector<95x32xf32> to vector<64x32xf32>
    %69 = vector.extract_strided_slice %49 {offsets = [19, 0], sizes = [64, 32], strides = [1, 1]} : vector<95x32xf32> to vector<64x32xf32>
    %70 = vector.extract_strided_slice %49 {offsets = [20, 0], sizes = [64, 32], strides = [1, 1]} : vector<95x32xf32> to vector<64x32xf32>
    %71 = vector.extract_strided_slice %49 {offsets = [21, 0], sizes = [64, 32], strides = [1, 1]} : vector<95x32xf32> to vector<64x32xf32>
    %72 = vector.extract_strided_slice %49 {offsets = [22, 0], sizes = [64, 32], strides = [1, 1]} : vector<95x32xf32> to vector<64x32xf32>
    %73 = vector.extract_strided_slice %49 {offsets = [23, 0], sizes = [64, 32], strides = [1, 1]} : vector<95x32xf32> to vector<64x32xf32>
    %74 = vector.extract_strided_slice %49 {offsets = [24, 0], sizes = [64, 32], strides = [1, 1]} : vector<95x32xf32> to vector<64x32xf32>
    %75 = vector.extract_strided_slice %49 {offsets = [25, 0], sizes = [64, 32], strides = [1, 1]} : vector<95x32xf32> to vector<64x32xf32>
    %76 = vector.extract_strided_slice %49 {offsets = [26, 0], sizes = [64, 32], strides = [1, 1]} : vector<95x32xf32> to vector<64x32xf32>
    %77 = vector.extract_strided_slice %49 {offsets = [27, 0], sizes = [64, 32], strides = [1, 1]} : vector<95x32xf32> to vector<64x32xf32>
    %78 = vector.extract_strided_slice %49 {offsets = [28, 0], sizes = [64, 32], strides = [1, 1]} : vector<95x32xf32> to vector<64x32xf32>
    %79 = vector.extract_strided_slice %49 {offsets = [29, 0], sizes = [64, 32], strides = [1, 1]} : vector<95x32xf32> to vector<64x32xf32>
    %80 = vector.extract_strided_slice %49 {offsets = [30, 0], sizes = [64, 32], strides = [1, 1]} : vector<95x32xf32> to vector<64x32xf32>
    %81 = vector.extract_strided_slice %49 {offsets = [31, 0], sizes = [64, 32], strides = [1, 1]} : vector<95x32xf32> to vector<64x32xf32>
    %82 = tpu.concatenate %50, %51, %52, %53, %54, %55, %56, %57, %58, %59, %60, %61, %62, %63, %64, %65 in 1 : vector<64x32xf32>, vector<64x32xf32>, vector<64x32xf32>, vector<64x32xf32>, vector<64x32xf32>, vector<64x32xf32>, vector<64x32xf32>, vector<64x32xf32>, vector<64x32xf32>, vector<64x32xf32>, vector<64x32xf32>, vector<64x32xf32>, vector<64x32xf32>, vector<64x32xf32>, vector<64x32xf32>, vector<64x32xf32> -> vector<64x512xf32>
    %83 = tpu.concatenate %66, %67, %68, %69, %70, %71, %72, %73, %74, %75, %76, %77, %78, %79, %80, %81 in 1 : vector<64x32xf32>, vector<64x32xf32>, vector<64x32xf32>, vector<64x32xf32>, vector<64x32xf32>, vector<64x32xf32>, vector<64x32xf32>, vector<64x32xf32>, vector<64x32xf32>, vector<64x32xf32>, vector<64x32xf32>, vector<64x32xf32>, vector<64x32xf32>, vector<64x32xf32>, vector<64x32xf32>, vector<64x32xf32> -> vector<64x512xf32>
    %84 = tpu.concatenate %82, %83 in 1 : vector<64x512xf32>, vector<64x512xf32> -> vector<64x1024xf32>
    %c0_11 = arith.constant 0 : index
    %c0_12 = arith.constant 0 : index
    %85 = vector.load %arg4[%c0_11, %c0_12] : memref<1024x32xf32, #tpu.memory_space<vmem>>, vector<1024x32xf32>
    %cst_13 = arith.constant dense<0.000000e+00> : vector<64x32xf32>
    %86 = tpu.matmul %84, %85, %cst_13 {dimension_numbers = #tpu.dot_dimension_numbers<[1], [0], [0], [1], [0, 0, 1, 1], [], []>} : vector<64x1024xf32>, vector<1024x32xf32>, vector<64x32xf32> -> vector<64x32xf32>
    %c0_14 = arith.constant 0 : index
    %c0_15 = arith.constant 0 : index
    %87 = vector.load %arg5[%c0_14, %c0_15] : memref<1x32xf32, #tpu.memory_space<vmem>>, vector<1x32xf32>
    %88 = vector.broadcast %87 : vector<1x32xf32> to vector<64x32xf32>
    %89 = arith.addf %86, %88 : vector<64x32xf32>
    %cst_16 = arith.constant 0.000000e+00 : f32
    %90 = vector.broadcast %cst_16 : f32 to vector<64x32xf32>
    %91 = arith.maximumf %89, %90 : vector<64x32xf32>
    %c0_17 = arith.constant 0 : index
    %c0_18 = arith.constant 0 : index
    %92 = vector.load %arg6[%c0_17, %c0_18] : memref<1x32xf32, #tpu.memory_space<vmem>>, vector<1x32xf32>
    %93 = vector.broadcast %1 : vector<64x1xf32> to vector<64x32xf32>
    %94 = vector.broadcast %92 : vector<1x32xf32> to vector<64x32xf32>
    %95 = arith.mulf %93, %94 : vector<64x32xf32>
    %96 = arith.addf %91, %95 : vector<64x32xf32>
    %c0_19 = arith.constant 0 : index
    %c0_20 = arith.constant 0 : index
    %97 = vector.load %arg7[%c0_19, %c0_20] : memref<1x32xf32, #tpu.memory_space<vmem>>, vector<1x32xf32>
    %98 = vector.broadcast %97 : vector<1x32xf32> to vector<64x32xf32>
    %99 = arith.addf %96, %98 : vector<64x32xf32>
    %100 = vector.extract_strided_slice %99 {offsets = [0, 0], sizes = [63, 32], strides = [1, 1]} : vector<64x32xf32> to vector<63x32xf32>
    %101 = vector.extract_strided_slice %99 {offsets = [1, 0], sizes = [63, 32], strides = [1, 1]} : vector<64x32xf32> to vector<63x32xf32>
    %102 = arith.maximumf %100, %101 : vector<63x32xf32>
    %103 = vector.extract_strided_slice %102 {offsets = [0, 0], sizes = [61, 32], strides = [1, 1]} : vector<63x32xf32> to vector<61x32xf32>
    %104 = vector.extract_strided_slice %102 {offsets = [2, 0], sizes = [61, 32], strides = [1, 1]} : vector<63x32xf32> to vector<61x32xf32>
    %105 = arith.maximumf %103, %104 : vector<61x32xf32>
    %106 = vector.extract_strided_slice %105 {offsets = [0, 0], sizes = [57, 32], strides = [1, 1]} : vector<61x32xf32> to vector<57x32xf32>
    %107 = vector.extract_strided_slice %105 {offsets = [4, 0], sizes = [57, 32], strides = [1, 1]} : vector<61x32xf32> to vector<57x32xf32>
    %108 = arith.maximumf %106, %107 : vector<57x32xf32>
    %109 = tpu.iota {dimensions = array<i32: 0>} : vector<29x57xi32>
    %110 = tpu.iota {dimensions = array<i32: 1>} : vector<29x57xi32>
    %c2_i32 = arith.constant 2 : i32
    %111 = vector.broadcast %c2_i32 : i32 to vector<29x57xi32>
    %112 = arith.muli %111, %109 : vector<29x57xi32>
    %113 = arith.cmpi eq, %110, %112 : vector<29x57xi32>
    %114 = arith.extui %113 : vector<29x57xi1> to vector<29x57xi32>
    %115 = arith.sitofp %114 : vector<29x57xi32> to vector<29x57xf32>
    %cst_21 = arith.constant dense<0.000000e+00> : vector<29x32xf32>
    %116 = tpu.matmul %115, %108, %cst_21 {dimension_numbers = #tpu.dot_dimension_numbers<[1], [0], [0], [1], [0, 0, 1, 1], [], []>} : vector<29x57xf32>, vector<57x32xf32>, vector<29x32xf32> -> vector<29x32xf32>
    %cst_22 = arith.constant 0.000000e+00 : f32
    %117 = vector.broadcast %cst_22 : f32 to vector<8x32xf32>
    %cst_23 = arith.constant 0.000000e+00 : f32
    %118 = vector.broadcast %cst_23 : f32 to vector<7x32xf32>
    %119 = tpu.concatenate %117, %116, %118 in 0 : vector<8x32xf32>, vector<29x32xf32>, vector<7x32xf32> -> vector<44x32xf32>
    %120 = vector.extract_strided_slice %119 {offsets = [0, 0], sizes = [29, 32], strides = [1, 1]} : vector<44x32xf32> to vector<29x32xf32>
    %121 = vector.extract_strided_slice %119 {offsets = [1, 0], sizes = [29, 32], strides = [1, 1]} : vector<44x32xf32> to vector<29x32xf32>
    %122 = vector.extract_strided_slice %119 {offsets = [2, 0], sizes = [29, 32], strides = [1, 1]} : vector<44x32xf32> to vector<29x32xf32>
    %123 = vector.extract_strided_slice %119 {offsets = [3, 0], sizes = [29, 32], strides = [1, 1]} : vector<44x32xf32> to vector<29x32xf32>
    %124 = vector.extract_strided_slice %119 {offsets = [4, 0], sizes = [29, 32], strides = [1, 1]} : vector<44x32xf32> to vector<29x32xf32>
    %125 = vector.extract_strided_slice %119 {offsets = [5, 0], sizes = [29, 32], strides = [1, 1]} : vector<44x32xf32> to vector<29x32xf32>
    %126 = vector.extract_strided_slice %119 {offsets = [6, 0], sizes = [29, 32], strides = [1, 1]} : vector<44x32xf32> to vector<29x32xf32>
    %127 = vector.extract_strided_slice %119 {offsets = [7, 0], sizes = [29, 32], strides = [1, 1]} : vector<44x32xf32> to vector<29x32xf32>
    %128 = vector.extract_strided_slice %119 {offsets = [8, 0], sizes = [29, 32], strides = [1, 1]} : vector<44x32xf32> to vector<29x32xf32>
    %129 = vector.extract_strided_slice %119 {offsets = [9, 0], sizes = [29, 32], strides = [1, 1]} : vector<44x32xf32> to vector<29x32xf32>
    %130 = vector.extract_strided_slice %119 {offsets = [10, 0], sizes = [29, 32], strides = [1, 1]} : vector<44x32xf32> to vector<29x32xf32>
    %131 = vector.extract_strided_slice %119 {offsets = [11, 0], sizes = [29, 32], strides = [1, 1]} : vector<44x32xf32> to vector<29x32xf32>
    %132 = vector.extract_strided_slice %119 {offsets = [12, 0], sizes = [29, 32], strides = [1, 1]} : vector<44x32xf32> to vector<29x32xf32>
    %133 = vector.extract_strided_slice %119 {offsets = [13, 0], sizes = [29, 32], strides = [1, 1]} : vector<44x32xf32> to vector<29x32xf32>
    %134 = vector.extract_strided_slice %119 {offsets = [14, 0], sizes = [29, 32], strides = [1, 1]} : vector<44x32xf32> to vector<29x32xf32>
    %135 = vector.extract_strided_slice %119 {offsets = [15, 0], sizes = [29, 32], strides = [1, 1]} : vector<44x32xf32> to vector<29x32xf32>
    %136 = tpu.concatenate %120, %121, %122, %123, %124, %125, %126, %127, %128, %129, %130, %131, %132, %133, %134, %135 in 1 : vector<29x32xf32>, vector<29x32xf32>, vector<29x32xf32>, vector<29x32xf32>, vector<29x32xf32>, vector<29x32xf32>, vector<29x32xf32>, vector<29x32xf32>, vector<29x32xf32>, vector<29x32xf32>, vector<29x32xf32>, vector<29x32xf32>, vector<29x32xf32>, vector<29x32xf32>, vector<29x32xf32>, vector<29x32xf32> -> vector<29x512xf32>
    %c0_24 = arith.constant 0 : index
    %c0_25 = arith.constant 0 : index
    %137 = vector.load %arg8[%c0_24, %c0_25] : memref<512x64xf32, #tpu.memory_space<vmem>>, vector<512x64xf32>
    %cst_26 = arith.constant dense<0.000000e+00> : vector<29x64xf32>
    %138 = tpu.matmul %136, %137, %cst_26 {dimension_numbers = #tpu.dot_dimension_numbers<[1], [0], [0], [1], [0, 0, 1, 1], [], []>} : vector<29x512xf32>, vector<512x64xf32>, vector<29x64xf32> -> vector<29x64xf32>
    %c0_27 = arith.constant 0 : index
    %c0_28 = arith.constant 0 : index
    %139 = vector.load %arg9[%c0_27, %c0_28] : memref<1x64xf32, #tpu.memory_space<vmem>>, vector<1x64xf32>
    %140 = vector.broadcast %139 : vector<1x64xf32> to vector<29x64xf32>
    %141 = arith.addf %138, %140 : vector<29x64xf32>
    %cst_29 = arith.constant 0.000000e+00 : f32
    %142 = vector.broadcast %cst_29 : f32 to vector<29x64xf32>
    %143 = arith.maximumf %141, %142 : vector<29x64xf32>
    %cst_30 = arith.constant 0.000000e+00 : f32
    %144 = vector.broadcast %cst_30 : f32 to vector<8x64xf32>
    %cst_31 = arith.constant 0.000000e+00 : f32
    %145 = vector.broadcast %cst_31 : f32 to vector<7x64xf32>
    %146 = tpu.concatenate %144, %143, %145 in 0 : vector<8x64xf32>, vector<29x64xf32>, vector<7x64xf32> -> vector<44x64xf32>
    %147 = vector.extract_strided_slice %146 {offsets = [0, 0], sizes = [29, 64], strides = [1, 1]} : vector<44x64xf32> to vector<29x64xf32>
    %148 = vector.extract_strided_slice %146 {offsets = [1, 0], sizes = [29, 64], strides = [1, 1]} : vector<44x64xf32> to vector<29x64xf32>
    %149 = vector.extract_strided_slice %146 {offsets = [2, 0], sizes = [29, 64], strides = [1, 1]} : vector<44x64xf32> to vector<29x64xf32>
    %150 = vector.extract_strided_slice %146 {offsets = [3, 0], sizes = [29, 64], strides = [1, 1]} : vector<44x64xf32> to vector<29x64xf32>
    %151 = vector.extract_strided_slice %146 {offsets = [4, 0], sizes = [29, 64], strides = [1, 1]} : vector<44x64xf32> to vector<29x64xf32>
    %152 = vector.extract_strided_slice %146 {offsets = [5, 0], sizes = [29, 64], strides = [1, 1]} : vector<44x64xf32> to vector<29x64xf32>
    %153 = vector.extract_strided_slice %146 {offsets = [6, 0], sizes = [29, 64], strides = [1, 1]} : vector<44x64xf32> to vector<29x64xf32>
    %154 = vector.extract_strided_slice %146 {offsets = [7, 0], sizes = [29, 64], strides = [1, 1]} : vector<44x64xf32> to vector<29x64xf32>
    %155 = vector.extract_strided_slice %146 {offsets = [8, 0], sizes = [29, 64], strides = [1, 1]} : vector<44x64xf32> to vector<29x64xf32>
    %156 = vector.extract_strided_slice %146 {offsets = [9, 0], sizes = [29, 64], strides = [1, 1]} : vector<44x64xf32> to vector<29x64xf32>
    %157 = vector.extract_strided_slice %146 {offsets = [10, 0], sizes = [29, 64], strides = [1, 1]} : vector<44x64xf32> to vector<29x64xf32>
    %158 = vector.extract_strided_slice %146 {offsets = [11, 0], sizes = [29, 64], strides = [1, 1]} : vector<44x64xf32> to vector<29x64xf32>
    %159 = vector.extract_strided_slice %146 {offsets = [12, 0], sizes = [29, 64], strides = [1, 1]} : vector<44x64xf32> to vector<29x64xf32>
    %160 = vector.extract_strided_slice %146 {offsets = [13, 0], sizes = [29, 64], strides = [1, 1]} : vector<44x64xf32> to vector<29x64xf32>
    %161 = vector.extract_strided_slice %146 {offsets = [14, 0], sizes = [29, 64], strides = [1, 1]} : vector<44x64xf32> to vector<29x64xf32>
    %162 = vector.extract_strided_slice %146 {offsets = [15, 0], sizes = [29, 64], strides = [1, 1]} : vector<44x64xf32> to vector<29x64xf32>
    %163 = tpu.concatenate %147, %148, %149, %150, %151, %152, %153, %154, %155, %156, %157, %158, %159, %160, %161, %162 in 1 : vector<29x64xf32>, vector<29x64xf32>, vector<29x64xf32>, vector<29x64xf32>, vector<29x64xf32>, vector<29x64xf32>, vector<29x64xf32>, vector<29x64xf32>, vector<29x64xf32>, vector<29x64xf32>, vector<29x64xf32>, vector<29x64xf32>, vector<29x64xf32>, vector<29x64xf32>, vector<29x64xf32>, vector<29x64xf32> -> vector<29x1024xf32>
    %c0_32 = arith.constant 0 : index
    %c0_33 = arith.constant 0 : index
    %164 = vector.load %arg10[%c0_32, %c0_33] : memref<1024x64xf32, #tpu.memory_space<vmem>>, vector<1024x64xf32>
    %cst_34 = arith.constant dense<0.000000e+00> : vector<29x64xf32>
    %165 = tpu.matmul %163, %164, %cst_34 {dimension_numbers = #tpu.dot_dimension_numbers<[1], [0], [0], [1], [0, 0, 1, 1], [], []>} : vector<29x1024xf32>, vector<1024x64xf32>, vector<29x64xf32> -> vector<29x64xf32>
    %c0_35 = arith.constant 0 : index
    %c0_36 = arith.constant 0 : index
    %166 = vector.load %arg11[%c0_35, %c0_36] : memref<1x64xf32, #tpu.memory_space<vmem>>, vector<1x64xf32>
    %167 = vector.broadcast %166 : vector<1x64xf32> to vector<29x64xf32>
    %168 = arith.addf %165, %167 : vector<29x64xf32>
    %cst_37 = arith.constant 0.000000e+00 : f32
    %169 = vector.broadcast %cst_37 : f32 to vector<29x64xf32>
    %170 = arith.maximumf %168, %169 : vector<29x64xf32>
    %c0_38 = arith.constant 0 : index
    %c0_39 = arith.constant 0 : index
    %171 = vector.load %arg12[%c0_38, %c0_39] : memref<32x64xf32, #tpu.memory_space<vmem>>, vector<32x64xf32>
    %cst_40 = arith.constant dense<0.000000e+00> : vector<29x64xf32>
    %172 = tpu.matmul %116, %171, %cst_40 {dimension_numbers = #tpu.dot_dimension_numbers<[1], [0], [0], [1], [0, 0, 1, 1], [], []>} : vector<29x32xf32>, vector<32x64xf32>, vector<29x64xf32> -> vector<29x64xf32>
    %173 = arith.addf %170, %172 : vector<29x64xf32>
    %c0_41 = arith.constant 0 : index
    %c0_42 = arith.constant 0 : index
    %174 = vector.load %arg13[%c0_41, %c0_42] : memref<1x64xf32, #tpu.memory_space<vmem>>, vector<1x64xf32>
    %175 = vector.broadcast %174 : vector<1x64xf32> to vector<29x64xf32>
    %176 = arith.addf %173, %175 : vector<29x64xf32>
    %177 = vector.extract_strided_slice %176 {offsets = [0, 0], sizes = [28, 64], strides = [1, 1]} : vector<29x64xf32> to vector<28x64xf32>
    %178 = vector.extract_strided_slice %176 {offsets = [1, 0], sizes = [28, 64], strides = [1, 1]} : vector<29x64xf32> to vector<28x64xf32>
    %179 = arith.maximumf %177, %178 : vector<28x64xf32>
    %180 = vector.extract_strided_slice %179 {offsets = [0, 0], sizes = [26, 64], strides = [1, 1]} : vector<28x64xf32> to vector<26x64xf32>
    %181 = vector.extract_strided_slice %179 {offsets = [2, 0], sizes = [26, 64], strides = [1, 1]} : vector<28x64xf32> to vector<26x64xf32>
    %182 = arith.maximumf %180, %181 : vector<26x64xf32>
    %183 = vector.extract_strided_slice %182 {offsets = [0, 0], sizes = [22, 64], strides = [1, 1]} : vector<26x64xf32> to vector<22x64xf32>
    %184 = vector.extract_strided_slice %182 {offsets = [4, 0], sizes = [22, 64], strides = [1, 1]} : vector<26x64xf32> to vector<22x64xf32>
    %185 = arith.maximumf %183, %184 : vector<22x64xf32>
    %186 = tpu.iota {dimensions = array<i32: 0>} : vector<11x22xi32>
    %187 = tpu.iota {dimensions = array<i32: 1>} : vector<11x22xi32>
    %c2_i32_43 = arith.constant 2 : i32
    %188 = vector.broadcast %c2_i32_43 : i32 to vector<11x22xi32>
    %189 = arith.muli %188, %186 : vector<11x22xi32>
    %190 = arith.cmpi eq, %187, %189 : vector<11x22xi32>
    %191 = arith.extui %190 : vector<11x22xi1> to vector<11x22xi32>
    %192 = arith.sitofp %191 : vector<11x22xi32> to vector<11x22xf32>
    %cst_44 = arith.constant dense<0.000000e+00> : vector<11x64xf32>
    %193 = tpu.matmul %192, %185, %cst_44 {dimension_numbers = #tpu.dot_dimension_numbers<[1], [0], [0], [1], [0, 0, 1, 1], [], []>} : vector<11x22xf32>, vector<22x64xf32>, vector<11x64xf32> -> vector<11x64xf32>
    %cst_45 = arith.constant 0.000000e+00 : f32
    %194 = vector.broadcast %cst_45 : f32 to vector<4x64xf32>
    %cst_46 = arith.constant 0.000000e+00 : f32
    %195 = vector.broadcast %cst_46 : f32 to vector<3x64xf32>
    %196 = tpu.concatenate %194, %193, %195 in 0 : vector<4x64xf32>, vector<11x64xf32>, vector<3x64xf32> -> vector<18x64xf32>
    %197 = vector.extract_strided_slice %196 {offsets = [0, 0], sizes = [11, 64], strides = [1, 1]} : vector<18x64xf32> to vector<11x64xf32>
    %198 = vector.extract_strided_slice %196 {offsets = [1, 0], sizes = [11, 64], strides = [1, 1]} : vector<18x64xf32> to vector<11x64xf32>
    %199 = vector.extract_strided_slice %196 {offsets = [2, 0], sizes = [11, 64], strides = [1, 1]} : vector<18x64xf32> to vector<11x64xf32>
    %200 = vector.extract_strided_slice %196 {offsets = [3, 0], sizes = [11, 64], strides = [1, 1]} : vector<18x64xf32> to vector<11x64xf32>
    %201 = vector.extract_strided_slice %196 {offsets = [4, 0], sizes = [11, 64], strides = [1, 1]} : vector<18x64xf32> to vector<11x64xf32>
    %202 = vector.extract_strided_slice %196 {offsets = [5, 0], sizes = [11, 64], strides = [1, 1]} : vector<18x64xf32> to vector<11x64xf32>
    %203 = vector.extract_strided_slice %196 {offsets = [6, 0], sizes = [11, 64], strides = [1, 1]} : vector<18x64xf32> to vector<11x64xf32>
    %204 = vector.extract_strided_slice %196 {offsets = [7, 0], sizes = [11, 64], strides = [1, 1]} : vector<18x64xf32> to vector<11x64xf32>
    %205 = tpu.concatenate %197, %198, %199, %200, %201, %202, %203, %204 in 1 : vector<11x64xf32>, vector<11x64xf32>, vector<11x64xf32>, vector<11x64xf32>, vector<11x64xf32>, vector<11x64xf32>, vector<11x64xf32>, vector<11x64xf32> -> vector<11x512xf32>
    %c0_47 = arith.constant 0 : index
    %c0_48 = arith.constant 0 : index
    %206 = vector.load %arg14[%c0_47, %c0_48] : memref<512x128xf32, #tpu.memory_space<vmem>>, vector<512x128xf32>
    %cst_49 = arith.constant dense<0.000000e+00> : vector<11x128xf32>
    %207 = tpu.matmul %205, %206, %cst_49 {dimension_numbers = #tpu.dot_dimension_numbers<[1], [0], [0], [1], [0, 0, 1, 1], [], []>} : vector<11x512xf32>, vector<512x128xf32>, vector<11x128xf32> -> vector<11x128xf32>
    %c0_50 = arith.constant 0 : index
    %c0_51 = arith.constant 0 : index
    %208 = vector.load %arg15[%c0_50, %c0_51] : memref<1x128xf32, #tpu.memory_space<vmem>>, vector<1x128xf32>
    %209 = vector.broadcast %208 : vector<1x128xf32> to vector<11x128xf32>
    %210 = arith.addf %207, %209 : vector<11x128xf32>
    %cst_52 = arith.constant 0.000000e+00 : f32
    %211 = vector.broadcast %cst_52 : f32 to vector<11x128xf32>
    %212 = arith.maximumf %210, %211 : vector<11x128xf32>
    %cst_53 = arith.constant 0.000000e+00 : f32
    %213 = vector.broadcast %cst_53 : f32 to vector<4x128xf32>
    %cst_54 = arith.constant 0.000000e+00 : f32
    %214 = vector.broadcast %cst_54 : f32 to vector<3x128xf32>
    %215 = tpu.concatenate %213, %212, %214 in 0 : vector<4x128xf32>, vector<11x128xf32>, vector<3x128xf32> -> vector<18x128xf32>
    %216 = vector.extract_strided_slice %215 {offsets = [0, 0], sizes = [11, 128], strides = [1, 1]} : vector<18x128xf32> to vector<11x128xf32>
    %217 = vector.extract_strided_slice %215 {offsets = [1, 0], sizes = [11, 128], strides = [1, 1]} : vector<18x128xf32> to vector<11x128xf32>
    %218 = vector.extract_strided_slice %215 {offsets = [2, 0], sizes = [11, 128], strides = [1, 1]} : vector<18x128xf32> to vector<11x128xf32>
    %219 = vector.extract_strided_slice %215 {offsets = [3, 0], sizes = [11, 128], strides = [1, 1]} : vector<18x128xf32> to vector<11x128xf32>
    %220 = vector.extract_strided_slice %215 {offsets = [4, 0], sizes = [11, 128], strides = [1, 1]} : vector<18x128xf32> to vector<11x128xf32>
    %221 = vector.extract_strided_slice %215 {offsets = [5, 0], sizes = [11, 128], strides = [1, 1]} : vector<18x128xf32> to vector<11x128xf32>
    %222 = vector.extract_strided_slice %215 {offsets = [6, 0], sizes = [11, 128], strides = [1, 1]} : vector<18x128xf32> to vector<11x128xf32>
    %223 = vector.extract_strided_slice %215 {offsets = [7, 0], sizes = [11, 128], strides = [1, 1]} : vector<18x128xf32> to vector<11x128xf32>
    %224 = tpu.concatenate %216, %217, %218, %219, %220, %221, %222, %223 in 1 : vector<11x128xf32>, vector<11x128xf32>, vector<11x128xf32>, vector<11x128xf32>, vector<11x128xf32>, vector<11x128xf32>, vector<11x128xf32>, vector<11x128xf32> -> vector<11x1024xf32>
    %c0_55 = arith.constant 0 : index
    %c0_56 = arith.constant 0 : index
    %225 = vector.load %arg16[%c0_55, %c0_56] : memref<1024x128xf32, #tpu.memory_space<vmem>>, vector<1024x128xf32>
    %cst_57 = arith.constant dense<0.000000e+00> : vector<11x128xf32>
    %226 = tpu.matmul %224, %225, %cst_57 {dimension_numbers = #tpu.dot_dimension_numbers<[1], [0], [0], [1], [0, 0, 1, 1], [], []>} : vector<11x1024xf32>, vector<1024x128xf32>, vector<11x128xf32> -> vector<11x128xf32>
    %c0_58 = arith.constant 0 : index
    %c0_59 = arith.constant 0 : index
    %227 = vector.load %arg17[%c0_58, %c0_59] : memref<1x128xf32, #tpu.memory_space<vmem>>, vector<1x128xf32>
    %228 = vector.broadcast %227 : vector<1x128xf32> to vector<11x128xf32>
    %229 = arith.addf %226, %228 : vector<11x128xf32>
    %cst_60 = arith.constant 0.000000e+00 : f32
    %230 = vector.broadcast %cst_60 : f32 to vector<11x128xf32>
    %231 = arith.maximumf %229, %230 : vector<11x128xf32>
    %c0_61 = arith.constant 0 : index
    %c0_62 = arith.constant 0 : index
    %232 = vector.load %arg18[%c0_61, %c0_62] : memref<64x128xf32, #tpu.memory_space<vmem>>, vector<64x128xf32>
    %cst_63 = arith.constant dense<0.000000e+00> : vector<11x128xf32>
    %233 = tpu.matmul %193, %232, %cst_63 {dimension_numbers = #tpu.dot_dimension_numbers<[1], [0], [0], [1], [0, 0, 1, 1], [], []>} : vector<11x64xf32>, vector<64x128xf32>, vector<11x128xf32> -> vector<11x128xf32>
    %234 = arith.addf %231, %233 : vector<11x128xf32>
    %c0_64 = arith.constant 0 : index
    %c0_65 = arith.constant 0 : index
    %235 = vector.load %arg19[%c0_64, %c0_65] : memref<1x128xf32, #tpu.memory_space<vmem>>, vector<1x128xf32>
    %236 = vector.broadcast %235 : vector<1x128xf32> to vector<11x128xf32>
    %237 = arith.addf %234, %236 : vector<11x128xf32>
    %cst_66 = arith.constant dense<0xFF800000> : vector<128xf32>
    %238 = vector.multi_reduction <maximumf>, %237, %cst_66 [0] : vector<11x128xf32> to vector<128xf32>
    %239 = vector.shape_cast %238 : vector<128xf32> to vector<1x128xf32>
    %c0_67 = arith.constant 0 : index
    %c0_68 = arith.constant 0 : index
    %c0_69 = arith.constant 0 : index
    %240 = vector.load %arg25[%c0_67, %c0_68, %c0_69] : memref<1x1x128xf32, #tpu.memory_space<vmem>>, vector<1x1x128xf32>
    %241 = vector.shape_cast %240 : vector<1x1x128xf32> to vector<1x128xf32>
    %242 = vector.shape_cast %239 : vector<1x128xf32> to vector<1x1x128xf32>
    tpu.vector_store %arg25[%c0_67, %c0_68, %c0_69], %242 {strides = array<i32>} : memref<1x1x128xf32, #tpu.memory_space<vmem>>, vector<1x1x128xf32>,
    %c0_70 = arith.constant 0 : index
    %c0_71 = arith.constant 0 : index
    %243 = vector.load %arg20[%c0_70, %c0_71] : memref<128x384xf32, #tpu.memory_space<vmem>>, vector<128x384xf32>
    %cst_72 = arith.constant dense<0.000000e+00> : vector<1x384xf32>
    %244 = tpu.matmul %239, %243, %cst_72 {dimension_numbers = #tpu.dot_dimension_numbers<[1], [0], [0], [1], [0, 0, 1, 1], [], []>} : vector<1x128xf32>, vector<128x384xf32>, vector<1x384xf32> -> vector<1x384xf32>
    %c0_73 = arith.constant 0 : index
    %c0_74 = arith.constant 0 : index
    %245 = vector.load %arg21[%c0_73, %c0_74] : memref<1x384xf32, #tpu.memory_space<vmem>>, vector<1x384xf32>
    %246 = arith.addf %244, %245 : vector<1x384xf32>
    %cst_75 = arith.constant 0.000000e+00 : f32
    %247 = vector.broadcast %cst_75 : f32 to vector<1x384xf32>
    %248 = arith.cmpf oge, %246, %247 : vector<1x384xf32>
    %cst_76 = arith.constant 0.00999999977 : f32
    %249 = vector.broadcast %cst_76 : f32 to vector<1x384xf32>
    %250 = arith.mulf %249, %246 : vector<1x384xf32>
    %251 = arith.select %248, %246, %250 : vector<1x384xi1>, vector<1x384xf32>
    %c0_77 = arith.constant 0 : index
    %c0_78 = arith.constant 0 : index
    %252 = vector.load %arg22[%c0_77, %c0_78] : memref<1x384xf32, #tpu.memory_space<vmem>>, vector<1x384xf32>
    %253 = arith.mulf %251, %252 : vector<1x384xf32>
    %254 = vector.extract_strided_slice %253 {offsets = [0, 0], sizes = [1, 128], strides = [1, 1]} : vector<1x384xf32> to vector<1x128xf32>
    %cst_79 = arith.constant dense<0.000000e+00> : vector<1xf32>
    %255 = vector.multi_reduction <add>, %254, %cst_79 [1] : vector<1x128xf32> to vector<1xf32>
    %256 = vector.shape_cast %255 : vector<1xf32> to vector<1x1xf32>
    %257 = vector.extract_strided_slice %253 {offsets = [0, 128], sizes = [1, 128], strides = [1, 1]} : vector<1x384xf32> to vector<1x128xf32>
    %cst_80 = arith.constant dense<0.000000e+00> : vector<1xf32>
    %258 = vector.multi_reduction <add>, %257, %cst_80 [1] : vector<1x128xf32> to vector<1xf32>
    %259 = vector.shape_cast %258 : vector<1xf32> to vector<1x1xf32>
    %260 = vector.extract_strided_slice %253 {offsets = [0, 256], sizes = [1, 128], strides = [1, 1]} : vector<1x384xf32> to vector<1x128xf32>
    %cst_81 = arith.constant dense<0.000000e+00> : vector<1xf32>
    %261 = vector.multi_reduction <add>, %260, %cst_81 [1] : vector<1x128xf32> to vector<1xf32>
    %262 = vector.shape_cast %261 : vector<1xf32> to vector<1x1xf32>
    %263 = tpu.concatenate %256, %259, %262 in 1 : vector<1x1xf32>, vector<1x1xf32>, vector<1x1xf32> -> vector<1x3xf32>
    %c0_82 = arith.constant 0 : index
    %c0_83 = arith.constant 0 : index
    %264 = vector.load %arg23[%c0_82, %c0_83] : memref<1x3xf32, #tpu.memory_space<vmem>>, vector<1x3xf32>
    %265 = arith.addf %263, %264 : vector<1x3xf32>
    %c0_84 = arith.constant 0 : index
    %c0_85 = arith.constant 0 : index
    %c0_86 = arith.constant 0 : index
    %266 = vector.load %arg24[%c0_84, %c0_85, %c0_86] : memref<1x1x3xf32, #tpu.memory_space<vmem>>, vector<1x1x3xf32>
    %267 = vector.shape_cast %266 : vector<1x1x3xf32> to vector<1x3xf32>
    %268 = vector.shape_cast %265 : vector<1x3xf32> to vector<1x1x3xf32>
    tpu.vector_store %arg24[%c0_84, %c0_85, %c0_86], %268 {strides = array<i32>} : memref<1x1x3xf32, #tpu.memory_space<vmem>>, vector<1x1x3xf32>,
    return
  }
  func.func @transform_0(%arg0: i32) -> (i32, i32, i32) {
    %c0_i32 = arith.constant 0 : i32
    %c0_i32_0 = arith.constant 0 : i32
    %c0_i32_1 = arith.constant 0 : i32
    return %arg0, %c0_i32, %c0_i32_0 : i32, i32, i32
  }
  func.func @transform_1(%arg0: i32) -> (i32, i32) {
    %c0_i32 = arith.constant 0 : i32
    %c0_i32_0 = arith.constant 0 : i32
    %c0_i32_1 = arith.constant 0 : i32
    return %c0_i32, %c0_i32_0 : i32, i32
  }
  func.func @transform_2(%arg0: i32) -> (i32, i32) {
    %c0_i32 = arith.constant 0 : i32
    %c0_i32_0 = arith.constant 0 : i32
    %c0_i32_1 = arith.constant 0 : i32
    return %c0_i32, %c0_i32_0 : i32, i32
  }
  func.func @transform_3(%arg0: i32) -> (i32, i32) {
    %c0_i32 = arith.constant 0 : i32
    %c0_i32_0 = arith.constant 0 : i32
    %c0_i32_1 = arith.constant 0 : i32
    return %c0_i32, %c0_i32_0 : i32, i32
  }
  func.func @transform_4(%arg0: i32) -> (i32, i32) {
    %c0_i32 = arith.constant 0 : i32
    %c0_i32_0 = arith.constant 0 : i32
    %c0_i32_1 = arith.constant 0 : i32
    return %c0_i32, %c0_i32_0 : i32, i32
  }
  func.func @transform_5(%arg0: i32) -> (i32, i32) {
    %c0_i32 = arith.constant 0 : i32
    %c0_i32_0 = arith.constant 0 : i32
    %c0_i32_1 = arith.constant 0 : i32
    return %c0_i32, %c0_i32_0 : i32, i32
  }
  func.func @transform_6(%arg0: i32) -> (i32, i32) {
    %c0_i32 = arith.constant 0 : i32
    %c0_i32_0 = arith.constant 0 : i32
    %c0_i32_1 = arith.constant 0 : i32
    return %c0_i32, %c0_i32_0 : i32, i32
  }
  func.func @transform_7(%arg0: i32) -> (i32, i32) {
    %c0_i32 = arith.constant 0 : i32
    %c0_i32_0 = arith.constant 0 : i32
    %c0_i32_1 = arith.constant 0 : i32
    return %c0_i32, %c0_i32_0 : i32, i32
  }
  func.func @transform_8(%arg0: i32) -> (i32, i32) {
    %c0_i32 = arith.constant 0 : i32
    %c0_i32_0 = arith.constant 0 : i32
    %c0_i32_1 = arith.constant 0 : i32
    return %c0_i32, %c0_i32_0 : i32, i32
  }
  func.func @transform_9(%arg0: i32) -> (i32, i32) {
    %c0_i32 = arith.constant 0 : i32
    %c0_i32_0 = arith.constant 0 : i32
    %c0_i32_1 = arith.constant 0 : i32
    return %c0_i32, %c0_i32_0 : i32, i32
  }
  func.func @transform_10(%arg0: i32) -> (i32, i32) {
    %c0_i32 = arith.constant 0 : i32
    %c0_i32_0 = arith.constant 0 : i32
    %c0_i32_1 = arith.constant 0 : i32
    return %c0_i32, %c0_i32_0 : i32, i32
  }
  func.func @transform_11(%arg0: i32) -> (i32, i32) {
    %c0_i32 = arith.constant 0 : i32
    %c0_i32_0 = arith.constant 0 : i32
    %c0_i32_1 = arith.constant 0 : i32
    return %c0_i32, %c0_i32_0 : i32, i32
  }
  func.func @transform_12(%arg0: i32) -> (i32, i32) {
    %c0_i32 = arith.constant 0 : i32
    %c0_i32_0 = arith.constant 0 : i32
    %c0_i32_1 = arith.constant 0 : i32
    return %c0_i32, %c0_i32_0 : i32, i32
  }
  func.func @transform_13(%arg0: i32) -> (i32, i32) {
    %c0_i32 = arith.constant 0 : i32
    %c0_i32_0 = arith.constant 0 : i32
    %c0_i32_1 = arith.constant 0 : i32
    return %c0_i32, %c0_i32_0 : i32, i32
  }
  func.func @transform_14(%arg0: i32) -> (i32, i32) {
    %c0_i32 = arith.constant 0 : i32
    %c0_i32_0 = arith.constant 0 : i32
    %c0_i32_1 = arith.constant 0 : i32
    return %c0_i32, %c0_i32_0 : i32, i32
  }
  func.func @transform_15(%arg0: i32) -> (i32, i32) {
    %c0_i32 = arith.constant 0 : i32
    %c0_i32_0 = arith.constant 0 : i32
    %c0_i32_1 = arith.constant 0 : i32
    return %c0_i32, %c0_i32_0 : i32, i32
  }
  func.func @transform_16(%arg0: i32) -> (i32, i32) {
    %c0_i32 = arith.constant 0 : i32
    %c0_i32_0 = arith.constant 0 : i32
    %c0_i32_1 = arith.constant 0 : i32
    return %c0_i32, %c0_i32_0 : i32, i32
  }
  func.func @transform_17(%arg0: i32) -> (i32, i32) {
    %c0_i32 = arith.constant 0 : i32
    %c0_i32_0 = arith.constant 0 : i32
    %c0_i32_1 = arith.constant 0 : i32
    return %c0_i32, %c0_i32_0 : i32, i32
  }
  func.func @transform_18(%arg0: i32) -> (i32, i32) {
    %c0_i32 = arith.constant 0 : i32
    %c0_i32_0 = arith.constant 0 : i32
    %c0_i32_1 = arith.constant 0 : i32
    return %c0_i32, %c0_i32_0 : i32, i32
  }
  func.func @transform_19(%arg0: i32) -> (i32, i32) {
    %c0_i32 = arith.constant 0 : i32
    %c0_i32_0 = arith.constant 0 : i32
    %c0_i32_1 = arith.constant 0 : i32
    return %c0_i32, %c0_i32_0 : i32, i32
  }
  func.func @transform_20(%arg0: i32) -> (i32, i32) {
    %c0_i32 = arith.constant 0 : i32
    %c0_i32_0 = arith.constant 0 : i32
    %c0_i32_1 = arith.constant 0 : i32
    return %c0_i32, %c0_i32_0 : i32, i32
  }
  func.func @transform_21(%arg0: i32) -> (i32, i32) {
    %c0_i32 = arith.constant 0 : i32
    %c0_i32_0 = arith.constant 0 : i32
    %c0_i32_1 = arith.constant 0 : i32
    return %c0_i32, %c0_i32_0 : i32, i32
  }
  func.func @transform_22(%arg0: i32) -> (i32, i32) {
    %c0_i32 = arith.constant 0 : i32
    %c0_i32_0 = arith.constant 0 : i32
    %c0_i32_1 = arith.constant 0 : i32
    return %c0_i32, %c0_i32_0 : i32, i32
  }
  func.func @transform_23(%arg0: i32) -> (i32, i32, i32) {
    %c0_i32 = arith.constant 0 : i32
    %c0_i32_0 = arith.constant 0 : i32
    %c0_i32_1 = arith.constant 0 : i32
    return %arg0, %c0_i32, %c0_i32_0 : i32, i32, i32
  }
  func.func @transform_24(%arg0: i32) -> (i32, i32, i32) {
    %c0_i32 = arith.constant 0 : i32
    %c0_i32_0 = arith.constant 0 : i32
    %c0_i32_1 = arith.constant 0 : i32
    return %arg0, %c0_i32, %c0_i32_0 : i32, i32, i32
  }
}

</mosaic_0001>

<llo_original>
// kernel: ecg_network_forward.1
$region0: #{ecg_network_forward.1}
  #allocation0 [shape = 'u32[]', space=smem, size = 0x4, offset = 0x4, fixed_abs, tag = 'smem constant byte address 0x4 - core index']
  #allocation1 [shape = 'u32[144,128]{1,0:T(1,128)}', space=vmem, size = 0x12000, scoped, tag = 'internal scratch']
  %s0 = inlined_call_operand.vmem [shape: f32[2,64,1], index: 0, kind: input, shape index: {}]
  %s1 = inlined_call_operand.vmem [shape: f32[32,32], index: 1, kind: input, shape index: {}]
  %s2 = inlined_call_operand.vmem [shape: f32[1,32], index: 2, kind: input, shape index: {}]
  %s3 = inlined_call_operand.vmem [shape: f32[1024,32], index: 3, kind: input, shape index: {}]
  %s4 = inlined_call_operand.vmem [shape: f32[1,32], index: 4, kind: input, shape index: {}]
  %s5 = inlined_call_operand.vmem [shape: f32[1,32], index: 5, kind: input, shape index: {}]
  %s6 = inlined_call_operand.vmem [shape: f32[1,32], index: 6, kind: input, shape index: {}]
  %s7 = inlined_call_operand.vmem [shape: f32[512,64], index: 7, kind: input, shape index: {}]
  %s8 = inlined_call_operand.vmem [shape: f32[1,64], index: 8, kind: input, shape index: {}]
  %s9 = inlined_call_operand.hbm [shape: f32[1024,64], index: 9, kind: input, shape index: {}]
  %s10 = inlined_call_operand.vmem [shape: f32[1,64], index: 10, kind: input, shape index: {}]
  %s11 = inlined_call_operand.vmem [shape: f32[32,64], index: 11, kind: input, shape index: {}]
  %s12 = inlined_call_operand.vmem [shape: f32[1,64], index: 12, kind: input, shape index: {}]
  %s13 = inlined_call_operand.hbm [shape: f32[512,128], index: 13, kind: input, shape index: {}]
  %s14 = inlined_call_operand.vmem [shape: f32[1,128], index: 14, kind: input, shape index: {}]
  %s15 = inlined_call_operand.hbm [shape: f32[1024,128], index: 15, kind: input, shape index: {}]
  %s16 = inlined_call_operand.vmem [shape: f32[1,128], index: 16, kind: input, shape index: {}]
  %s17 = inlined_call_operand.vmem [shape: f32[64,128], index: 17, kind: input, shape index: {}]
  %s18 = inlined_call_operand.vmem [shape: f32[1,128], index: 18, kind: input, shape index: {}]
  %s19 = inlined_call_operand.vmem [shape: f32[128,384], index: 19, kind: input, shape index: {}]
  %s20 = inlined_call_operand.vmem [shape: f32[1,384], index: 20, kind: input, shape index: {}]
  %s21 = inlined_call_operand.vmem [shape: f32[1,384], index: 21, kind: input, shape index: {}]
  %s22 = inlined_call_operand.vmem [shape: f32[1,3], index: 22, kind: input, shape index: {}]
  %s23 = inlined_call_operand.hbm [shape: f32[2,1,3], index: 23, kind: output, shape index: {0}]
  %s24 = inlined_call_operand.hbm [shape: f32[2,1,128], index: 24, kind: output, shape index: {1}]
  %25 = xla_tuple %s23, %s24
  %s26 = sld [smem:[#allocation0]]
  $region145: #{ecg_network_forward.1} parent=0
    _
  %s28 = ssub.s32 1, %s26
  %s29 = scalar_select 0, %s28, %s26
  $region1: #{ecg_network_forward.1} parent=0
    #allocation2 [shape = 'u8[524288]{0}', space=vmem, size = 0x80000, scoped, tag = 'input window, operand 9, single buffered']
    #allocation3 [shape = 's32[2]{0}', space=sflag, size = 0x8, scoped, tag = 'scoped memory for ecg_network_forward.1']
    #allocation4 [shape = 's32[2]{0}', space=sflag, size = 0x8, scoped, tag = 'scoped memory for ecg_network_forward.1']
    #allocation5 [shape = 'u8[262144]{0}', space=vmem, size = 0x40000, scoped, tag = 'input window, operand 13, single buffered']
    #allocation6 [shape = 's32[1]{0}', space=sflag, size = 0x4, scoped, tag = 'scoped memory for ecg_network_forward.1']
    #allocation7 [shape = 'u8[524288]{0}', space=vmem, size = 0x80000, scoped, tag = 'input window, operand 15, single buffered']
    #allocation8 [shape = 'u8[1024]{0}', space=vmem, size = 0x400, scoped, tag = 'output window, operand 0']
    #allocation9 [shape = 'u8[1024]{0}', space=vmem, size = 0x400, scoped, tag = 'output window, operand 1']
    #allocation10 [shape = 's32[2]{0}', space=sflag, size = 0x8, scoped, tag = 'scoped memory for ecg_network_forward.1']
    %30 = vsyncpa [#allocation3], 0
    %31 = vsyncpa [#allocation6], 0
    %32 = vsyncpa [#allocation4], 0
    %s33 = scalar_lea.sflag [#allocation4], 1
    %34 = vsyncpa %s33, 0
    %35 = vsyncpa [#allocation10], 0
    %s36 = scalar_lea.sflag [#allocation10], 1
    %37 = vsyncpa %s36, 0
    loop: start=0, step=1, limit=4
    $region2: #{ecg_network_forward.1} parent=1 // loop_pre_header
      _
    $region3: #{ecg_network_forward.1} parent=1 // loop_header
      %s39 = sphi 0, %s43
      %p40 = scmp.ge.s32.totalorder %s39, 4
      %s49 = sphi 0, %s51
      %s52 = sphi 0, %s49
      %s53 = sphi 0, %s52
      %s69 = sphi 0, %s53
      %s73 = sphi 0, %s73
      %s75 = sphi 0, %s73
      %s76 = sphi 0, %s75
      %s90 = sphi 0, %s76
      %s94 = sphi 0, %s94
      %s96 = sphi 0, %s94
      %s97 = sphi 0, %s96
      %s111 = sphi 0, %s97
      %s115 = sphi 0, %s115
      %s117 = sphi 0, %s115
      %s118 = sphi 0, %s117
      %s132 = sphi 0, %s118
      %s136 = sphi 0, %s136
      %s138 = sphi 0, %s136
      %s139 = sphi 0, %s138
      %s153 = sphi 0, %s139
      %s157 = sphi 0, %s157
      %s159 = sphi 0, %s157
      %s160 = sphi 0, %s159
      %s174 = sphi 0, %s160
      %s178 = sphi 0, %s178
      %s180 = sphi 0, %s178
      %s181 = sphi 0, %s180
      %s195 = sphi 0, %s181
      %s199 = sphi 0, %s199
      %s201 = sphi 0, %s199
      %s202 = sphi 0, %s201
      %s216 = sphi 0, %s202
      %s220 = sphi 0, %s220
      %s222 = sphi 0, %s220
      %s223 = sphi 0, %s222
      %s237 = sphi 0, %s223
      %s241 = sphi 0, %s241
      %s243 = sphi 0, %s241
      %s244 = sphi 0, %s243
      %s258 = sphi 0, %s244
      %s262 = sphi 0, %s262
      %s264 = sphi 0, %s262
      %s265 = sphi 0, %s264
      %s279 = sphi 0, %s265
      %s283 = sphi 0, %s283
      %s285 = sphi 0, %s283
      %s286 = sphi 0, %s285
      %s300 = sphi 0, %s286
      %s304 = sphi 0, %s304
      %s306 = sphi 0, %s304
      %s307 = sphi 0, %s306
      %s321 = sphi 0, %s307
      %s325 = sphi 0, %s325
      %s327 = sphi 0, %s325
      %s328 = sphi 0, %s327
      %s342 = sphi 0, %s328
      %s346 = sphi 0, %s346
      %s348 = sphi 0, %s346
      %s349 = sphi 0, %s348
      %s363 = sphi 0, %s349
      %s367 = sphi 0, %s367
      %s369 = sphi 0, %s367
      %s370 = sphi 0, %s369
      %s384 = sphi 0, %s370
      %s388 = sphi 0, %s388
      %s390 = sphi 0, %s388
      %s391 = sphi 0, %s390
      %s405 = sphi 0, %s391
      %s409 = sphi 0, %s409
      %s411 = sphi 0, %s409
      %s412 = sphi 0, %s411
      %s426 = sphi 0, %s412
      %s430 = sphi 0, %s430
      %s432 = sphi 0, %s430
      %s433 = sphi 0, %s432
      %s447 = sphi 0, %s433
      %s451 = sphi 0, %s451
      %s453 = sphi 0, %s451
      %s454 = sphi 0, %s453
      %s468 = sphi 0, %s454
      %s472 = sphi 0, %s472
      %s474 = sphi 0, %s472
      %s475 = sphi 0, %s474
      %s489 = sphi 0, %s475
      %s493 = sphi 0, %s493
      %s495 = sphi 0, %s493
      %s496 = sphi 0, %s495
      %s510 = sphi 0, %s496
      %s514 = sphi 0, %s514
      %s516 = sphi 0, %s514
      %s517 = sphi 0, %s516
      %s531 = sphi 0, %s517
      %s537 = sphi 0, %s539
      %s540 = sphi 0, %s537
      %s541 = sphi 0, %s540
      %s557 = sphi 0, %s541
      %s563 = sphi 0, %s565
      %s566 = sphi 0, %s563
      %s567 = sphi 0, %s566
      %s583 = sphi 0, %s567
    $region4: #{ecg_network_forward.1} parent=1 // loop_header_branch
      %42 = sbr.rel (%p40) target = $region8
    $region5: #{ecg_network_forward.1} parent=1 // loop_body
      %s44 = ssub.s32 %s39, 1
      %s45 = ssub.s32 %s39, 2
      %s46 = sadd.s32 %s39, 1
      %s47 = ssub.s32 %s39, %s46
      %p48 = scmp.eq.s32.totalorder %s47, 0
      %s50 = sadd.s32 %s49, 1
      %s51 = scalar_select %p48, %s49, %s50
      %p54 = pneg %p48
      %p55 = scmp.eq.s32.totalorder %s39, 1
      %p56 = por %p54, %p55
      %p57 = scmp.ne.s32.totalorder %s49, %s52
      %p58 = scmp.eq.s32.totalorder %s39, 0
      %p59 = por %p57, %p58
      %p60 = scmp.ne.s32.totalorder %s49, %s52
      %p61 = scmp.eq.s32.totalorder %s44, 1
      %p62 = por %p60, %p61
      %p63 = scmp.ne.s32.totalorder %s52, %s53
      %p64 = scmp.eq.s32.totalorder %s44, 0
      %p65 = por %p63, %p64
      %p66 = scmp.ne.s32.totalorder %s52, %s53
      %p67 = scmp.eq.s32.totalorder %s45, 1
      %p68 = por %p66, %p67
      %p70 = scmp.ne.s32.totalorder %s53, %s69
      %p71 = scmp.eq.s32.totalorder %s45, 0
      %p72 = por %p70, %p71
      %s74 = sadd.s32 %s73, 1
      %p77 = scmp.eq.s32.totalorder %s39, 1
      %p78 = scmp.ne.s32.totalorder %s73, %s75
      %p79 = scmp.eq.s32.totalorder %s39, 0
      %p80 = por %p78, %p79
      %p81 = scmp.ne.s32.totalorder %s73, %s75
      %p82 = scmp.eq.s32.totalorder %s44, 1
      %p83 = por %p81, %p82
      %p84 = scmp.ne.s32.totalorder %s75, %s76
      %p85 = scmp.eq.s32.totalorder %s44, 0
      %p86 = por %p84, %p85
      %p87 = scmp.ne.s32.totalorder %s75, %s76
      %p88 = scmp.eq.s32.totalorder %s45, 1
      %p89 = por %p87, %p88
      %p91 = scmp.ne.s32.totalorder %s76, %s90
      %p92 = scmp.eq.s32.totalorder %s45, 0
      %p93 = por %p91, %p92
      %s95 = sadd.s32 %s94, 1
      %p98 = scmp.eq.s32.totalorder %s39, 1
      %p99 = scmp.ne.s32.totalorder %s94, %s96
      %p100 = scmp.eq.s32.totalorder %s39, 0
      %p101 = por %p99, %p100
      %p102 = scmp.ne.s32.totalorder %s94, %s96
      %p103 = scmp.eq.s32.totalorder %s44, 1
      %p104 = por %p102, %p103
      %p105 = scmp.ne.s32.totalorder %s96, %s97
      %p106 = scmp.eq.s32.totalorder %s44, 0
      %p107 = por %p105, %p106
      %p108 = scmp.ne.s32.totalorder %s96, %s97
      %p109 = scmp.eq.s32.totalorder %s45, 1
      %p110 = por %p108, %p109
      %p112 = scmp.ne.s32.totalorder %s97, %s111
      %p113 = scmp.eq.s32.totalorder %s45, 0
      %p114 = por %p112, %p113
      %s116 = sadd.s32 %s115, 1
      %p119 = scmp.eq.s32.totalorder %s39, 1
      %p120 = scmp.ne.s32.totalorder %s115, %s117
      %p121 = scmp.eq.s32.totalorder %s39, 0
      %p122 = por %p120, %p121
      %p123 = scmp.ne.s32.totalorder %s115, %s117
      %p124 = scmp.eq.s32.totalorder %s44, 1
      %p125 = por %p123, %p124
      %p126 = scmp.ne.s32.totalorder %s117, %s118
      %p127 = scmp.eq.s32.totalorder %s44, 0
      %p128 = por %p126, %p127
      %p129 = scmp.ne.s32.totalorder %s117, %s118
      %p130 = scmp.eq.s32.totalorder %s45, 1
      %p131 = por %p129, %p130
      %p133 = scmp.ne.s32.totalorder %s118, %s132
      %p134 = scmp.eq.s32.totalorder %s45, 0
      %p135 = por %p133, %p134
      %s137 = sadd.s32 %s136, 1
      %p140 = scmp.eq.s32.totalorder %s39, 1
      %p141 = scmp.ne.s32.totalorder %s136, %s138
      %p142 = scmp.eq.s32.totalorder %s39, 0
      %p143 = por %p141, %p142
      %p144 = scmp.ne.s32.totalorder %s136, %s138
      %p145 = scmp.eq.s32.totalorder %s44, 1
      %p146 = por %p144, %p145
      %p147 = scmp.ne.s32.totalorder %s138, %s139
      %p148 = scmp.eq.s32.totalorder %s44, 0
      %p149 = por %p147, %p148
      %p150 = scmp.ne.s32.totalorder %s138, %s139
      %p151 = scmp.eq.s32.totalorder %s45, 1
      %p152 = por %p150, %p151
      %p154 = scmp.ne.s32.totalorder %s139, %s153
      %p155 = scmp.eq.s32.totalorder %s45, 0
      %p156 = por %p154, %p155
      %s158 = sadd.s32 %s157, 1
      %p161 = scmp.eq.s32.totalorder %s39, 1
      %p162 = scmp.ne.s32.totalorder %s157, %s159
      %p163 = scmp.eq.s32.totalorder %s39, 0
      %p164 = por %p162, %p163
      %p165 = scmp.ne.s32.totalorder %s157, %s159
      %p166 = scmp.eq.s32.totalorder %s44, 1
      %p167 = por %p165, %p166
      %p168 = scmp.ne.s32.totalorder %s159, %s160
      %p169 = scmp.eq.s32.totalorder %s44, 0
      %p170 = por %p168, %p169
      %p171 = scmp.ne.s32.totalorder %s159, %s160
      %p172 = scmp.eq.s32.totalorder %s45, 1
      %p173 = por %p171, %p172
      %p175 = scmp.ne.s32.totalorder %s160, %s174
      %p176 = scmp.eq.s32.totalorder %s45, 0
      %p177 = por %p175, %p176
      %s179 = sadd.s32 %s178, 1
      %p182 = scmp.eq.s32.totalorder %s39, 1
      %p183 = scmp.ne.s32.totalorder %s178, %s180
      %p184 = scmp.eq.s32.totalorder %s39, 0
      %p185 = por %p183, %p184
      %p186 = scmp.ne.s32.totalorder %s178, %s180
      %p187 = scmp.eq.s32.totalorder %s44, 1
      %p188 = por %p186, %p187
      %p189 = scmp.ne.s32.totalorder %s180, %s181
      %p190 = scmp.eq.s32.totalorder %s44, 0
      %p191 = por %p189, %p190
      %p192 = scmp.ne.s32.totalorder %s180, %s181
      %p193 = scmp.eq.s32.totalorder %s45, 1
      %p194 = por %p192, %p193
      %p196 = scmp.ne.s32.totalorder %s181, %s195
      %p197 = scmp.eq.s32.totalorder %s45, 0
      %p198 = por %p196, %p197
      %s200 = sadd.s32 %s199, 1
      %p203 = scmp.eq.s32.totalorder %s39, 1
      %p204 = scmp.ne.s32.totalorder %s199, %s201
      %p205 = scmp.eq.s32.totalorder %s39, 0
      %p206 = por %p204, %p205
      %p207 = scmp.ne.s32.totalorder %s199, %s201
      %p208 = scmp.eq.s32.totalorder %s44, 1
      %p209 = por %p207, %p208
      %p210 = scmp.ne.s32.totalorder %s201, %s202
      %p211 = scmp.eq.s32.totalorder %s44, 0
      %p212 = por %p210, %p211
      %p213 = scmp.ne.s32.totalorder %s201, %s202
      %p214 = scmp.eq.s32.totalorder %s45, 1
      %p215 = por %p213, %p214
      %p217 = scmp.ne.s32.totalorder %s202, %s216
      %p218 = scmp.eq.s32.totalorder %s45, 0
      %p219 = por %p217, %p218
      %s221 = sadd.s32 %s220, 1
      %p224 = scmp.eq.s32.totalorder %s39, 1
      %p225 = scmp.ne.s32.totalorder %s220, %s222
      %p226 = scmp.eq.s32.totalorder %s39, 0
      %p227 = por %p225, %p226
      %p228 = scmp.ne.s32.totalorder %s220, %s222
      %p229 = scmp.eq.s32.totalorder %s44, 1
      %p230 = por %p228, %p229
      %p231 = scmp.ne.s32.totalorder %s222, %s223
      %p232 = scmp.eq.s32.totalorder %s44, 0
      %p233 = por %p231, %p232
      %p234 = scmp.ne.s32.totalorder %s222, %s223
      %p235 = scmp.eq.s32.totalorder %s45, 1
      %p236 = por %p234, %p235
      %p238 = scmp.ne.s32.totalorder %s223, %s237
      %p239 = scmp.eq.s32.totalorder %s45, 0
      %p240 = por %p238, %p239
      %s242 = sadd.s32 %s241, 1
      %p245 = scmp.eq.s32.totalorder %s39, 1
      %p246 = scmp.ne.s32.totalorder %s241, %s243
      %p247 = scmp.eq.s32.totalorder %s39, 0
      %p248 = por %p246, %p247
      %p249 = scmp.ne.s32.totalorder %s241, %s243
      %p250 = scmp.eq.s32.totalorder %s44, 1
      %p251 = por %p249, %p250
      %p252 = scmp.ne.s32.totalorder %s243, %s244
      %p253 = scmp.eq.s32.totalorder %s44, 0
      %p254 = por %p252, %p253
      %p255 = scmp.ne.s32.totalorder %s243, %s244
      %p256 = scmp.eq.s32.totalorder %s45, 1
      %p257 = por %p255, %p256
      %p259 = scmp.ne.s32.totalorder %s244, %s258
      %p260 = scmp.eq.s32.totalorder %s45, 0
      %p261 = por %p259, %p260
      %s263 = sadd.s32 %s262, 1
      %p266 = scmp.eq.s32.totalorder %s39, 1
      %p267 = scmp.ne.s32.totalorder %s262, %s264
      %p268 = scmp.eq.s32.totalorder %s39, 0
      %p269 = por %p267, %p268
      %p270 = scmp.ne.s32.totalorder %s262, %s264
      %p271 = scmp.eq.s32.totalorder %s44, 1
      %p272 = por %p270, %p271
      %p273 = scmp.ne.s32.totalorder %s264, %s265
      %p274 = scmp.eq.s32.totalorder %s44, 0
      %p275 = por %p273, %p274
      %p276 = scmp.ne.s32.totalorder %s264, %s265
      %p277 = scmp.eq.s32.totalorder %s45, 1
      %p278 = por %p276, %p277
      %p280 = scmp.ne.s32.totalorder %s265, %s279
      %p281 = scmp.eq.s32.totalorder %s45, 0
      %p282 = por %p280, %p281
      %s284 = sadd.s32 %s283, 1
      %p287 = scmp.eq.s32.totalorder %s39, 1
      %p288 = scmp.ne.s32.totalorder %s283, %s285
      %p289 = scmp.eq.s32.totalorder %s39, 0
      %p290 = por %p288, %p289
      %p291 = scmp.ne.s32.totalorder %s283, %s285
      %p292 = scmp.eq.s32.totalorder %s44, 1
      %p293 = por %p291, %p292
      %p294 = scmp.ne.s32.totalorder %s285, %s286
      %p295 = scmp.eq.s32.totalorder %s44, 0
      %p296 = por %p294, %p295
      %p297 = scmp.ne.s32.totalorder %s285, %s286
      %p298 = scmp.eq.s32.totalorder %s45, 1
      %p299 = por %p297, %p298
      %p301 = scmp.ne.s32.totalorder %s286, %s300
      %p302 = scmp.eq.s32.totalorder %s45, 0
      %p303 = por %p301, %p302
      %s305 = sadd.s32 %s304, 1
      %p308 = scmp.eq.s32.totalorder %s39, 1
      %p309 = scmp.ne.s32.totalorder %s304, %s306
      %p310 = scmp.eq.s32.totalorder %s39, 0
      %p311 = por %p309, %p310
      %p312 = scmp.ne.s32.totalorder %s304, %s306
      %p313 = scmp.eq.s32.totalorder %s44, 1
      %p314 = por %p312, %p313
      %p315 = scmp.ne.s32.totalorder %s306, %s307
      %p316 = scmp.eq.s32.totalorder %s44, 0
      %p317 = por %p315, %p316
      %p318 = scmp.ne.s32.totalorder %s306, %s307
      %p319 = scmp.eq.s32.totalorder %s45, 1
      %p320 = por %p318, %p319
      %p322 = scmp.ne.s32.totalorder %s307, %s321
      %p323 = scmp.eq.s32.totalorder %s45, 0
      %p324 = por %p322, %p323
      %s326 = sadd.s32 %s325, 1
      %p329 = scmp.eq.s32.totalorder %s39, 1
      %p330 = scmp.ne.s32.totalorder %s325, %s327
      %p331 = scmp.eq.s32.totalorder %s39, 0
      %p332 = por %p330, %p331
      %p333 = scmp.ne.s32.totalorder %s325, %s327
      %p334 = scmp.eq.s32.totalorder %s44, 1
      %p335 = por %p333, %p334
      %p336 = scmp.ne.s32.totalorder %s327, %s328
      %p337 = scmp.eq.s32.totalorder %s44, 0
      %p338 = por %p336, %p337
      %p339 = scmp.ne.s32.totalorder %s327, %s328
      %p340 = scmp.eq.s32.totalorder %s45, 1
      %p341 = por %p339, %p340
      %p343 = scmp.ne.s32.totalorder %s328, %s342
      %p344 = scmp.eq.s32.totalorder %s45, 0
      %p345 = por %p343, %p344
      %s347 = sadd.s32 %s346, 1
      %p350 = scmp.eq.s32.totalorder %s39, 1
      %p351 = scmp.ne.s32.totalorder %s346, %s348
      %p352 = scmp.eq.s32.totalorder %s39, 0
      %p353 = por %p351, %p352
      %p354 = scmp.ne.s32.totalorder %s346, %s348
      %p355 = scmp.eq.s32.totalorder %s44, 1
      %p356 = por %p354, %p355
      %p357 = scmp.ne.s32.totalorder %s348, %s349
      %p358 = scmp.eq.s32.totalorder %s44, 0
      %p359 = por %p357, %p358
      %p360 = scmp.ne.s32.totalorder %s348, %s349
      %p361 = scmp.eq.s32.totalorder %s45, 1
      %p362 = por %p360, %p361
      %p364 = scmp.ne.s32.totalorder %s349, %s363
      %p365 = scmp.eq.s32.totalorder %s45, 0
      %p366 = por %p364, %p365
      %s368 = sadd.s32 %s367, 1
      %p371 = scmp.eq.s32.totalorder %s39, 1
      %p372 = scmp.ne.s32.totalorder %s367, %s369
      %p373 = scmp.eq.s32.totalorder %s39, 0
      %p374 = por %p372, %p373
      %p375 = scmp.ne.s32.totalorder %s367, %s369
      %p376 = scmp.eq.s32.totalorder %s44, 1
      %p377 = por %p375, %p376
      %p378 = scmp.ne.s32.totalorder %s369, %s370
      %p379 = scmp.eq.s32.totalorder %s44, 0
      %p380 = por %p378, %p379
      %p381 = scmp.ne.s32.totalorder %s369, %s370
      %p382 = scmp.eq.s32.totalorder %s45, 1
      %p383 = por %p381, %p382
      %p385 = scmp.ne.s32.totalorder %s370, %s384
      %p386 = scmp.eq.s32.totalorder %s45, 0
      %p387 = por %p385, %p386
      %s389 = sadd.s32 %s388, 1
      %p392 = scmp.eq.s32.totalorder %s39, 1
      %p393 = scmp.ne.s32.totalorder %s388, %s390
      %p394 = scmp.eq.s32.totalorder %s39, 0
      %p395 = por %p393, %p394
      %p396 = scmp.ne.s32.totalorder %s388, %s390
      %p397 = scmp.eq.s32.totalorder %s44, 1
      %p398 = por %p396, %p397
      %p399 = scmp.ne.s32.totalorder %s390, %s391
      %p400 = scmp.eq.s32.totalorder %s44, 0
      %p401 = por %p399, %p400
      %p402 = scmp.ne.s32.totalorder %s390, %s391
      %p403 = scmp.eq.s32.totalorder %s45, 1
      %p404 = por %p402, %p403
      %p406 = scmp.ne.s32.totalorder %s391, %s405
      %p407 = scmp.eq.s32.totalorder %s45, 0
      %p408 = por %p406, %p407
      %s410 = sadd.s32 %s409, 1
      %p413 = scmp.eq.s32.totalorder %s39, 1
      %p414 = scmp.ne.s32.totalorder %s409, %s411
      %p415 = scmp.eq.s32.totalorder %s39, 0
      %p416 = por %p414, %p415
      %p417 = scmp.ne.s32.totalorder %s409, %s411
      %p418 = scmp.eq.s32.totalorder %s44, 1
      %p419 = por %p417, %p418
      %p420 = scmp.ne.s32.totalorder %s411, %s412
      %p421 = scmp.eq.s32.totalorder %s44, 0
      %p422 = por %p420, %p421
      %p423 = scmp.ne.s32.totalorder %s411, %s412
      %p424 = scmp.eq.s32.totalorder %s45, 1
      %p425 = por %p423, %p424
      %p427 = scmp.ne.s32.totalorder %s412, %s426
      %p428 = scmp.eq.s32.totalorder %s45, 0
      %p429 = por %p427, %p428
      %s431 = sadd.s32 %s430, 1
      %p434 = scmp.eq.s32.totalorder %s39, 1
      %p435 = scmp.ne.s32.totalorder %s430, %s432
      %p436 = scmp.eq.s32.totalorder %s39, 0
      %p437 = por %p435, %p436
      %p438 = scmp.ne.s32.totalorder %s430, %s432
      %p439 = scmp.eq.s32.totalorder %s44, 1
      %p440 = por %p438, %p439
      %p441 = scmp.ne.s32.totalorder %s432, %s433
      %p442 = scmp.eq.s32.totalorder %s44, 0
      %p443 = por %p441, %p442
      %p444 = scmp.ne.s32.totalorder %s432, %s433
      %p445 = scmp.eq.s32.totalorder %s45, 1
      %p446 = por %p444, %p445
      %p448 = scmp.ne.s32.totalorder %s433, %s447
      %p449 = scmp.eq.s32.totalorder %s45, 0
      %p450 = por %p448, %p449
      %s452 = sadd.s32 %s451, 1
      %p455 = scmp.eq.s32.totalorder %s39, 1
      %p456 = scmp.ne.s32.totalorder %s451, %s453
      %p457 = scmp.eq.s32.totalorder %s39, 0
      %p458 = por %p456, %p457
      %p459 = scmp.ne.s32.totalorder %s451, %s453
      %p460 = scmp.eq.s32.totalorder %s44, 1
      %p461 = por %p459, %p460
      %p462 = scmp.ne.s32.totalorder %s453, %s454
      %p463 = scmp.eq.s32.totalorder %s44, 0
      %p464 = por %p462, %p463
      %p465 = scmp.ne.s32.totalorder %s453, %s454
      %p466 = scmp.eq.s32.totalorder %s45, 1
      %p467 = por %p465, %p466
      %p469 = scmp.ne.s32.totalorder %s454, %s468
      %p470 = scmp.eq.s32.totalorder %s45, 0
      %p471 = por %p469, %p470
      %s473 = sadd.s32 %s472, 1
      %p476 = scmp.eq.s32.totalorder %s39, 1
      %p477 = scmp.ne.s32.totalorder %s472, %s474
      %p478 = scmp.eq.s32.totalorder %s39, 0
      %p479 = por %p477, %p478
      %p480 = scmp.ne.s32.totalorder %s472, %s474
      %p481 = scmp.eq.s32.totalorder %s44, 1
      %p482 = por %p480, %p481
      %p483 = scmp.ne.s32.totalorder %s474, %s475
      %p484 = scmp.eq.s32.totalorder %s44, 0
      %p485 = por %p483, %p484
      %p486 = scmp.ne.s32.totalorder %s474, %s475
      %p487 = scmp.eq.s32.totalorder %s45, 1
      %p488 = por %p486, %p487
      %p490 = scmp.ne.s32.totalorder %s475, %s489
      %p491 = scmp.eq.s32.totalorder %s45, 0
      %p492 = por %p490, %p491
      %s494 = sadd.s32 %s493, 1
      %p497 = scmp.eq.s32.totalorder %s39, 1
      %p498 = scmp.ne.s32.totalorder %s493, %s495
      %p499 = scmp.eq.s32.totalorder %s39, 0
      %p500 = por %p498, %p499
      %p501 = scmp.ne.s32.totalorder %s493, %s495
      %p502 = scmp.eq.s32.totalorder %s44, 1
      %p503 = por %p501, %p502
      %p504 = scmp.ne.s32.totalorder %s495, %s496
      %p505 = scmp.eq.s32.totalorder %s44, 0
      %p506 = por %p504, %p505
      %p507 = scmp.ne.s32.totalorder %s495, %s496
      %p508 = scmp.eq.s32.totalorder %s45, 1
      %p509 = por %p507, %p508
      %p511 = scmp.ne.s32.totalorder %s496, %s510
      %p512 = scmp.eq.s32.totalorder %s45, 0
      %p513 = por %p511, %p512
      %s515 = sadd.s32 %s514, 1
      %p518 = scmp.eq.s32.totalorder %s39, 1
      %p519 = scmp.ne.s32.totalorder %s514, %s516
      %p520 = scmp.eq.s32.totalorder %s39, 0
      %p521 = por %p519, %p520
      %p522 = scmp.ne.s32.totalorder %s514, %s516
      %p523 = scmp.eq.s32.totalorder %s44, 1
      %p524 = por %p522, %p523
      %p525 = scmp.ne.s32.totalorder %s516, %s517
      %p526 = scmp.eq.s32.totalorder %s44, 0
      %p527 = por %p525, %p526
      %p528 = scmp.ne.s32.totalorder %s516, %s517
      %p529 = scmp.eq.s32.totalorder %s45, 1
      %p530 = por %p528, %p529
      %p532 = scmp.ne.s32.totalorder %s517, %s531
      %p533 = scmp.eq.s32.totalorder %s45, 0
      %p534 = por %p532, %p533
      %s535 = ssub.s32 %s39, %s46
      %p536 = scmp.eq.s32.totalorder %s535, 0
      %s538 = sadd.s32 %s537, 1
      %s539 = scalar_select %p536, %s537, %s538
      %p542 = pneg %p536
      %p543 = scmp.eq.s32.totalorder %s39, 1
      %p544 = por %p542, %p543
      %p545 = scmp.ne.s32.totalorder %s537, %s540
      %p546 = scmp.eq.s32.totalorder %s39, 0
      %p547 = por %p545, %p546
      %p548 = scmp.ne.s32.totalorder %s537, %s540
      %p549 = scmp.eq.s32.totalorder %s44, 1
      %p550 = por %p548, %p549
      %p551 = scmp.ne.s32.totalorder %s540, %s541
      %p552 = scmp.eq.s32.totalorder %s44, 0
      %p553 = por %p551, %p552
      %p554 = scmp.ne.s32.totalorder %s540, %s541
      %p555 = scmp.eq.s32.totalorder %s45, 1
      %p556 = por %p554, %p555
      %p558 = scmp.ne.s32.totalorder %s541, %s557
      %p559 = scmp.eq.s32.totalorder %s45, 0
      %p560 = por %p558, %p559
      %s561 = ssub.s32 %s39, %s46
      %p562 = scmp.eq.s32.totalorder %s561, 0
      %s564 = sadd.s32 %s563, 1
      %s565 = scalar_select %p562, %s563, %s564
      %p568 = pneg %p562
      %p569 = scmp.eq.s32.totalorder %s39, 1
      %p570 = por %p568, %p569
      %p571 = scmp.ne.s32.totalorder %s563, %s566
      %p572 = scmp.eq.s32.totalorder %s39, 0
      %p573 = por %p571, %p572
      %p574 = scmp.ne.s32.totalorder %s563, %s566
      %p575 = scmp.eq.s32.totalorder %s44, 1
      %p576 = por %p574, %p575
      %p577 = scmp.ne.s32.totalorder %s566, %s567
      %p578 = scmp.eq.s32.totalorder %s44, 0
      %p579 = por %p577, %p578
      %p580 = scmp.ne.s32.totalorder %s566, %s567
      %p581 = scmp.eq.s32.totalorder %s45, 1
      %p582 = por %p580, %p581
      %p584 = scmp.ne.s32.totalorder %s567, %s583
      %p585 = scmp.eq.s32.totalorder %s45, 0
      %p586 = por %p584, %p585
      %p587 = scmp.le.s32.totalorder 1, %s39
      %p588 = scmp.lt.s32.totalorder %s39, 3
      %p589 = pnand %p587, %p588
      %p590 = pneg %p589
      // Predicated region
      $region9: #{ecg_network_forward.1} parent=5 // pred_check
        _
      $region10: #{ecg_network_forward.1} parent=5 // pred_check_branch
        %592 = sbr.rel (%p589) target = $region12
      $region11: #{ecg_network_forward.1} parent=5 // pred_region
        %s593 = ssub.s32 %s39, 1
        // Predicated region
        $region13: #{ecg_network_forward.1} parent=11 // pred_check
          %p594 = pneg %p86
        $region14: #{ecg_network_forward.1} parent=11 // pred_check_branch
          %596 = sbr.rel (%p594) target = $region16
        $region15: #{ecg_network_forward.1} parent=11 // pred_region
          _
        $region16: #{ecg_network_forward.1} parent=11 // pred_fallthru
          _
        // Predicated region
        $region17: #{ecg_network_forward.1} parent=11 // pred_check
          %p597 = pneg %p107
        $region18: #{ecg_network_forward.1} parent=11 // pred_check_branch
          %599 = sbr.rel (%p597) target = $region20
        $region19: #{ecg_network_forward.1} parent=11 // pred_region
          _
        $region20: #{ecg_network_forward.1} parent=11 // pred_fallthru
          _
        // Predicated region
        $region21: #{ecg_network_forward.1} parent=11 // pred_check
          %p600 = pneg %p128
        $region22: #{ecg_network_forward.1} parent=11 // pred_check_branch
          %602 = sbr.rel (%p600) target = $region24
        $region23: #{ecg_network_forward.1} parent=11 // pred_region
          _
        $region24: #{ecg_network_forward.1} parent=11 // pred_fallthru
          _
        // Predicated region
        $region25: #{ecg_network_forward.1} parent=11 // pred_check
          %p603 = pneg %p149
        $region26: #{ecg_network_forward.1} parent=11 // pred_check_branch
          %605 = sbr.rel (%p603) target = $region28
        $region27: #{ecg_network_forward.1} parent=11 // pred_region
          _
        $region28: #{ecg_network_forward.1} parent=11 // pred_fallthru
          _
        // Predicated region
        $region29: #{ecg_network_forward.1} parent=11 // pred_check
          %p606 = pneg %p170
        $region30: #{ecg_network_forward.1} parent=11 // pred_check_branch
          %608 = sbr.rel (%p606) target = $region32
        $region31: #{ecg_network_forward.1} parent=11 // pred_region
          _
        $region32: #{ecg_network_forward.1} parent=11 // pred_fallthru
          _
        // Predicated region
        $region33: #{ecg_network_forward.1} parent=11 // pred_check
          %p609 = pneg %p191
        $region34: #{ecg_network_forward.1} parent=11 // pred_check_branch
          %611 = sbr.rel (%p609) target = $region36
        $region35: #{ecg_network_forward.1} parent=11 // pred_region
          _
        $region36: #{ecg_network_forward.1} parent=11 // pred_fallthru
          _
        // Predicated region
        $region37: #{ecg_network_forward.1} parent=11 // pred_check
          %p612 = pneg %p212
        $region38: #{ecg_network_forward.1} parent=11 // pred_check_branch
          %614 = sbr.rel (%p612) target = $region40
        $region39: #{ecg_network_forward.1} parent=11 // pred_region
          _
        $region40: #{ecg_network_forward.1} parent=11 // pred_fallthru
          _
        // Predicated region
        $region41: #{ecg_network_forward.1} parent=11 // pred_check
          %p615 = pneg %p233
        $region42: #{ecg_network_forward.1} parent=11 // pred_check_branch
          %617 = sbr.rel (%p615) target = $region44
        $region43: #{ecg_network_forward.1} parent=11 // pred_region
          _
        $region44: #{ecg_network_forward.1} parent=11 // pred_fallthru
          _
        // Predicated region
        $region45: #{ecg_network_forward.1} parent=11 // pred_check
          %p618 = pneg %p254
        $region46: #{ecg_network_forward.1} parent=11 // pred_check_branch
          %620 = sbr.rel (%p618) target = $region48
        $region47: #{ecg_network_forward.1} parent=11 // pred_region
          %s622 = ssub.s32 16384, 16384
          %623 = vsyncadd [#allocation3], %s622
          %s624 = sshll.u32 [#allocation2], 4
          %s625 = int_to_ptr.vmem [resolvable:$true] %s624
          %630 = dma.hbm_to_vmem [thread:$0]  %s9, 16384, %s625, [#allocation3], 128, 128, 8
        $region48: #{ecg_network_forward.1} parent=11 // pred_fallthru
          _
        // Predicated region
        $region49: #{ecg_network_forward.1} parent=11 // pred_check
          %p631 = pneg %p275
        $region50: #{ecg_network_forward.1} parent=11 // pred_check_branch
          %633 = sbr.rel (%p631) target = $region52
        $region51: #{ecg_network_forward.1} parent=11 // pred_region
          _
        $region52: #{ecg_network_forward.1} parent=11 // pred_fallthru
          _
        // Predicated region
        $region53: #{ecg_network_forward.1} parent=11 // pred_check
          %p634 = pneg %p296
        $region54: #{ecg_network_forward.1} parent=11 // pred_check_branch
          %636 = sbr.rel (%p634) target = $region56
        $region55: #{ecg_network_forward.1} parent=11 // pred_region
          _
        $region56: #{ecg_network_forward.1} parent=11 // pred_fallthru
          _
        // Predicated region
        $region57: #{ecg_network_forward.1} parent=11 // pred_check
          %p637 = pneg %p317
        $region58: #{ecg_network_forward.1} parent=11 // pred_check_branch
          %639 = sbr.rel (%p637) target = $region60
        $region59: #{ecg_network_forward.1} parent=11 // pred_region
          _
        $region60: #{ecg_network_forward.1} parent=11 // pred_fallthru
          _
        // Predicated region
        $region61: #{ecg_network_forward.1} parent=11 // pred_check
          %p640 = pneg %p338
        $region62: #{ecg_network_forward.1} parent=11 // pred_check_branch
          %642 = sbr.rel (%p640) target = $region64
        $region63: #{ecg_network_forward.1} parent=11 // pred_region
          %s644 = ssub.s32 8192, 8192
          %645 = vsyncadd [#allocation6], %s644
          %s646 = sshll.u32 [#allocation5], 4
          %s647 = int_to_ptr.vmem [resolvable:$true] %s646
          %652 = dma.hbm_to_vmem [thread:$0]  %s13, 8192, %s647, [#allocation6], 128, 128, 8
        $region64: #{ecg_network_forward.1} parent=11 // pred_fallthru
          _
        // Predicated region
        $region65: #{ecg_network_forward.1} parent=11 // pred_check
          %p653 = pneg %p359
        $region66: #{ecg_network_forward.1} parent=11 // pred_check_branch
          %655 = sbr.rel (%p653) target = $region68
        $region67: #{ecg_network_forward.1} parent=11 // pred_region
          _
        $region68: #{ecg_network_forward.1} parent=11 // pred_fallthru
          _
        // Predicated region
        $region69: #{ecg_network_forward.1} parent=11 // pred_check
          %p656 = pneg %p380
        $region70: #{ecg_network_forward.1} parent=11 // pred_check_branch
          %658 = sbr.rel (%p656) target = $region72
        $region71: #{ecg_network_forward.1} parent=11 // pred_region
          %s660 = ssub.s32 16384, 16384
          %661 = vsyncadd [#allocation6], %s660
          %s662 = sshll.u32 [#allocation7], 4
          %s663 = int_to_ptr.vmem [resolvable:$true] %s662
          %668 = dma.hbm_to_vmem [thread:$0]  %s15, 16384, %s663, [#allocation6], 128, 128, 8
        $region72: #{ecg_network_forward.1} parent=11 // pred_fallthru
          _
        // Predicated region
        $region73: #{ecg_network_forward.1} parent=11 // pred_check
          %p669 = pneg %p401
        $region74: #{ecg_network_forward.1} parent=11 // pred_check_branch
          %671 = sbr.rel (%p669) target = $region76
        $region75: #{ecg_network_forward.1} parent=11 // pred_region
          _
        $region76: #{ecg_network_forward.1} parent=11 // pred_fallthru
          _
        // Predicated region
        $region77: #{ecg_network_forward.1} parent=11 // pred_check
          %p672 = pneg %p422
        $region78: #{ecg_network_forward.1} parent=11 // pred_check_branch
          %674 = sbr.rel (%p672) target = $region80
        $region79: #{ecg_network_forward.1} parent=11 // pred_region
          _
        $region80: #{ecg_network_forward.1} parent=11 // pred_fallthru
          _
        // Predicated region
        $region81: #{ecg_network_forward.1} parent=11 // pred_check
          %p675 = pneg %p443
        $region82: #{ecg_network_forward.1} parent=11 // pred_check_branch
          %677 = sbr.rel (%p675) target = $region84
        $region83: #{ecg_network_forward.1} parent=11 // pred_region
          _
        $region84: #{ecg_network_forward.1} parent=11 // pred_fallthru
          _
        // Predicated region
        $region85: #{ecg_network_forward.1} parent=11 // pred_check
          %p678 = pneg %p464
        $region86: #{ecg_network_forward.1} parent=11 // pred_check_branch
          %680 = sbr.rel (%p678) target = $region88
        $region87: #{ecg_network_forward.1} parent=11 // pred_region
          _
        $region88: #{ecg_network_forward.1} parent=11 // pred_fallthru
          _
        // Predicated region
        $region89: #{ecg_network_forward.1} parent=11 // pred_check
          %p681 = pneg %p485
        $region90: #{ecg_network_forward.1} parent=11 // pred_check_branch
          %683 = sbr.rel (%p681) target = $region92
        $region91: #{ecg_network_forward.1} parent=11 // pred_region
          _
        $region92: #{ecg_network_forward.1} parent=11 // pred_fallthru
          _
        // Predicated region
        $region93: #{ecg_network_forward.1} parent=11 // pred_check
          %p684 = pneg %p506
        $region94: #{ecg_network_forward.1} parent=11 // pred_check_branch
          %686 = sbr.rel (%p684) target = $region96
        $region95: #{ecg_network_forward.1} parent=11 // pred_region
          _
        $region96: #{ecg_network_forward.1} parent=11 // pred_fallthru
          _
        // Predicated region
        $region97: #{ecg_network_forward.1} parent=11 // pred_check
          %p687 = pneg %p527
        $region98: #{ecg_network_forward.1} parent=11 // pred_check_branch
          %689 = sbr.rel (%p687) target = $region100
        $region99: #{ecg_network_forward.1} parent=11 // pred_region
          _
        $region100: #{ecg_network_forward.1} parent=11 // pred_fallthru
          _
      $region12: #{ecg_network_forward.1} parent=5 // pred_fallthru
        _
      %p690 = scmp.lt.s32.totalorder %s39, 2
      // Predicated region
      $region101: #{ecg_network_forward.1} parent=5 // pred_check
        %p691 = pneg %p690
      $region102: #{ecg_network_forward.1} parent=5 // pred_check_branch
        %693 = sbr.rel (%p691) target = $region104
      $region103: #{ecg_network_forward.1} parent=5 // pred_region
        // Predicated region
        $region105: #{ecg_network_forward.1} parent=103 // pred_check
          %p694 = pneg %p59
        $region106: #{ecg_network_forward.1} parent=103 // pred_check_branch
          %696 = sbr.rel (%p694) target = $region108
        $region107: #{ecg_network_forward.1} parent=103 // pred_region
          %p697 = scmp.lt.s32.totalorder %s39, 1
          %s698 = scalar_select %p697, %s39, 1
          %s699 = smul.addr %s698, 8
          %s700 = smul.addr %s699, 8
          %s701 = scalar_lea.vmem %s0, %s700
        $region108: #{ecg_network_forward.1} parent=103 // pred_fallthru
          _
      $region104: #{ecg_network_forward.1} parent=5 // pred_fallthru
        _
      %p702 = scmp.le.s32.totalorder 1, %s39
      %p703 = scmp.lt.s32.totalorder %s39, 3
      %p704 = pnand %p702, %p703
      %p705 = pneg %p704
      // Predicated region
      $region109: #{ecg_network_forward.1} parent=5 // pred_check
        _
      $region110: #{ecg_network_forward.1} parent=5 // pred_check_branch
        %707 = sbr.rel (%p704) target = $region112
      $region111: #{ecg_network_forward.1} parent=5 // pred_region
        %s708 = ssub.s32 %s39, 1
        // Predicated region
        $region113: #{ecg_network_forward.1} parent=111 // pred_check
          %p709 = pneg %p254
        $region114: #{ecg_network_forward.1} parent=111 // pred_check_branch
          %711 = sbr.rel (%p709) target = $region116
        $region115: #{ecg_network_forward.1} parent=111 // pred_region
          %712 = dma.done [#allocation3], 16384
        $region116: #{ecg_network_forward.1} parent=111 // pred_fallthru
          _
        // Predicated region
        $region117: #{ecg_network_forward.1} parent=111 // pred_check
          %p713 = pneg %p338
        $region118: #{ecg_network_forward.1} parent=111 // pred_check_branch
          %715 = sbr.rel (%p713) target = $region120
        $region119: #{ecg_network_forward.1} parent=111 // pred_region
          %716 = dma.done [#allocation6], 8192
        $region120: #{ecg_network_forward.1} parent=111 // pred_fallthru
          _
        // Predicated region
        $region121: #{ecg_network_forward.1} parent=111 // pred_check
          %p717 = pneg %p380
        $region122: #{ecg_network_forward.1} parent=111 // pred_check_branch
          %719 = sbr.rel (%p717) target = $region124
        $region123: #{ecg_network_forward.1} parent=111 // pred_region
          %720 = dma.done [#allocation6], 16384
        $region124: #{ecg_network_forward.1} parent=111 // pred_fallthru
          _
        %p721 = scmp.lt.s32.totalorder %s44, 1
        %s722 = scalar_select %p721, %s44, 1
        %s723 = smul.addr %s722, 8
        %s724 = smul.addr %s723, 8
        %s725 = scalar_lea.vmem %s0, %s724
        %p726 = pneg %p65
        %p727 = pneg %p62
        %p728 = pneg %p86
        %p729 = pneg %p83
        %p730 = pneg %p107
        %p731 = pneg %p104
        %p732 = pneg %p128
        %p733 = pneg %p125
        %p734 = pneg %p149
        %p735 = pneg %p146
        %p736 = pneg %p170
        %p737 = pneg %p167
        %p738 = pneg %p191
        %p739 = pneg %p188
        %p740 = pneg %p212
        %p741 = pneg %p209
        %p742 = pneg %p233
        %p743 = pneg %p230
        %p744 = pneg %p254
        %p745 = pneg %p251
        %p746 = pneg %p275
        %p747 = pneg %p272
        %p748 = pneg %p296
        %p749 = pneg %p293
        %p750 = pneg %p317
        %p751 = pneg %p314
        %p752 = pneg %p338
        %p753 = pneg %p335
        %p754 = pneg %p359
        %p755 = pneg %p356
        %p756 = pneg %p380
        %p757 = pneg %p377
        %p758 = pneg %p401
        %p759 = pneg %p398
        %p760 = pneg %p422
        %p761 = pneg %p419
        %p762 = pneg %p443
        %p763 = pneg %p440
        %p764 = pneg %p464
        %p765 = pneg %p461
        %p766 = pneg %p485
        %p767 = pneg %p482
        %p768 = pneg %p506
        %p769 = pneg %p503
        %p770 = pneg %p527
        %p771 = pneg %p524
        %p772 = pneg %p553
        %p773 = pneg %p550
        %s774 = sand.u32 %s540, 1
        %s775 = scalar_lea.sflag [#allocation4], %s774
        %s776 = sand.u32 %s540, 1
        %s777 = scalar_lea.vmem [#allocation8], %s776
        %p778 = pneg %p579
        %p779 = pneg %p576
        %s780 = sand.u32 %s566, 1
        %s781 = scalar_lea.sflag [#allocation10], %s780
        %s782 = sand.u32 %s566, 1
        %s783 = scalar_lea.vmem [#allocation9], %s782
        %p784 = scmp.lt.s32.totalorder %s44, 1
        %s785 = scalar_select %p784, %s44, 1
        %s786 = smul.addr %s785, 8
        %s787 = smul.addr %s786, 8
        %s788 = scalar_lea.vmem %s0, %s787
        %v789 = vld [vmem:[%s788] sm:$0xff]
        %v790 = vld [vmem:[%s788 + $0x8] sm:$0xff]
        %v791 = vld [vmem:[%s788 + $0x10] sm:$0xff]
        %v792 = vld [vmem:[%s788 + $0x18] sm:$0xff]
        %v793 = vld [vmem:[%s788 + $0x20] sm:$0xff]
        %v794 = vld [vmem:[%s788 + $0x28] sm:$0xff]
        %v795 = vld [vmem:[%s788 + $0x30] sm:$0xff]
        %v796 = vld [vmem:[%s788 + $0x38] sm:$0xff]
        %vm805 = vcmask 1046528
        %v806 = vrot.slane 0.0, 1
        %v807 = vsel %vm805, %v806, %v806
        %v808 = vrot.slane %v789, 1
        %v809 = vsel %vm805, %v806, %v808
        %v810 = vrot.slane %v790, 1
        %v811 = vsel %vm805, %v808, %v810
        %v812 = vrot.slane %v791, 1
        %v813 = vsel %vm805, %v810, %v812
        %v814 = vrot.slane %v792, 1
        %v815 = vsel %vm805, %v812, %v814
        %v816 = vrot.slane %v793, 1
        %v817 = vsel %vm805, %v814, %v816
        %v818 = vrot.slane %v794, 1
        %v819 = vsel %vm805, %v816, %v818
        %v820 = vrot.slane %v795, 1
        %v821 = vsel %vm805, %v818, %v820
        %822 = vrot.lane.b32.xlu0 %v807, 1
        %v823 = vpop.permute.xlu0 %822
        %824 = vrot.lane.b32.xlu0 %v809, 1
        %v825 = vpop.permute.xlu0 %824
        %826 = vrot.lane.b32.xlu0 %v811, 1
        %v827 = vpop.permute.xlu0 %826
        %828 = vrot.lane.b32.xlu0 %v813, 1
        %v829 = vpop.permute.xlu0 %828
        %830 = vrot.lane.b32.xlu0 %v815, 1
        %v831 = vpop.permute.xlu0 %830
        %832 = vrot.lane.b32.xlu0 %v817, 1
        %v833 = vpop.permute.xlu0 %832
        %834 = vrot.lane.b32.xlu0 %v819, 1
        %v835 = vpop.permute.xlu0 %834
        %836 = vrot.lane.b32.xlu0 %v821, 1
        %v837 = vpop.permute.xlu0 %836
        %vm846 = vcmask 1045504
        %v847 = vrot.slane 0.0, 2
        %v848 = vsel %vm846, %v847, %v847
        %v849 = vrot.slane %v789, 2
        %v850 = vsel %vm846, %v847, %v849
        %v851 = vrot.slane %v790, 2
        %v852 = vsel %vm846, %v849, %v851
        %v853 = vrot.slane %v791, 2
        %v854 = vsel %vm846, %v851, %v853
        %v855 = vrot.slane %v792, 2
        %v856 = vsel %vm846, %v853, %v855
        %v857 = vrot.slane %v793, 2
        %v858 = vsel %vm846, %v855, %v857
        %v859 = vrot.slane %v794, 2
        %v860 = vsel %vm846, %v857, %v859
        %v861 = vrot.slane %v795, 2
        %v862 = vsel %vm846, %v859, %v861
        %863 = vrot.lane.b32.xlu0 %v848, 2
        %v864 = vpop.permute.xlu0 %863
        %865 = vrot.lane.b32.xlu0 %v850, 2
        %v866 = vpop.permute.xlu0 %865
        %867 = vrot.lane.b32.xlu0 %v852, 2
        %v868 = vpop.permute.xlu0 %867
        %869 = vrot.lane.b32.xlu0 %v854, 2
        %v870 = vpop.permute.xlu0 %869
        %871 = vrot.lane.b32.xlu0 %v856, 2
        %v872 = vpop.permute.xlu0 %871
        %873 = vrot.lane.b32.xlu0 %v858, 2
        %v874 = vpop.permute.xlu0 %873
        %875 = vrot.lane.b32.xlu0 %v860, 2
        %v876 = vpop.permute.xlu0 %875
        %877 = vrot.lane.b32.xlu0 %v862, 2
        %v878 = vpop.permute.xlu0 %877
        %vm887 = vcmask 1044480
        %v888 = vrot.slane 0.0, 3
        %v889 = vsel %vm887, %v888, %v888
        %v890 = vrot.slane %v789, 3
        %v891 = vsel %vm887, %v888, %v890
        %v892 = vrot.slane %v790, 3
        %v893 = vsel %vm887, %v890, %v892
        %v894 = vrot.slane %v791, 3
        %v895 = vsel %vm887, %v892, %v894
        %v896 = vrot.slane %v792, 3
        %v897 = vsel %vm887, %v894, %v896
        %v898 = vrot.slane %v793, 3
        %v899 = vsel %vm887, %v896, %v898
        %v900 = vrot.slane %v794, 3
        %v901 = vsel %vm887, %v898, %v900
        %v902 = vrot.slane %v795, 3
        %v903 = vsel %vm887, %v900, %v902
        %904 = vrot.lane.b32.xlu0 %v889, 3
        %v905 = vpop.permute.xlu0 %904
        %906 = vrot.lane.b32.xlu0 %v891, 3
        %v907 = vpop.permute.xlu0 %906
        %908 = vrot.lane.b32.xlu0 %v893, 3
        %v909 = vpop.permute.xlu0 %908
        %910 = vrot.lane.b32.xlu0 %v895, 3
        %v911 = vpop.permute.xlu0 %910
        %912 = vrot.lane.b32.xlu0 %v897, 3
        %v913 = vpop.permute.xlu0 %912
        %914 = vrot.lane.b32.xlu0 %v899, 3
        %v915 = vpop.permute.xlu0 %914
        %916 = vrot.lane.b32.xlu0 %v901, 3
        %v917 = vpop.permute.xlu0 %916
        %918 = vrot.lane.b32.xlu0 %v903, 3
        %v919 = vpop.permute.xlu0 %918
        %vm928 = vcmask 1043456
        %v929 = vrot.slane 0.0, 4
        %v930 = vsel %vm928, %v929, %v929
        %v931 = vrot.slane %v789, 4
        %v932 = vsel %vm928, %v929, %v931
        %v933 = vrot.slane %v790, 4
        %v934 = vsel %vm928, %v931, %v933
        %v935 = vrot.slane %v791, 4
        %v936 = vsel %vm928, %v933, %v935
        %v937 = vrot.slane %v792, 4
        %v938 = vsel %vm928, %v935, %v937
        %v939 = vrot.slane %v793, 4
        %v940 = vsel %vm928, %v937, %v939
        %v941 = vrot.slane %v794, 4
        %v942 = vsel %vm928, %v939, %v941
        %v943 = vrot.slane %v795, 4
        %v944 = vsel %vm928, %v941, %v943
        %945 = vrot.lane.b32.xlu0 %v930, 4
        %v946 = vpop.permute.xlu0 %945
        %947 = vrot.lane.b32.xlu0 %v932, 4
        %v948 = vpop.permute.xlu0 %947
        %949 = vrot.lane.b32.xlu0 %v934, 4
        %v950 = vpop.permute.xlu0 %949
        %951 = vrot.lane.b32.xlu0 %v936, 4
        %v952 = vpop.permute.xlu0 %951
        %953 = vrot.lane.b32.xlu0 %v938, 4
        %v954 = vpop.permute.xlu0 %953
        %955 = vrot.lane.b32.xlu0 %v940, 4
        %v956 = vpop.permute.xlu0 %955
        %957 = vrot.lane.b32.xlu0 %v942, 4
        %v958 = vpop.permute.xlu0 %957
        %959 = vrot.lane.b32.xlu0 %v944, 4
        %v960 = vpop.permute.xlu0 %959
        %vm969 = vcmask 1042432
        %v970 = vrot.slane 0.0, 5
        %v971 = vsel %vm969, %v970, %v970
        %v972 = vrot.slane %v789, 5
        %v973 = vsel %vm969, %v970, %v972
        %v974 = vrot.slane %v790, 5
        %v975 = vsel %vm969, %v972, %v974
        %v976 = vrot.slane %v791, 5
        %v977 = vsel %vm969, %v974, %v976
        %v978 = vrot.slane %v792, 5
        %v979 = vsel %vm969, %v976, %v978
        %v980 = vrot.slane %v793, 5
        %v981 = vsel %vm969, %v978, %v980
        %v982 = vrot.slane %v794, 5
        %v983 = vsel %vm969, %v980, %v982
        %v984 = vrot.slane %v795, 5
        %v985 = vsel %vm969, %v982, %v984
        %986 = vrot.lane.b32.xlu0 %v971, 5
        %v987 = vpop.permute.xlu0 %986
        %988 = vrot.lane.b32.xlu0 %v973, 5
        %v989 = vpop.permute.xlu0 %988
        %990 = vrot.lane.b32.xlu0 %v975, 5
        %v991 = vpop.permute.xlu0 %990
        %992 = vrot.lane.b32.xlu0 %v977, 5
        %v993 = vpop.permute.xlu0 %992
        %994 = vrot.lane.b32.xlu0 %v979, 5
        %v995 = vpop.permute.xlu0 %994
        %996 = vrot.lane.b32.xlu0 %v981, 5
        %v997 = vpop.permute.xlu0 %996
        %998 = vrot.lane.b32.xlu0 %v983, 5
        %v999 = vpop.permute.xlu0 %998
        %1000 = vrot.lane.b32.xlu0 %v985, 5
        %v1001 = vpop.permute.xlu0 %1000
        %vm1010 = vcmask 1041408
        %v1011 = vrot.slane 0.0, 6
        %v1012 = vsel %vm1010, %v1011, %v1011
        %v1013 = vrot.slane %v789, 6
        %v1014 = vsel %vm1010, %v1011, %v1013
        %v1015 = vrot.slane %v790, 6
        %v1016 = vsel %vm1010, %v1013, %v1015
        %v1017 = vrot.slane %v791, 6
        %v1018 = vsel %vm1010, %v1015, %v1017
        %v1019 = vrot.slane %v792, 6
        %v1020 = vsel %vm1010, %v1017, %v1019
        %v1021 = vrot.slane %v793, 6
        %v1022 = vsel %vm1010, %v1019, %v1021
        %v1023 = vrot.slane %v794, 6
        %v1024 = vsel %vm1010, %v1021, %v1023
        %v1025 = vrot.slane %v795, 6
        %v1026 = vsel %vm1010, %v1023, %v1025
        %1027 = vrot.lane.b32.xlu0 %v1012, 6
        %v1028 = vpop.permute.xlu0 %1027
        %1029 = vrot.lane.b32.xlu0 %v1014, 6
        %v1030 = vpop.permute.xlu0 %1029
        %1031 = vrot.lane.b32.xlu0 %v1016, 6
        %v1032 = vpop.permute.xlu0 %1031
        %1033 = vrot.lane.b32.xlu0 %v1018, 6
        %v1034 = vpop.permute.xlu0 %1033
        %1035 = vrot.lane.b32.xlu0 %v1020, 6
        %v1036 = vpop.permute.xlu0 %1035
        %1037 = vrot.lane.b32.xlu0 %v1022, 6
        %v1038 = vpop.permute.xlu0 %1037
        %1039 = vrot.lane.b32.xlu0 %v1024, 6
        %v1040 = vpop.permute.xlu0 %1039
        %1041 = vrot.lane.b32.xlu0 %v1026, 6
        %v1042 = vpop.permute.xlu0 %1041
        %vm1051 = vcmask 1040384
        %v1052 = vrot.slane 0.0, 7
        %v1053 = vsel %vm1051, %v1052, %v1052
        %v1054 = vrot.slane %v789, 7
        %v1055 = vsel %vm1051, %v1052, %v1054
        %v1056 = vrot.slane %v790, 7
        %v1057 = vsel %vm1051, %v1054, %v1056
        %v1058 = vrot.slane %v791, 7
        %v1059 = vsel %vm1051, %v1056, %v1058
        %v1060 = vrot.slane %v792, 7
        %v1061 = vsel %vm1051, %v1058, %v1060
        %v1062 = vrot.slane %v793, 7
        %v1063 = vsel %vm1051, %v1060, %v1062
        %v1064 = vrot.slane %v794, 7
        %v1065 = vsel %vm1051, %v1062, %v1064
        %v1066 = vrot.slane %v795, 7
        %v1067 = vsel %vm1051, %v1064, %v1066
        %1068 = vrot.lane.b32.xlu0 %v1053, 7
        %v1069 = vpop.permute.xlu0 %1068
        %1070 = vrot.lane.b32.xlu0 %v1055, 7
        %v1071 = vpop.permute.xlu0 %1070
        %1072 = vrot.lane.b32.xlu0 %v1057, 7
        %v1073 = vpop.permute.xlu0 %1072
        %1074 = vrot.lane.b32.xlu0 %v1059, 7
        %v1075 = vpop.permute.xlu0 %1074
        %1076 = vrot.lane.b32.xlu0 %v1061, 7
        %v1077 = vpop.permute.xlu0 %1076
        %1078 = vrot.lane.b32.xlu0 %v1063, 7
        %v1079 = vpop.permute.xlu0 %1078
        %1080 = vrot.lane.b32.xlu0 %v1065, 7
        %v1081 = vpop.permute.xlu0 %1080
        %1082 = vrot.lane.b32.xlu0 %v1067, 7
        %v1083 = vpop.permute.xlu0 %1082
        %1092 = vrot.lane.b32.xlu0 0.0, 8
        %v1093 = vpop.permute.xlu0 %1092
        %1094 = vrot.lane.b32.xlu0 %v789, 8
        %v1095 = vpop.permute.xlu0 %1094
        %1096 = vrot.lane.b32.xlu0 %v790, 8
        %v1097 = vpop.permute.xlu0 %1096
        %1098 = vrot.lane.b32.xlu0 %v791, 8
        %v1099 = vpop.permute.xlu0 %1098
        %1100 = vrot.lane.b32.xlu0 %v792, 8
        %v1101 = vpop.permute.xlu0 %1100
        %1102 = vrot.lane.b32.xlu0 %v793, 8
        %v1103 = vpop.permute.xlu0 %1102
        %1104 = vrot.lane.b32.xlu0 %v794, 8
        %v1105 = vpop.permute.xlu0 %1104
        %1106 = vrot.lane.b32.xlu0 %v795, 8
        %v1107 = vpop.permute.xlu0 %1106
        %v1117 = vrot.slane %v796, 1
        %v1118 = vsel %vm805, %v820, %v1117
        %1119 = vrot.lane.b32.xlu0 %v809, 9
        %v1120 = vpop.permute.xlu0 %1119
        %1121 = vrot.lane.b32.xlu0 %v811, 9
        %v1122 = vpop.permute.xlu0 %1121
        %1123 = vrot.lane.b32.xlu0 %v813, 9
        %v1124 = vpop.permute.xlu0 %1123
        %1125 = vrot.lane.b32.xlu0 %v815, 9
        %v1126 = vpop.permute.xlu0 %1125
        %1127 = vrot.lane.b32.xlu0 %v817, 9
        %v1128 = vpop.permute.xlu0 %1127
        %1129 = vrot.lane.b32.xlu0 %v819, 9
        %v1130 = vpop.permute.xlu0 %1129
        %1131 = vrot.lane.b32.xlu0 %v821, 9
        %v1132 = vpop.permute.xlu0 %1131
        %1133 = vrot.lane.b32.xlu0 %v1118, 9
        %v1134 = vpop.permute.xlu0 %1133
        %v1143 = vrot.slane %v796, 2
        %v1144 = vsel %vm846, %v861, %v1143
        %1145 = vrot.lane.b32.xlu0 %v850, 10
        %v1146 = vpop.permute.xlu0 %1145
        %1147 = vrot.lane.b32.xlu0 %v852, 10
        %v1148 = vpop.permute.xlu0 %1147
        %1149 = vrot.lane.b32.xlu0 %v854, 10
        %v1150 = vpop.permute.xlu0 %1149
        %1151 = vrot.lane.b32.xlu0 %v856, 10
        %v1152 = vpop.permute.xlu0 %1151
        %1153 = vrot.lane.b32.xlu0 %v858, 10
        %v1154 = vpop.permute.xlu0 %1153
        %1155 = vrot.lane.b32.xlu0 %v860, 10
        %v1156 = vpop.permute.xlu0 %1155
        %1157 = vrot.lane.b32.xlu0 %v862, 10
        %v1158 = vpop.permute.xlu0 %1157
        %1159 = vrot.lane.b32.xlu0 %v1144, 10
        %v1160 = vpop.permute.xlu0 %1159
        %v1169 = vrot.slane %v796, 3
        %v1170 = vsel %vm887, %v902, %v1169
        %1171 = vrot.lane.b32.xlu0 %v891, 11
        %v1172 = vpop.permute.xlu0 %1171
        %1173 = vrot.lane.b32.xlu0 %v893, 11
        %v1174 = vpop.permute.xlu0 %1173
        %1175 = vrot.lane.b32.xlu0 %v895, 11
        %v1176 = vpop.permute.xlu0 %1175
        %1177 = vrot.lane.b32.xlu0 %v897, 11
        %v1178 = vpop.permute.xlu0 %1177
        %1179 = vrot.lane.b32.xlu0 %v899, 11
        %v1180 = vpop.permute.xlu0 %1179
        %1181 = vrot.lane.b32.xlu0 %v901, 11
        %v1182 = vpop.permute.xlu0 %1181
        %1183 = vrot.lane.b32.xlu0 %v903, 11
        %v1184 = vpop.permute.xlu0 %1183
        %1185 = vrot.lane.b32.xlu0 %v1170, 11
        %v1186 = vpop.permute.xlu0 %1185
        %v1195 = vrot.slane %v796, 4
        %v1196 = vsel %vm928, %v943, %v1195
        %1197 = vrot.lane.b32.xlu0 %v932, 12
        %v1198 = vpop.permute.xlu0 %1197
        %1199 = vrot.lane.b32.xlu0 %v934, 12
        %v1200 = vpop.permute.xlu0 %1199
        %1201 = vrot.lane.b32.xlu0 %v936, 12
        %v1202 = vpop.permute.xlu0 %1201
        %1203 = vrot.lane.b32.xlu0 %v938, 12
        %v1204 = vpop.permute.xlu0 %1203
        %1205 = vrot.lane.b32.xlu0 %v940, 12
        %v1206 = vpop.permute.xlu0 %1205
        %1207 = vrot.lane.b32.xlu0 %v942, 12
        %v1208 = vpop.permute.xlu0 %1207
        %1209 = vrot.lane.b32.xlu0 %v944, 12
        %v1210 = vpop.permute.xlu0 %1209
        %1211 = vrot.lane.b32.xlu0 %v1196, 12
        %v1212 = vpop.permute.xlu0 %1211
        %v1221 = vrot.slane %v796, 5
        %v1222 = vsel %vm969, %v984, %v1221
        %1223 = vrot.lane.b32.xlu0 %v973, 13
        %v1224 = vpop.permute.xlu0 %1223
        %1225 = vrot.lane.b32.xlu0 %v975, 13
        %v1226 = vpop.permute.xlu0 %1225
        %1227 = vrot.lane.b32.xlu0 %v977, 13
        %v1228 = vpop.permute.xlu0 %1227
        %1229 = vrot.lane.b32.xlu0 %v979, 13
        %v1230 = vpop.permute.xlu0 %1229
        %1231 = vrot.lane.b32.xlu0 %v981, 13
        %v1232 = vpop.permute.xlu0 %1231
        %1233 = vrot.lane.b32.xlu0 %v983, 13
        %v1234 = vpop.permute.xlu0 %1233
        %1235 = vrot.lane.b32.xlu0 %v985, 13
        %v1236 = vpop.permute.xlu0 %1235
        %1237 = vrot.lane.b32.xlu0 %v1222, 13
        %v1238 = vpop.permute.xlu0 %1237
        %v1247 = vrot.slane %v796, 6
        %v1248 = vsel %vm1010, %v1025, %v1247
        %1249 = vrot.lane.b32.xlu0 %v1014, 14
        %v1250 = vpop.permute.xlu0 %1249
        %1251 = vrot.lane.b32.xlu0 %v1016, 14
        %v1252 = vpop.permute.xlu0 %1251
        %1253 = vrot.lane.b32.xlu0 %v1018, 14
        %v1254 = vpop.permute.xlu0 %1253
        %1255 = vrot.lane.b32.xlu0 %v1020, 14
        %v1256 = vpop.permute.xlu0 %1255
        %1257 = vrot.lane.b32.xlu0 %v1022, 14
        %v1258 = vpop.permute.xlu0 %1257
        %1259 = vrot.lane.b32.xlu0 %v1024, 14
        %v1260 = vpop.permute.xlu0 %1259
        %1261 = vrot.lane.b32.xlu0 %v1026, 14
        %v1262 = vpop.permute.xlu0 %1261
        %1263 = vrot.lane.b32.xlu0 %v1248, 14
        %v1264 = vpop.permute.xlu0 %1263
        %v1273 = vrot.slane %v796, 7
        %v1274 = vsel %vm1051, %v1066, %v1273
        %1275 = vrot.lane.b32.xlu0 %v1055, 15
        %v1276 = vpop.permute.xlu0 %1275
        %1277 = vrot.lane.b32.xlu0 %v1057, 15
        %v1278 = vpop.permute.xlu0 %1277
        %1279 = vrot.lane.b32.xlu0 %v1059, 15
        %v1280 = vpop.permute.xlu0 %1279
        %1281 = vrot.lane.b32.xlu0 %v1061, 15
        %v1282 = vpop.permute.xlu0 %1281
        %1283 = vrot.lane.b32.xlu0 %v1063, 15
        %v1284 = vpop.permute.xlu0 %1283
        %1285 = vrot.lane.b32.xlu0 %v1065, 15
        %v1286 = vpop.permute.xlu0 %1285
        %1287 = vrot.lane.b32.xlu0 %v1067, 15
        %v1288 = vpop.permute.xlu0 %1287
        %1289 = vrot.lane.b32.xlu0 %v1274, 15
        %v1290 = vpop.permute.xlu0 %1289
        %vm1299 = vcmask 7168
        %v1300 = vsel %vm1299, 0.0, %v823
        %v1301 = vsel %vm1299, 0.0, %v825
        %v1302 = vsel %vm1299, %v789, %v827
        %v1303 = vsel %vm1299, %v790, %v829
        %v1304 = vsel %vm1299, %v791, %v831
        %v1305 = vsel %vm1299, %v792, %v833
        %v1306 = vsel %vm1299, %v793, %v835
        %v1307 = vsel %vm1299, %v794, %v837
        %vm1308 = vcmask 15360
        %v1309 = vsel %vm1308, %v1300, %v864
        %v1310 = vsel %vm1308, %v1301, %v866
        %v1311 = vsel %vm1308, %v1302, %v868
        %v1312 = vsel %vm1308, %v1303, %v870
        %v1313 = vsel %vm1308, %v1304, %v872
        %v1314 = vsel %vm1308, %v1305, %v874
        %v1315 = vsel %vm1308, %v1306, %v876
        %v1316 = vsel %vm1308, %v1307, %v878
        %vm1317 = vcmask 23552
        %v1318 = vsel %vm1317, %v1309, %v905
        %v1319 = vsel %vm1317, %v1310, %v907
        %v1320 = vsel %vm1317, %v1311, %v909
        %v1321 = vsel %vm1317, %v1312, %v911
        %v1322 = vsel %vm1317, %v1313, %v913
        %v1323 = vsel %vm1317, %v1314, %v915
        %v1324 = vsel %vm1317, %v1315, %v917
        %v1325 = vsel %vm1317, %v1316, %v919
        %vm1326 = vcmask 31744
        %v1327 = vsel %vm1326, %v1318, %v946
        %v1328 = vsel %vm1326, %v1319, %v948
        %v1329 = vsel %vm1326, %v1320, %v950
        %v1330 = vsel %vm1326, %v1321, %v952
        %v1331 = vsel %vm1326, %v1322, %v954
        %v1332 = vsel %vm1326, %v1323, %v956
        %v1333 = vsel %vm1326, %v1324, %v958
        %v1334 = vsel %vm1326, %v1325, %v960
        %vm1335 = vcmask 39936
        %v1336 = vsel %vm1335, %v1327, %v987
        %v1337 = vsel %vm1335, %v1328, %v989
        %v1338 = vsel %vm1335, %v1329, %v991
        %v1339 = vsel %vm1335, %v1330, %v993
        %v1340 = vsel %vm1335, %v1331, %v995
        %v1341 = vsel %vm1335, %v1332, %v997
        %v1342 = vsel %vm1335, %v1333, %v999
        %v1343 = vsel %vm1335, %v1334, %v1001
        %vm1344 = vcmask 48128
        %v1345 = vsel %vm1344, %v1336, %v1028
        %v1346 = vsel %vm1344, %v1337, %v1030
        %v1347 = vsel %vm1344, %v1338, %v1032
        %v1348 = vsel %vm1344, %v1339, %v1034
        %v1349 = vsel %vm1344, %v1340, %v1036
        %v1350 = vsel %vm1344, %v1341, %v1038
        %v1351 = vsel %vm1344, %v1342, %v1040
        %v1352 = vsel %vm1344, %v1343, %v1042
        %vm1353 = vcmask 56320
        %v1354 = vsel %vm1353, %v1345, %v1069
        %v1355 = vsel %vm1353, %v1346, %v1071
        %v1356 = vsel %vm1353, %v1347, %v1073
        %v1357 = vsel %vm1353, %v1348, %v1075
        %v1358 = vsel %vm1353, %v1349, %v1077
        %v1359 = vsel %vm1353, %v1350, %v1079
        %v1360 = vsel %vm1353, %v1351, %v1081
        %v1361 = vsel %vm1353, %v1352, %v1083
        %vm1362 = vcmask 64512
        %v1363 = vsel %vm1362, %v1354, %v1093
        %v1364 = vsel %vm1362, %v1355, %v1095
        %v1365 = vsel %vm1362, %v1356, %v1097
        %v1366 = vsel %vm1362, %v1357, %v1099
        %v1367 = vsel %vm1362, %v1358, %v1101
        %v1368 = vsel %vm1362, %v1359, %v1103
        %v1369 = vsel %vm1362, %v1360, %v1105
        %v1370 = vsel %vm1362, %v1361, %v1107
        %vm1371 = vcmask 72704
        %v1372 = vsel %vm1371, %v1363, %v1120
        %v1373 = vsel %vm1371, %v1364, %v1122
        %v1374 = vsel %vm1371, %v1365, %v1124
        %v1375 = vsel %vm1371, %v1366, %v1126
        %v1376 = vsel %vm1371, %v1367, %v1128
        %v1377 = vsel %vm1371, %v1368, %v1130
        %v1378 = vsel %vm1371, %v1369, %v1132
        %v1379 = vsel %vm1371, %v1370, %v1134
        %vm1380 = vcmask 80896
        %v1381 = vsel %vm1380, %v1372, %v1146
        %v1382 = vsel %vm1380, %v1373, %v1148
        %v1383 = vsel %vm1380, %v1374, %v1150
        %v1384 = vsel %vm1380, %v1375, %v1152
        %v1385 = vsel %vm1380, %v1376, %v1154
        %v1386 = vsel %vm1380, %v1377, %v1156
        %v1387 = vsel %vm1380, %v1378, %v1158
        %v1388 = vsel %vm1380, %v1379, %v1160
        %vm1389 = vcmask 89088
        %v1390 = vsel %vm1389, %v1381, %v1172
        %v1391 = vsel %vm1389, %v1382, %v1174
        %v1392 = vsel %vm1389, %v1383, %v1176
        %v1393 = vsel %vm1389, %v1384, %v1178
        %v1394 = vsel %vm1389, %v1385, %v1180
        %v1395 = vsel %vm1389, %v1386, %v1182
        %v1396 = vsel %vm1389, %v1387, %v1184
        %v1397 = vsel %vm1389, %v1388, %v1186
        %vm1398 = vcmask 97280
        %v1399 = vsel %vm1398, %v1390, %v1198
        %v1400 = vsel %vm1398, %v1391, %v1200
        %v1401 = vsel %vm1398, %v1392, %v1202
        %v1402 = vsel %vm1398, %v1393, %v1204
        %v1403 = vsel %vm1398, %v1394, %v1206
        %v1404 = vsel %vm1398, %v1395, %v1208
        %v1405 = vsel %vm1398, %v1396, %v1210
        %v1406 = vsel %vm1398, %v1397, %v1212
        %vm1407 = vcmask 105472
        %v1408 = vsel %vm1407, %v1399, %v1224
        %v1409 = vsel %vm1407, %v1400, %v1226
        %v1410 = vsel %vm1407, %v1401, %v1228
        %v1411 = vsel %vm1407, %v1402, %v1230
        %v1412 = vsel %vm1407, %v1403, %v1232
        %v1413 = vsel %vm1407, %v1404, %v1234
        %v1414 = vsel %vm1407, %v1405, %v1236
        %v1415 = vsel %vm1407, %v1406, %v1238
        %vm1416 = vcmask 113664
        %v1417 = vsel %vm1416, %v1408, %v1250
        %v1418 = vsel %vm1416, %v1409, %v1252
        %v1419 = vsel %vm1416, %v1410, %v1254
        %v1420 = vsel %vm1416, %v1411, %v1256
        %v1421 = vsel %vm1416, %v1412, %v1258
        %v1422 = vsel %vm1416, %v1413, %v1260
        %v1423 = vsel %vm1416, %v1414, %v1262
        %v1424 = vsel %vm1416, %v1415, %v1264
        %vm1425 = vcmask 121856
        %v1426 = vsel %vm1425, %v1417, %v1276
        %v1427 = vsel %vm1425, %v1418, %v1278
        %v1428 = vsel %vm1425, %v1419, %v1280
        %v1429 = vsel %vm1425, %v1420, %v1282
        %v1430 = vsel %vm1425, %v1421, %v1284
        %v1431 = vsel %vm1425, %v1422, %v1286
        %v1432 = vsel %vm1425, %v1423, %v1288
        %v1433 = vsel %vm1425, %v1424, %v1290
        %v1434 = vsel %vm805, %v1117, %v806
        %1435 = vrot.lane.b32.xlu0 %v1118, 1
        %v1436 = vpop.permute.xlu0 %1435
        %1437 = vrot.lane.b32.xlu0 %v1434, 1
        %v1438 = vpop.permute.xlu0 %1437
        %v1441 = vsel %vm846, %v1143, %v847
        %1442 = vrot.lane.b32.xlu0 %v1144, 2
        %v1443 = vpop.permute.xlu0 %1442
        %1444 = vrot.lane.b32.xlu0 %v1441, 2
        %v1445 = vpop.permute.xlu0 %1444
        %v1448 = vsel %vm887, %v1169, %v888
        %1449 = vrot.lane.b32.xlu0 %v1170, 3
        %v1450 = vpop.permute.xlu0 %1449
        %1451 = vrot.lane.b32.xlu0 %v1448, 3
        %v1452 = vpop.permute.xlu0 %1451
        %v1455 = vsel %vm928, %v1195, %v929
        %1456 = vrot.lane.b32.xlu0 %v1196, 4
        %v1457 = vpop.permute.xlu0 %1456
        %1458 = vrot.lane.b32.xlu0 %v1455, 4
        %v1459 = vpop.permute.xlu0 %1458
        %v1462 = vsel %vm969, %v1221, %v970
        %1463 = vrot.lane.b32.xlu0 %v1222, 5
        %v1464 = vpop.permute.xlu0 %1463
        %1465 = vrot.lane.b32.xlu0 %v1462, 5
        %v1466 = vpop.permute.xlu0 %1465
        %v1469 = vsel %vm1010, %v1247, %v1011
        %1470 = vrot.lane.b32.xlu0 %v1248, 6
        %v1471 = vpop.permute.xlu0 %1470
        %1472 = vrot.lane.b32.xlu0 %v1469, 6
        %v1473 = vpop.permute.xlu0 %1472
        %v1476 = vsel %vm1051, %v1273, %v1052
        %1477 = vrot.lane.b32.xlu0 %v1274, 7
        %v1478 = vpop.permute.xlu0 %1477
        %1479 = vrot.lane.b32.xlu0 %v1476, 7
        %v1480 = vpop.permute.xlu0 %1479
        %1483 = vrot.lane.b32.xlu0 %v796, 8
        %v1484 = vpop.permute.xlu0 %1483
        %1486 = vrot.lane.b32.xlu0 %v1434, 9
        %v1487 = vpop.permute.xlu0 %1486
        %1488 = vrot.lane.b32.xlu0 %v807, 9
        %v1489 = vpop.permute.xlu0 %1488
        %1492 = vrot.lane.b32.xlu0 %v1441, 10
        %v1493 = vpop.permute.xlu0 %1492
        %1494 = vrot.lane.b32.xlu0 %v848, 10
        %v1495 = vpop.permute.xlu0 %1494
        %1498 = vrot.lane.b32.xlu0 %v1448, 11
        %v1499 = vpop.permute.xlu0 %1498
        %1500 = vrot.lane.b32.xlu0 %v889, 11
        %v1501 = vpop.permute.xlu0 %1500
        %1504 = vrot.lane.b32.xlu0 %v1455, 12
        %v1505 = vpop.permute.xlu0 %1504
        %1506 = vrot.lane.b32.xlu0 %v930, 12
        %v1507 = vpop.permute.xlu0 %1506
        %1510 = vrot.lane.b32.xlu0 %v1462, 13
        %v1511 = vpop.permute.xlu0 %1510
        %1512 = vrot.lane.b32.xlu0 %v971, 13
        %v1513 = vpop.permute.xlu0 %1512
        %1516 = vrot.lane.b32.xlu0 %v1469, 14
        %v1517 = vpop.permute.xlu0 %1516
        %1518 = vrot.lane.b32.xlu0 %v1012, 14
        %v1519 = vpop.permute.xlu0 %1518
        %1522 = vrot.lane.b32.xlu0 %v1476, 15
        %v1523 = vpop.permute.xlu0 %1522
        %1524 = vrot.lane.b32.xlu0 %v1053, 15
        %v1525 = vpop.permute.xlu0 %1524
        %v1528 = vsel %vm1299, %v795, %v1436
        %v1529 = vsel %vm1299, %v796, %v1438
        %v1530 = vsel %vm1308, %v1528, %v1443
        %v1531 = vsel %vm1308, %v1529, %v1445
        %v1532 = vsel %vm1317, %v1530, %v1450
        %v1533 = vsel %vm1317, %v1531, %v1452
        %v1534 = vsel %vm1326, %v1532, %v1457
        %v1535 = vsel %vm1326, %v1533, %v1459
        %v1536 = vsel %vm1335, %v1534, %v1464
        %v1537 = vsel %vm1335, %v1535, %v1466
        %v1538 = vsel %vm1344, %v1536, %v1471
        %v1539 = vsel %vm1344, %v1537, %v1473
        %v1540 = vsel %vm1353, %v1538, %v1478
        %v1541 = vsel %vm1353, %v1539, %v1480
        %v1542 = vsel %vm1362, %v1540, %v1484
        %v1543 = vsel %vm1362, %v1541, %v1093
        %v1544 = vsel %vm1371, %v1542, %v1487
        %v1545 = vsel %vm1371, %v1543, %v1489
        %v1546 = vsel %vm1380, %v1544, %v1493
        %v1547 = vsel %vm1380, %v1545, %v1495
        %v1548 = vsel %vm1389, %v1546, %v1499
        %v1549 = vsel %vm1389, %v1547, %v1501
        %v1550 = vsel %vm1398, %v1548, %v1505
        %v1551 = vsel %vm1398, %v1549, %v1507
        %v1552 = vsel %vm1407, %v1550, %v1511
        %v1553 = vsel %vm1407, %v1551, %v1513
        %v1554 = vsel %vm1416, %v1552, %v1517
        %v1555 = vsel %vm1416, %v1553, %v1519
        %v1556 = vsel %vm1425, %v1554, %v1523
        %v1557 = vsel %vm1425, %v1555, %v1525
        %1566 = vrot.lane.b32.xlu0 %v1428, 16
        %v1567 = vpop.permute.xlu0 %1566
        %1568 = vrot.lane.b32.xlu0 %v1429, 16
        %v1569 = vpop.permute.xlu0 %1568
        %1570 = vrot.lane.b32.xlu0 %v1430, 16
        %v1571 = vpop.permute.xlu0 %1570
        %1572 = vrot.lane.b32.xlu0 %v1431, 16
        %v1573 = vpop.permute.xlu0 %1572
        %1574 = vrot.lane.b32.xlu0 %v1432, 16
        %v1575 = vpop.permute.xlu0 %1574
        %1576 = vrot.lane.b32.xlu0 %v1433, 16
        %v1577 = vpop.permute.xlu0 %1576
        %1578 = vrot.lane.b32.xlu0 %v1556, 16
        %v1579 = vpop.permute.xlu0 %1578
        %1580 = vrot.lane.b32.xlu0 %v1557, 16
        %v1581 = vpop.permute.xlu0 %1580
        %vm1590 = vcmask 130048
        %v1591 = vsel %vm1590, %v1426, %v1567
        %v1592 = vsel %vm1590, %v1427, %v1569
        %v1593 = vsel %vm1590, %v1428, %v1571
        %v1594 = vsel %vm1590, %v1429, %v1573
        %v1595 = vsel %vm1590, %v1430, %v1575
        %v1596 = vsel %vm1590, %v1431, %v1577
        %v1597 = vsel %vm1590, %v1432, %v1579
        %v1598 = vsel %vm1590, %v1433, %v1581
        %v1599 = vld [vmem:[%s1] sm:$0xff]
        %v1600 = vld [vmem:[%s1 + $0x8] sm:$0xff]
        %v1601 = vld [vmem:[%s1 + $0x10] sm:$0xff]
        %v1602 = vld [vmem:[%s1 + $0x18] sm:$0xff]
        %v1603 = vld [vmem:[%s2] sm:$0x1]
        %v1605 = vlaneseq
        %v1606 = vshrl.u32 %v1605, 7
        %v1607 = vsub.s32 0, %v1606
        %v1608 = vrot.slane %v1603, %v1607
        %vm1610 = vcmask 261120
        %v1612 = vsel %vm1610, %v1591, 0
        %v1615 = vsel %vm1610, %v1592, 0
        %v1618 = vsel %vm1610, %v1593, 0
        %v1621 = vsel %vm1610, %v1594, 0
        %v1624 = vsel %vm1610, %v1595, 0
        %v1627 = vsel %vm1610, %v1596, 0
        %v1630 = vsel %vm1610, %v1597, 0
        %v1633 = vsel %vm1610, %v1598, 0
        %1635 = vmatprep.subr.mxu0 0.0
        %1636 = vmatpush1.msra.mxu0 %v1599
        %1637 = vmatprep.subr.mxu0 0.0
        %1638 = vmatpush1.msra.mxu0 %v1600
        %1639 = vmatprep.subr.mxu0 0.0
        %1640 = vmatpush1.msra.mxu0 %v1601
        %1641 = vmatprep.subr.mxu0 0.0
        %1642 = vmatpush1.msra.mxu0 %v1602
        %1643 = vmatprep.subr.mxu0 0.0
        %1644 = vmatpush1.msra.mxu0 0.0
        %1645 = vmatprep.subr.mxu0 0.0
        %1646 = vmatpush1.msra.mxu0 0.0
        %1647 = vmatprep.subr.mxu0 0.0
        %1648 = vmatpush1.msra.mxu0 0.0
        %1649 = vmatprep.subr.mxu0 0.0
        %1650 = vmatpush1.msra.mxu0 0.0
        %1651 = vmatprep.subr.mxu0 0.0
        %1652 = vmatpush1.msra.mxu0 0.0
        %1653 = vmatprep.subr.mxu0 0.0
        %1654 = vmatpush1.msra.mxu0 0.0
        %1655 = vmatprep.subr.mxu0 0.0
        %1656 = vmatpush1.msra.mxu0 0.0
        %1657 = vmatprep.subr.mxu0 0.0
        %1658 = vmatpush1.msra.mxu0 0.0
        %1659 = vmatprep.subr.mxu0 0.0
        %1660 = vmatpush1.msra.mxu0 0.0
        %1661 = vmatprep.subr.mxu0 0.0
        %1662 = vmatpush1.msra.mxu0 0.0
        %1663 = vmatprep.subr.mxu0 0.0
        %1664 = vmatpush1.msra.mxu0 0.0
        %1665 = vmatprep.subr.mxu0 0.0
        %1666 = vmatpush1.msra.mxu0 0.0
        %1667 = vmatprep.subr.mxu0 0.0
        %1668 = vmatpush1.msra.mxu0 0.0
        %1669 = vmatprep.subr.mxu0 0.0
        %1670 = vmatpush1.msra.mxu0 0.0
        %1671 = vmatprep.subr.mxu0 0.0
        %1672 = vmatpush1.msra.mxu0 0.0
        %1673 = vmatprep.subr.mxu0 0.0
        %1674 = vmatpush1.msra.mxu0 0.0
        %1675 = vmatprep.subr.mxu0 0.0
        %1676 = vmatpush1.msra.mxu0 0.0
        %1677 = vmatprep.subr.mxu0 0.0
        %1678 = vmatpush1.msra.mxu0 0.0
        %1679 = vmatprep.subr.mxu0 0.0
        %1680 = vmatpush1.msra.mxu0 0.0
        %1681 = vmatprep.subr.mxu0 0.0
        %1682 = vmatpush1.msra.mxu0 0.0
        %1683 = vmatprep.subr.mxu0 0.0
        %1684 = vmatpush1.msra.mxu0 0.0
        %1685 = vmatprep.subr.mxu0 0.0
        %1686 = vmatpush1.msra.mxu0 0.0
        %1687 = vmatprep.subr.mxu0 0.0
        %1688 = vmatpush1.msra.mxu0 0.0
        %1689 = vmatprep.subr.mxu0 0.0
        %1690 = vmatpush1.msra.mxu0 0.0
        %1691 = vmatprep.subr.mxu0 0.0
        %1692 = vmatpush1.msra.mxu0 0.0
        %1693 = vmatprep.subr.mxu0 0.0
        %1694 = vmatpush1.msra.mxu0 0.0
        %1695 = vmatprep.subr.mxu0 0.0
        %1696 = vmatpush1.msra.mxu0 0.0
        %1697 = vmatprep.subr.mxu0 0.0
        %1698 = vmatpush1.msra.mxu0 0.0
        %1699 = vmatprep.mubr.f32.mxu0 0.0
        %1700 = vmatmul.mubr.f32.gmra.mrb[0].mxu0 %v1612
        %v1701 = vpop.f32.mrb[0].mxu0
        %v1702 = vadd.f32 %v1608, %v1701
        %v1703 = vpop.f32.mrb[0].mxu0
        %1704 = vmatprep.mubr.f32.mxu0 0.0
        %1705 = vmatmul.mubr.f32.gmra.mrb[0].mxu0 %v1615
        %v1706 = vpop.f32.mrb[0].mxu0
        %v1707 = vadd.f32 %v1608, %v1706
        %v1708 = vpop.f32.mrb[0].mxu0
        %1709 = vmatprep.mubr.f32.mxu0 0.0
        %1710 = vmatmul.mubr.f32.gmra.mrb[0].mxu0 %v1618
        %v1711 = vpop.f32.mrb[0].mxu0
        %v1712 = vadd.f32 %v1608, %v1711
        %v1713 = vpop.f32.mrb[0].mxu0
        %1714 = vmatprep.mubr.f32.mxu0 0.0
        %1715 = vmatmul.mubr.f32.gmra.mrb[0].mxu0 %v1621
        %v1716 = vpop.f32.mrb[0].mxu0
        %v1717 = vadd.f32 %v1608, %v1716
        %v1718 = vpop.f32.mrb[0].mxu0
        %1719 = vmatprep.mubr.f32.mxu0 0.0
        %1720 = vmatmul.mubr.f32.gmra.mrb[0].mxu0 %v1624
        %v1721 = vpop.f32.mrb[0].mxu0
        %v1722 = vadd.f32 %v1608, %v1721
        %v1723 = vpop.f32.mrb[0].mxu0
        %1724 = vmatprep.mubr.f32.mxu0 0.0
        %1725 = vmatmul.mubr.f32.gmra.mrb[0].mxu0 %v1627
        %v1726 = vpop.f32.mrb[0].mxu0
        %v1727 = vadd.f32 %v1608, %v1726
        %v1728 = vpop.f32.mrb[0].mxu0
        %1729 = vmatprep.mubr.f32.mxu0 0.0
        %1730 = vmatmul.mubr.f32.gmra.mrb[0].mxu0 %v1630
        %v1731 = vpop.f32.mrb[0].mxu0
        %v1732 = vadd.f32 %v1608, %v1731
        %v1733 = vpop.f32.mrb[0].mxu0
        %1734 = vmatprep.mubr.f32.mxu0 0.0
        %1735 = vmatmul.mubr.f32.gmra.mrb[0].mxu0 %v1633
        %v1736 = vpop.f32.mrb[0].mxu0
        %v1737 = vadd.f32 %v1608, %v1736
        %v1738 = vpop.f32.mrb[0].mxu0
        %1739 = vdwg.mxu0
        %v1740 = vmax.f32 %v1702, 0.0
        %v1741 = vmax.f32 %v1707, 0.0
        %v1742 = vmax.f32 %v1712, 0.0
        %v1743 = vmax.f32 %v1717, 0.0
        %v1744 = vmax.f32 %v1722, 0.0
        %v1745 = vmax.f32 %v1727, 0.0
        %v1746 = vmax.f32 %v1732, 0.0
        %v1747 = vmax.f32 %v1737, 0.0
        %v1755 = vrot.slane %v1740, 1
        %v1756 = vsel %vm805, %v806, %v1755
        %v1757 = vrot.slane %v1741, 1
        %v1758 = vsel %vm805, %v1755, %v1757
        %v1759 = vrot.slane %v1742, 1
        %v1760 = vsel %vm805, %v1757, %v1759
        %v1761 = vrot.slane %v1743, 1
        %v1762 = vsel %vm805, %v1759, %v1761
        %v1763 = vrot.slane %v1744, 1
        %v1764 = vsel %vm805, %v1761, %v1763
        %v1765 = vrot.slane %v1745, 1
        %v1766 = vsel %vm805, %v1763, %v1765
        %v1767 = vrot.slane %v1746, 1
        %v1768 = vsel %vm805, %v1765, %v1767
        %1769 = vrot.lane.b32.xlu0 %v807, 32
        %v1770 = vpop.permute.xlu0 %1769
        %1771 = vrot.lane.b32.xlu0 %v1756, 32
        %v1772 = vpop.permute.xlu0 %1771
        %1773 = vrot.lane.b32.xlu0 %v1758, 32
        %v1774 = vpop.permute.xlu0 %1773
        %1775 = vrot.lane.b32.xlu0 %v1760, 32
        %v1776 = vpop.permute.xlu0 %1775
        %1777 = vrot.lane.b32.xlu0 %v1762, 32
        %v1778 = vpop.permute.xlu0 %1777
        %1779 = vrot.lane.b32.xlu0 %v1764, 32
        %v1780 = vpop.permute.xlu0 %1779
        %1781 = vrot.lane.b32.xlu0 %v1766, 32
        %v1782 = vpop.permute.xlu0 %1781
        %1783 = vrot.lane.b32.xlu0 %v1768, 32
        %v1784 = vpop.permute.xlu0 %1783
        %v1793 = vrot.slane %v1740, 2
        %v1794 = vsel %vm846, %v847, %v1793
        %v1795 = vrot.slane %v1741, 2
        %v1796 = vsel %vm846, %v1793, %v1795
        %v1797 = vrot.slane %v1742, 2
        %v1798 = vsel %vm846, %v1795, %v1797
        %v1799 = vrot.slane %v1743, 2
        %v1800 = vsel %vm846, %v1797, %v1799
        %v1801 = vrot.slane %v1744, 2
        %v1802 = vsel %vm846, %v1799, %v1801
        %v1803 = vrot.slane %v1745, 2
        %v1804 = vsel %vm846, %v1801, %v1803
        %v1805 = vrot.slane %v1746, 2
        %v1806 = vsel %vm846, %v1803, %v1805
        %1807 = vrot.lane.b32.xlu0 %v848, 64
        %v1808 = vpop.permute.xlu0 %1807
        %1809 = vrot.lane.b32.xlu0 %v1794, 64
        %v1810 = vpop.permute.xlu0 %1809
        %1811 = vrot.lane.b32.xlu0 %v1796, 64
        %v1812 = vpop.permute.xlu0 %1811
        %1813 = vrot.lane.b32.xlu0 %v1798, 64
        %v1814 = vpop.permute.xlu0 %1813
        %1815 = vrot.lane.b32.xlu0 %v1800, 64
        %v1816 = vpop.permute.xlu0 %1815
        %1817 = vrot.lane.b32.xlu0 %v1802, 64
        %v1818 = vpop.permute.xlu0 %1817
        %1819 = vrot.lane.b32.xlu0 %v1804, 64
        %v1820 = vpop.permute.xlu0 %1819
        %1821 = vrot.lane.b32.xlu0 %v1806, 64
        %v1822 = vpop.permute.xlu0 %1821
        %v1831 = vrot.slane %v1740, 3
        %v1832 = vsel %vm887, %v888, %v1831
        %v1833 = vrot.slane %v1741, 3
        %v1834 = vsel %vm887, %v1831, %v1833
        %v1835 = vrot.slane %v1742, 3
        %v1836 = vsel %vm887, %v1833, %v1835
        %v1837 = vrot.slane %v1743, 3
        %v1838 = vsel %vm887, %v1835, %v1837
        %v1839 = vrot.slane %v1744, 3
        %v1840 = vsel %vm887, %v1837, %v1839
        %v1841 = vrot.slane %v1745, 3
        %v1842 = vsel %vm887, %v1839, %v1841
        %v1843 = vrot.slane %v1746, 3
        %v1844 = vsel %vm887, %v1841, %v1843
        %1845 = vrot.lane.b32.xlu0 %v889, 96
        %v1846 = vpop.permute.xlu0 %1845
        %1847 = vrot.lane.b32.xlu0 %v1832, 96
        %v1848 = vpop.permute.xlu0 %1847
        %1849 = vrot.lane.b32.xlu0 %v1834, 96
        %v1850 = vpop.permute.xlu0 %1849
        %1851 = vrot.lane.b32.xlu0 %v1836, 96
        %v1852 = vpop.permute.xlu0 %1851
        %1853 = vrot.lane.b32.xlu0 %v1838, 96
        %v1854 = vpop.permute.xlu0 %1853
        %1855 = vrot.lane.b32.xlu0 %v1840, 96
        %v1856 = vpop.permute.xlu0 %1855
        %1857 = vrot.lane.b32.xlu0 %v1842, 96
        %v1858 = vpop.permute.xlu0 %1857
        %1859 = vrot.lane.b32.xlu0 %v1844, 96
        %v1860 = vpop.permute.xlu0 %1859
        %v1869 = vrot.slane %v1740, 4
        %v1870 = vsel %vm928, %v929, %v1869
        %v1871 = vrot.slane %v1741, 4
        %v1872 = vsel %vm928, %v1869, %v1871
        %v1873 = vrot.slane %v1742, 4
        %v1874 = vsel %vm928, %v1871, %v1873
        %v1875 = vrot.slane %v1743, 4
        %v1876 = vsel %vm928, %v1873, %v1875
        %v1877 = vrot.slane %v1744, 4
        %v1878 = vsel %vm928, %v1875, %v1877
        %v1879 = vrot.slane %v1745, 4
        %v1880 = vsel %vm928, %v1877, %v1879
        %v1881 = vrot.slane %v1746, 4
        %v1882 = vsel %vm928, %v1879, %v1881
        %v1891 = vrot.slane %v1740, 5
        %v1892 = vsel %vm969, %v970, %v1891
        %v1893 = vrot.slane %v1741, 5
        %v1894 = vsel %vm969, %v1891, %v1893
        %v1895 = vrot.slane %v1742, 5
        %v1896 = vsel %vm969, %v1893, %v1895
        %v1897 = vrot.slane %v1743, 5
        %v1898 = vsel %vm969, %v1895, %v1897
        %v1899 = vrot.slane %v1744, 5
        %v1900 = vsel %vm969, %v1897, %v1899
        %v1901 = vrot.slane %v1745, 5
        %v1902 = vsel %vm969, %v1899, %v1901
        %v1903 = vrot.slane %v1746, 5
        %v1904 = vsel %vm969, %v1901, %v1903
        %1905 = vrot.lane.b32.xlu0 %v971, 32
        %v1906 = vpop.permute.xlu0 %1905
        %1907 = vrot.lane.b32.xlu0 %v1892, 32
        %v1908 = vpop.permute.xlu0 %1907
        %1909 = vrot.lane.b32.xlu0 %v1894, 32
        %v1910 = vpop.permute.xlu0 %1909
        %1911 = vrot.lane.b32.xlu0 %v1896, 32
        %v1912 = vpop.permute.xlu0 %1911
        %1913 = vrot.lane.b32.xlu0 %v1898, 32
        %v1914 = vpop.permute.xlu0 %1913
        %1915 = vrot.lane.b32.xlu0 %v1900, 32
        %v1916 = vpop.permute.xlu0 %1915
        %1917 = vrot.lane.b32.xlu0 %v1902, 32
        %v1918 = vpop.permute.xlu0 %1917
        %1919 = vrot.lane.b32.xlu0 %v1904, 32
        %v1920 = vpop.permute.xlu0 %1919
        %v1929 = vrot.slane %v1740, 6
        %v1930 = vsel %vm1010, %v1011, %v1929
        %v1931 = vrot.slane %v1741, 6
        %v1932 = vsel %vm1010, %v1929, %v1931
        %v1933 = vrot.slane %v1742, 6
        %v1934 = vsel %vm1010, %v1931, %v1933
        %v1935 = vrot.slane %v1743, 6
        %v1936 = vsel %vm1010, %v1933, %v1935
        %v1937 = vrot.slane %v1744, 6
        %v1938 = vsel %vm1010, %v1935, %v1937
        %v1939 = vrot.slane %v1745, 6
        %v1940 = vsel %vm1010, %v1937, %v1939
        %v1941 = vrot.slane %v1746, 6
        %v1942 = vsel %vm1010, %v1939, %v1941
        %1943 = vrot.lane.b32.xlu0 %v1012, 64
        %v1944 = vpop.permute.xlu0 %1943
        %1945 = vrot.lane.b32.xlu0 %v1930, 64
        %v1946 = vpop.permute.xlu0 %1945
        %1947 = vrot.lane.b32.xlu0 %v1932, 64
        %v1948 = vpop.permute.xlu0 %1947
        %1949 = vrot.lane.b32.xlu0 %v1934, 64
        %v1950 = vpop.permute.xlu0 %1949
        %1951 = vrot.lane.b32.xlu0 %v1936, 64
        %v1952 = vpop.permute.xlu0 %1951
        %1953 = vrot.lane.b32.xlu0 %v1938, 64
        %v1954 = vpop.permute.xlu0 %1953
        %1955 = vrot.lane.b32.xlu0 %v1940, 64
        %v1956 = vpop.permute.xlu0 %1955
        %1957 = vrot.lane.b32.xlu0 %v1942, 64
        %v1958 = vpop.permute.xlu0 %1957
        %v1967 = vrot.slane %v1740, 7
        %v1968 = vsel %vm1051, %v1052, %v1967
        %v1969 = vrot.slane %v1741, 7
        %v1970 = vsel %vm1051, %v1967, %v1969
        %v1971 = vrot.slane %v1742, 7
        %v1972 = vsel %vm1051, %v1969, %v1971
        %v1973 = vrot.slane %v1743, 7
        %v1974 = vsel %vm1051, %v1971, %v1973
        %v1975 = vrot.slane %v1744, 7
        %v1976 = vsel %vm1051, %v1973, %v1975
        %v1977 = vrot.slane %v1745, 7
        %v1978 = vsel %vm1051, %v1975, %v1977
        %v1979 = vrot.slane %v1746, 7
        %v1980 = vsel %vm1051, %v1977, %v1979
        %1981 = vrot.lane.b32.xlu0 %v1053, 96
        %v1982 = vpop.permute.xlu0 %1981
        %1983 = vrot.lane.b32.xlu0 %v1968, 96
        %v1984 = vpop.permute.xlu0 %1983
        %1985 = vrot.lane.b32.xlu0 %v1970, 96
        %v1986 = vpop.permute.xlu0 %1985
        %1987 = vrot.lane.b32.xlu0 %v1972, 96
        %v1988 = vpop.permute.xlu0 %1987
        %1989 = vrot.lane.b32.xlu0 %v1974, 96
        %v1990 = vpop.permute.xlu0 %1989
        %1991 = vrot.lane.b32.xlu0 %v1976, 96
        %v1992 = vpop.permute.xlu0 %1991
        %1993 = vrot.lane.b32.xlu0 %v1978, 96
        %v1994 = vpop.permute.xlu0 %1993
        %1995 = vrot.lane.b32.xlu0 %v1980, 96
        %v1996 = vpop.permute.xlu0 %1995
        %v2006 = vrot.slane %v1747, 1
        %v2007 = vsel %vm805, %v1767, %v2006
        %2008 = vrot.lane.b32.xlu0 %v2007, 32
        %v2009 = vpop.permute.xlu0 %2008
        %v2011 = vrot.slane %v1747, 2
        %v2012 = vsel %vm846, %v1805, %v2011
        %2013 = vrot.lane.b32.xlu0 %v2012, 64
        %v2014 = vpop.permute.xlu0 %2013
        %v2016 = vrot.slane %v1747, 3
        %v2017 = vsel %vm887, %v1843, %v2016
        %2018 = vrot.lane.b32.xlu0 %v2017, 96
        %v2019 = vpop.permute.xlu0 %2018
        %v2021 = vrot.slane %v1747, 4
        %v2022 = vsel %vm928, %v1881, %v2021
        %v2024 = vrot.slane %v1747, 5
        %v2025 = vsel %vm969, %v1903, %v2024
        %2026 = vrot.lane.b32.xlu0 %v2025, 32
        %v2027 = vpop.permute.xlu0 %2026
        %v2029 = vrot.slane %v1747, 6
        %v2030 = vsel %vm1010, %v1941, %v2029
        %2031 = vrot.lane.b32.xlu0 %v2030, 64
        %v2032 = vpop.permute.xlu0 %2031
        %v2034 = vrot.slane %v1747, 7
        %v2035 = vsel %vm1051, %v1979, %v2034
        %2036 = vrot.lane.b32.xlu0 %v2035, 96
        %v2037 = vpop.permute.xlu0 %2036
        %v2039 = vsel %vm1610, 0.0, %v1770
        %v2040 = vsel %vm1610, 0.0, %v1772
        %v2041 = vsel %vm1610, %v1740, %v1774
        %v2042 = vsel %vm1610, %v1741, %v1776
        %v2043 = vsel %vm1610, %v1742, %v1778
        %v2044 = vsel %vm1610, %v1743, %v1780
        %v2045 = vsel %vm1610, %v1744, %v1782
        %v2046 = vsel %vm1610, %v1745, %v1784
        %vm2047 = vcmask 523264
        %v2048 = vsel %vm2047, %v2039, %v1808
        %v2049 = vsel %vm2047, %v2040, %v1810
        %v2050 = vsel %vm2047, %v2041, %v1812
        %v2051 = vsel %vm2047, %v2042, %v1814
        %v2052 = vsel %vm2047, %v2043, %v1816
        %v2053 = vsel %vm2047, %v2044, %v1818
        %v2054 = vsel %vm2047, %v2045, %v1820
        %v2055 = vsel %vm2047, %v2046, %v1822
        %vm2056 = vcmask 785408
        %v2057 = vsel %vm2056, %v2048, %v1846
        %v2058 = vsel %vm2056, %v2049, %v1848
        %v2059 = vsel %vm2056, %v2050, %v1850
        %v2060 = vsel %vm2056, %v2051, %v1852
        %v2061 = vsel %vm2056, %v2052, %v1854
        %v2062 = vsel %vm2056, %v2053, %v1856
        %v2063 = vsel %vm2056, %v2054, %v1858
        %v2064 = vsel %vm2056, %v2055, %v1860
        %v2065 = vsel %vm1610, %v930, %v1906
        %v2066 = vsel %vm1610, %v1870, %v1908
        %v2067 = vsel %vm1610, %v1872, %v1910
        %v2068 = vsel %vm1610, %v1874, %v1912
        %v2069 = vsel %vm1610, %v1876, %v1914
        %v2070 = vsel %vm1610, %v1878, %v1916
        %v2071 = vsel %vm1610, %v1880, %v1918
        %v2072 = vsel %vm1610, %v1882, %v1920
        %v2073 = vsel %vm2047, %v2065, %v1944
        %v2074 = vsel %vm2047, %v2066, %v1946
        %v2075 = vsel %vm2047, %v2067, %v1948
        %v2076 = vsel %vm2047, %v2068, %v1950
        %v2077 = vsel %vm2047, %v2069, %v1952
        %v2078 = vsel %vm2047, %v2070, %v1954
        %v2079 = vsel %vm2047, %v2071, %v1956
        %v2080 = vsel %vm2047, %v2072, %v1958
        %v2081 = vsel %vm2056, %v2073, %v1982
        %v2082 = vsel %vm2056, %v2074, %v1984
        %v2083 = vsel %vm2056, %v2075, %v1986
        %v2084 = vsel %vm2056, %v2076, %v1988
        %v2085 = vsel %vm2056, %v2077, %v1990
        %v2086 = vsel %vm2056, %v2078, %v1992
        %v2087 = vsel %vm2056, %v2079, %v1994
        %v2088 = vsel %vm2056, %v2080, %v1996
        %v2089 = vsel %vm1610, %v1746, %v2009
        %v2090 = vsel %vm2047, %v2089, %v2014
        %v2091 = vsel %vm2056, %v2090, %v2019
        %v2092 = vsel %vm1610, %v2022, %v2027
        %v2093 = vsel %vm2047, %v2092, %v2032
        %v2094 = vsel %vm2056, %v2093, %v2037
        %v2095 = vsel %vm805, %v2006, %v806
        %2096 = vrot.lane.b32.xlu0 %v2095, 32
        %v2097 = vpop.permute.xlu0 %2096
        %v2099 = vsel %vm846, %v2011, %v847
        %2100 = vrot.lane.b32.xlu0 %v2099, 64
        %v2101 = vpop.permute.xlu0 %2100
        %v2103 = vsel %vm887, %v2016, %v888
        %2104 = vrot.lane.b32.xlu0 %v2103, 96
        %v2105 = vpop.permute.xlu0 %2104
        %v2107 = vsel %vm928, %v2021, %v929
        %v2109 = vsel %vm969, %v2024, %v970
        %2110 = vrot.lane.b32.xlu0 %v2109, 32
        %v2111 = vpop.permute.xlu0 %2110
        %v2113 = vsel %vm1010, %v2029, %v1011
        %2114 = vrot.lane.b32.xlu0 %v2113, 64
        %v2115 = vpop.permute.xlu0 %2114
        %v2117 = vsel %vm1051, %v2034, %v1052
        %2118 = vrot.lane.b32.xlu0 %v2117, 96
        %v2119 = vpop.permute.xlu0 %2118
        %v2121 = vsel %vm1610, %v1747, %v2097
        %v2122 = vsel %vm2047, %v2121, %v2101
        %v2123 = vsel %vm2056, %v2122, %v2105
        %v2124 = vsel %vm1610, %v2107, %v2111
        %v2125 = vsel %vm2047, %v2124, %v2115
        %v2126 = vsel %vm2056, %v2125, %v2119
        %v2127 = vld [vmem:[%s3] sm:$0xff]
        %v2128 = vld [vmem:[%s3 + $0x8] sm:$0xff]
        %v2129 = vld [vmem:[%s3 + $0x10] sm:$0xff]
        %v2130 = vld [vmem:[%s3 + $0x18] sm:$0xff]
        %v2131 = vld [vmem:[%s3 + $0x20] sm:$0xff]
        %v2132 = vld [vmem:[%s3 + $0x28] sm:$0xff]
        %v2133 = vld [vmem:[%s3 + $0x30] sm:$0xff]
        %v2134 = vld [vmem:[%s3 + $0x38] sm:$0xff]
        %v2135 = vld [vmem:[%s3 + $0x40] sm:$0xff]
        %v2136 = vld [vmem:[%s3 + $0x48] sm:$0xff]
        %v2137 = vld [vmem:[%s3 + $0x50] sm:$0xff]
        %v2138 = vld [vmem:[%s3 + $0x58] sm:$0xff]
        %v2139 = vld [vmem:[%s3 + $0x60] sm:$0xff]
        %v2140 = vld [vmem:[%s3 + $0x68] sm:$0xff]
        %v2141 = vld [vmem:[%s3 + $0x70] sm:$0xff]
        %v2142 = vld [vmem:[%s3 + $0x78] sm:$0xff]
        %v2143 = vld [vmem:[%s3 + $0x80] sm:$0xff]
        %v2144 = vld [vmem:[%s3 + $0x88] sm:$0xff]
        %v2145 = vld [vmem:[%s3 + $0x90] sm:$0xff]
        %v2146 = vld [vmem:[%s3 + $0x98] sm:$0xff]
        %v2147 = vld [vmem:[%s3 + $0xa0] sm:$0xff]
        %v2148 = vld [vmem:[%s3 + $0xa8] sm:$0xff]
        %v2149 = vld [vmem:[%s3 + $0xb0] sm:$0xff]
        %v2150 = vld [vmem:[%s3 + $0xb8] sm:$0xff]
        %v2151 = vld [vmem:[%s3 + $0xc0] sm:$0xff]
        %v2152 = vld [vmem:[%s3 + $0xc8] sm:$0xff]
        %v2153 = vld [vmem:[%s3 + $0xd0] sm:$0xff]
        %v2154 = vld [vmem:[%s3 + $0xd8] sm:$0xff]
        %v2155 = vld [vmem:[%s3 + $0xe0] sm:$0xff]
        %v2156 = vld [vmem:[%s3 + $0xe8] sm:$0xff]
        %v2157 = vld [vmem:[%s3 + $0xf0] sm:$0xff]
        %v2158 = vld [vmem:[%s3 + $0xf8] sm:$0xff]
        %v2159 = vld [vmem:[%s3 + $0x100] sm:$0xff]
        %v2160 = vld [vmem:[%s3 + $0x108] sm:$0xff]
        %v2161 = vld [vmem:[%s3 + $0x110] sm:$0xff]
        %v2162 = vld [vmem:[%s3 + $0x118] sm:$0xff]
        %v2163 = vld [vmem:[%s3 + $0x120] sm:$0xff]
        %v2164 = vld [vmem:[%s3 + $0x128] sm:$0xff]
        %v2165 = vld [vmem:[%s3 + $0x130] sm:$0xff]
        %v2166 = vld [vmem:[%s3 + $0x138] sm:$0xff]
        %v2167 = vld [vmem:[%s3 + $0x140] sm:$0xff]
        %v2168 = vld [vmem:[%s3 + $0x148] sm:$0xff]
        %v2169 = vld [vmem:[%s3 + $0x150] sm:$0xff]
        %v2170 = vld [vmem:[%s3 + $0x158] sm:$0xff]
        %v2171 = vld [vmem:[%s3 + $0x160] sm:$0xff]
        %v2172 = vld [vmem:[%s3 + $0x168] sm:$0xff]
        %v2173 = vld [vmem:[%s3 + $0x170] sm:$0xff]
        %v2174 = vld [vmem:[%s3 + $0x178] sm:$0xff]
        %v2175 = vld [vmem:[%s3 + $0x180] sm:$0xff]
        %v2176 = vld [vmem:[%s3 + $0x188] sm:$0xff]
        %v2177 = vld [vmem:[%s3 + $0x190] sm:$0xff]
        %v2178 = vld [vmem:[%s3 + $0x198] sm:$0xff]
        %v2179 = vld [vmem:[%s3 + $0x1a0] sm:$0xff]
        %v2180 = vld [vmem:[%s3 + $0x1a8] sm:$0xff]
        %v2181 = vld [vmem:[%s3 + $0x1b0] sm:$0xff]
        %v2182 = vld [vmem:[%s3 + $0x1b8] sm:$0xff]
        %v2183 = vld [vmem:[%s3 + $0x1c0] sm:$0xff]
        %v2184 = vld [vmem:[%s3 + $0x1c8] sm:$0xff]
        %v2185 = vld [vmem:[%s3 + $0x1d0] sm:$0xff]
        %v2186 = vld [vmem:[%s3 + $0x1d8] sm:$0xff]
        %v2187 = vld [vmem:[%s3 + $0x1e0] sm:$0xff]
        %v2188 = vld [vmem:[%s3 + $0x1e8] sm:$0xff]
        %v2189 = vld [vmem:[%s3 + $0x1f0] sm:$0xff]
        %v2190 = vld [vmem:[%s3 + $0x1f8] sm:$0xff]
        %v2191 = vld [vmem:[%s3 + $0x200] sm:$0xff]
        %v2192 = vld [vmem:[%s3 + $0x208] sm:$0xff]
        %v2193 = vld [vmem:[%s3 + $0x210] sm:$0xff]
        %v2194 = vld [vmem:[%s3 + $0x218] sm:$0xff]
        %v2195 = vld [vmem:[%s3 + $0x220] sm:$0xff]
        %v2196 = vld [vmem:[%s3 + $0x228] sm:$0xff]
        %v2197 = vld [vmem:[%s3 + $0x230] sm:$0xff]
        %v2198 = vld [vmem:[%s3 + $0x238] sm:$0xff]
        %v2199 = vld [vmem:[%s3 + $0x240] sm:$0xff]
        %v2200 = vld [vmem:[%s3 + $0x248] sm:$0xff]
        %v2201 = vld [vmem:[%s3 + $0x250] sm:$0xff]
        %v2202 = vld [vmem:[%s3 + $0x258] sm:$0xff]
        %v2203 = vld [vmem:[%s3 + $0x260] sm:$0xff]
        %v2204 = vld [vmem:[%s3 + $0x268] sm:$0xff]
        %v2205 = vld [vmem:[%s3 + $0x270] sm:$0xff]
        %v2206 = vld [vmem:[%s3 + $0x278] sm:$0xff]
        %v2207 = vld [vmem:[%s3 + $0x280] sm:$0xff]
        %v2208 = vld [vmem:[%s3 + $0x288] sm:$0xff]
        %v2209 = vld [vmem:[%s3 + $0x290] sm:$0xff]
        %v2210 = vld [vmem:[%s3 + $0x298] sm:$0xff]
        %v2211 = vld [vmem:[%s3 + $0x2a0] sm:$0xff]
        %v2212 = vld [vmem:[%s3 + $0x2a8] sm:$0xff]
        %v2213 = vld [vmem:[%s3 + $0x2b0] sm:$0xff]
        %v2214 = vld [vmem:[%s3 + $0x2b8] sm:$0xff]
        %v2215 = vld [vmem:[%s3 + $0x2c0] sm:$0xff]
        %v2216 = vld [vmem:[%s3 + $0x2c8] sm:$0xff]
        %v2217 = vld [vmem:[%s3 + $0x2d0] sm:$0xff]
        %v2218 = vld [vmem:[%s3 + $0x2d8] sm:$0xff]
        %v2219 = vld [vmem:[%s3 + $0x2e0] sm:$0xff]
        %v2220 = vld [vmem:[%s3 + $0x2e8] sm:$0xff]
        %v2221 = vld [vmem:[%s3 + $0x2f0] sm:$0xff]
        %v2222 = vld [vmem:[%s3 + $0x2f8] sm:$0xff]
        %v2223 = vld [vmem:[%s3 + $0x300] sm:$0xff]
        %v2224 = vld [vmem:[%s3 + $0x308] sm:$0xff]
        %v2225 = vld [vmem:[%s3 + $0x310] sm:$0xff]
        %v2226 = vld [vmem:[%s3 + $0x318] sm:$0xff]
        %v2227 = vld [vmem:[%s3 + $0x320] sm:$0xff]
        %v2228 = vld [vmem:[%s3 + $0x328] sm:$0xff]
        %v2229 = vld [vmem:[%s3 + $0x330] sm:$0xff]
        %v2230 = vld [vmem:[%s3 + $0x338] sm:$0xff]
        %v2231 = vld [vmem:[%s3 + $0x340] sm:$0xff]
        %v2232 = vld [vmem:[%s3 + $0x348] sm:$0xff]
        %v2233 = vld [vmem:[%s3 + $0x350] sm:$0xff]
        %v2234 = vld [vmem:[%s3 + $0x358] sm:$0xff]
        %v2235 = vld [vmem:[%s3 + $0x360] sm:$0xff]
        %v2236 = vld [vmem:[%s3 + $0x368] sm:$0xff]
        %v2237 = vld [vmem:[%s3 + $0x370] sm:$0xff]
        %v2238 = vld [vmem:[%s3 + $0x378] sm:$0xff]
        %v2239 = vld [vmem:[%s3 + $0x380] sm:$0xff]
        %v2240 = vld [vmem:[%s3 + $0x388] sm:$0xff]
        %v2241 = vld [vmem:[%s3 + $0x390] sm:$0xff]
        %v2242 = vld [vmem:[%s3 + $0x398] sm:$0xff]
        %v2243 = vld [vmem:[%s3 + $0x3a0] sm:$0xff]
        %v2244 = vld [vmem:[%s3 + $0x3a8] sm:$0xff]
        %v2245 = vld [vmem:[%s3 + $0x3b0] sm:$0xff]
        %v2246 = vld [vmem:[%s3 + $0x3b8] sm:$0xff]
        %v2247 = vld [vmem:[%s3 + $0x3c0] sm:$0xff]
        %v2248 = vld [vmem:[%s3 + $0x3c8] sm:$0xff]
        %v2249 = vld [vmem:[%s3 + $0x3d0] sm:$0xff]
        %v2250 = vld [vmem:[%s3 + $0x3d8] sm:$0xff]
        %v2251 = vld [vmem:[%s3 + $0x3e0] sm:$0xff]
        %v2252 = vld [vmem:[%s3 + $0x3e8] sm:$0xff]
        %v2253 = vld [vmem:[%s3 + $0x3f0] sm:$0xff]
        %v2254 = vld [vmem:[%s3 + $0x3f8] sm:$0xff]
        %v2255 = vld [vmem:[%s4] sm:$0x1]
        %v2257 = vlaneseq
        %v2258 = vshrl.u32 %v2257, 7
        %v2259 = vsub.s32 0, %v2258
        %v2260 = vrot.slane %v2255, %v2259
        %2262 = vmatprep.subr.mxu0 0.0
        %2263 = vmatpush1.msra.mxu0 %v2127
        %2264 = vmatprep.subr.mxu0 0.0
        %2265 = vmatpush1.msra.mxu0 %v2128
        %2266 = vmatprep.subr.mxu0 0.0
        %2267 = vmatpush1.msra.mxu0 %v2129
        %2268 = vmatprep.subr.mxu0 0.0
        %2269 = vmatpush1.msra.mxu0 %v2130
        %2270 = vmatprep.subr.mxu0 0.0
        %2271 = vmatpush1.msra.mxu0 %v2131
        %2272 = vmatprep.subr.mxu0 0.0
        %2273 = vmatpush1.msra.mxu0 %v2132
        %2274 = vmatprep.subr.mxu0 0.0
        %2275 = vmatpush1.msra.mxu0 %v2133
        %2276 = vmatprep.subr.mxu0 0.0
        %2277 = vmatpush1.msra.mxu0 %v2134
        %2278 = vmatprep.subr.mxu0 0.0
        %2279 = vmatpush1.msra.mxu0 %v2135
        %2280 = vmatprep.subr.mxu0 0.0
        %2281 = vmatpush1.msra.mxu0 %v2136
        %2282 = vmatprep.subr.mxu0 0.0
        %2283 = vmatpush1.msra.mxu0 %v2137
        %2284 = vmatprep.subr.mxu0 0.0
        %2285 = vmatpush1.msra.mxu0 %v2138
        %2286 = vmatprep.subr.mxu0 0.0
        %2287 = vmatpush1.msra.mxu0 %v2139
        %2288 = vmatprep.subr.mxu0 0.0
        %2289 = vmatpush1.msra.mxu0 %v2140
        %2290 = vmatprep.subr.mxu0 0.0
        %2291 = vmatpush1.msra.mxu0 %v2141
        %2292 = vmatprep.subr.mxu0 0.0
        %2293 = vmatpush1.msra.mxu0 %v2142
        %2294 = vmatprep.subr.mxu0 0.0
        %2295 = vmatpush1.msra.mxu0 %v2143
        %2296 = vmatprep.subr.mxu0 0.0
        %2297 = vmatpush1.msra.mxu0 %v2144
        %2298 = vmatprep.subr.mxu0 0.0
        %2299 = vmatpush1.msra.mxu0 %v2145
        %2300 = vmatprep.subr.mxu0 0.0
        %2301 = vmatpush1.msra.mxu0 %v2146
        %2302 = vmatprep.subr.mxu0 0.0
        %2303 = vmatpush1.msra.mxu0 %v2147
        %2304 = vmatprep.subr.mxu0 0.0
        %2305 = vmatpush1.msra.mxu0 %v2148
        %2306 = vmatprep.subr.mxu0 0.0
        %2307 = vmatpush1.msra.mxu0 %v2149
        %2308 = vmatprep.subr.mxu0 0.0
        %2309 = vmatpush1.msra.mxu0 %v2150
        %2310 = vmatprep.subr.mxu0 0.0
        %2311 = vmatpush1.msra.mxu0 %v2151
        %2312 = vmatprep.subr.mxu0 0.0
        %2313 = vmatpush1.msra.mxu0 %v2152
        %2314 = vmatprep.subr.mxu0 0.0
        %2315 = vmatpush1.msra.mxu0 %v2153
        %2316 = vmatprep.subr.mxu0 0.0
        %2317 = vmatpush1.msra.mxu0 %v2154
        %2318 = vmatprep.subr.mxu0 0.0
        %2319 = vmatpush1.msra.mxu0 %v2155
        %2320 = vmatprep.subr.mxu0 0.0
        %2321 = vmatpush1.msra.mxu0 %v2156
        %2322 = vmatprep.subr.mxu0 0.0
        %2323 = vmatpush1.msra.mxu0 %v2157
        %2324 = vmatprep.subr.mxu0 0.0
        %2325 = vmatpush1.msra.mxu0 %v2158
        %2326 = vmatprep.mubr.f32.mxu0 %v2081
        %2327 = vmatmul.mubr.f32.gmra.mrb[0].mxu0 %v2057
        %v2328 = vpop.f32.mrb[0].mxu0
        %v2329 = vadd.f32 %v2260, %v2328
        %v2330 = vpop.f32.mrb[0].mxu0
        %2331 = vmatprep.mubr.f32.mxu0 %v2082
        %2332 = vmatmul.mubr.f32.gmra.mrb[0].mxu0 %v2058
        %v2333 = vpop.f32.mrb[0].mxu0
        %v2334 = vadd.f32 %v2260, %v2333
        %v2335 = vpop.f32.mrb[0].mxu0
        %2336 = vmatprep.mubr.f32.mxu0 %v2083
        %2337 = vmatmul.mubr.f32.gmra.mrb[0].mxu0 %v2059
        %v2338 = vpop.f32.mrb[0].mxu0
        %v2339 = vadd.f32 %v2260, %v2338
        %v2340 = vpop.f32.mrb[0].mxu0
        %2341 = vmatprep.mubr.f32.mxu0 %v2084
        %2342 = vmatmul.mubr.f32.gmra.mrb[0].mxu0 %v2060
        %v2343 = vpop.f32.mrb[0].mxu0
        %v2344 = vadd.f32 %v2260, %v2343
        %v2345 = vpop.f32.mrb[0].mxu0
        %2346 = vmatprep.mubr.f32.mxu0 %v2085
        %2347 = vmatmul.mubr.f32.gmra.mrb[0].mxu0 %v2061
        %v2348 = vpop.f32.mrb[0].mxu0
        %v2349 = vadd.f32 %v2260, %v2348
        %v2350 = vpop.f32.mrb[0].mxu0
        %2351 = vmatprep.mubr.f32.mxu0 %v2086
        %2352 = vmatmul.mubr.f32.gmra.mrb[0].mxu0 %v2062
        %v2353 = vpop.f32.mrb[0].mxu0
        %v2354 = vadd.f32 %v2260, %v2353
        %v2355 = vpop.f32.mrb[0].mxu0
        %2356 = vmatprep.mubr.f32.mxu0 %v2087
        %2357 = vmatmul.mubr.f32.gmra.mrb[0].mxu0 %v2063
        %v2358 = vpop.f32.mrb[0].mxu0
        %v2359 = vadd.f32 %v2260, %v2358
        %v2360 = vpop.f32.mrb[0].mxu0
        %2361 = vmatprep.mubr.f32.mxu0 %v2088
        %2362 = vmatmul.mubr.f32.gmra.mrb[0].mxu0 %v2064
        %v2363 = vpop.f32.mrb[0].mxu0
        %v2364 = vadd.f32 %v2260, %v2363
        %v2365 = vpop.f32.mrb[0].mxu0
        %2366 = vdwg.mxu0
        %2367 = vmatprep.subr.mxu0 0.0
        %2368 = vmatpush1.msra.mxu0 %v2159
        %2369 = vmatprep.subr.mxu0 0.0
        %2370 = vmatpush1.msra.mxu0 %v2160
        %2371 = vmatprep.subr.mxu0 0.0
        %2372 = vmatpush1.msra.mxu0 %v2161
        %2373 = vmatprep.subr.mxu0 0.0
        %2374 = vmatpush1.msra.mxu0 %v2162
        %2375 = vmatprep.subr.mxu0 0.0
        %2376 = vmatpush1.msra.mxu0 %v2163
        %2377 = vmatprep.subr.mxu0 0.0
        %2378 = vmatpush1.msra.mxu0 %v2164
        %2379 = vmatprep.subr.mxu0 0.0
        %2380 = vmatpush1.msra.mxu0 %v2165
        %2381 = vmatprep.subr.mxu0 0.0
        %2382 = vmatpush1.msra.mxu0 %v2166
        %2383 = vmatprep.subr.mxu0 0.0
        %2384 = vmatpush1.msra.mxu0 %v2167
        %2385 = vmatprep.subr.mxu0 0.0
        %2386 = vmatpush1.msra.mxu0 %v2168
        %2387 = vmatprep.subr.mxu0 0.0
        %2388 = vmatpush1.msra.mxu0 %v2169
        %2389 = vmatprep.subr.mxu0 0.0
        %2390 = vmatpush1.msra.mxu0 %v2170
        %2391 = vmatprep.subr.mxu0 0.0
        %2392 = vmatpush1.msra.mxu0 %v2171
        %2393 = vmatprep.subr.mxu0 0.0
        %2394 = vmatpush1.msra.mxu0 %v2172
        %2395 = vmatprep.subr.mxu0 0.0
        %2396 = vmatpush1.msra.mxu0 %v2173
        %2397 = vmatprep.subr.mxu0 0.0
        %2398 = vmatpush1.msra.mxu0 %v2174
        %2399 = vmatprep.subr.mxu0 0.0
        %2400 = vmatpush1.msra.mxu0 %v2175
        %2401 = vmatprep.subr.mxu0 0.0
        %2402 = vmatpush1.msra.mxu0 %v2176
        %2403 = vmatprep.subr.mxu0 0.0
        %2404 = vmatpush1.msra.mxu0 %v2177
        %2405 = vmatprep.subr.mxu0 0.0
        %2406 = vmatpush1.msra.mxu0 %v2178
        %2407 = vmatprep.subr.mxu0 0.0
        %2408 = vmatpush1.msra.mxu0 %v2179
        %2409 = vmatprep.subr.mxu0 0.0
        %2410 = vmatpush1.msra.mxu0 %v2180
        %2411 = vmatprep.subr.mxu0 0.0
        %2412 = vmatpush1.msra.mxu0 %v2181
        %2413 = vmatprep.subr.mxu0 0.0
        %2414 = vmatpush1.msra.mxu0 %v2182
        %2415 = vmatprep.subr.mxu0 0.0
        %2416 = vmatpush1.msra.mxu0 %v2183
        %2417 = vmatprep.subr.mxu0 0.0
        %2418 = vmatpush1.msra.mxu0 %v2184
        %2419 = vmatprep.subr.mxu0 0.0
        %2420 = vmatpush1.msra.mxu0 %v2185
        %2421 = vmatprep.subr.mxu0 0.0
        %2422 = vmatpush1.msra.mxu0 %v2186
        %2423 = vmatprep.subr.mxu0 0.0
        %2424 = vmatpush1.msra.mxu0 %v2187
        %2425 = vmatprep.subr.mxu0 0.0
        %2426 = vmatpush1.msra.mxu0 %v2188
        %2427 = vmatprep.subr.mxu0 0.0
        %2428 = vmatpush1.msra.mxu0 %v2189
        %2429 = vmatprep.subr.mxu0 0.0
        %2430 = vmatpush1.msra.mxu0 %v2190
        %2431 = vmatprep.mubr.f32.mxu0 %v2082
        %2432 = vmatmul.mubr.f32.gmra.mrb[0].mxu0 %v2058
        %v2433 = vpop.f32.mrb[0].mxu0
        %v2434 = vadd.f32 %v2329, %v2433
        %v2435 = vpop.f32.mrb[0].mxu0
        %2436 = vmatprep.mubr.f32.mxu0 %v2083
        %2437 = vmatmul.mubr.f32.gmra.mrb[0].mxu0 %v2059
        %v2438 = vpop.f32.mrb[0].mxu0
        %v2439 = vadd.f32 %v2334, %v2438
        %v2440 = vpop.f32.mrb[0].mxu0
        %2441 = vmatprep.mubr.f32.mxu0 %v2084
        %2442 = vmatmul.mubr.f32.gmra.mrb[0].mxu0 %v2060
        %v2443 = vpop.f32.mrb[0].mxu0
        %v2444 = vadd.f32 %v2339, %v2443
        %v2445 = vpop.f32.mrb[0].mxu0
        %2446 = vmatprep.mubr.f32.mxu0 %v2085
        %2447 = vmatmul.mubr.f32.gmra.mrb[0].mxu0 %v2061
        %v2448 = vpop.f32.mrb[0].mxu0
        %v2449 = vadd.f32 %v2344, %v2448
        %v2450 = vpop.f32.mrb[0].mxu0
        %2451 = vmatprep.mubr.f32.mxu0 %v2086
        %2452 = vmatmul.mubr.f32.gmra.mrb[0].mxu0 %v2062
        %v2453 = vpop.f32.mrb[0].mxu0
        %v2454 = vadd.f32 %v2349, %v2453
        %v2455 = vpop.f32.mrb[0].mxu0
        %2456 = vmatprep.mubr.f32.mxu0 %v2087
        %2457 = vmatmul.mubr.f32.gmra.mrb[0].mxu0 %v2063
        %v2458 = vpop.f32.mrb[0].mxu0
        %v2459 = vadd.f32 %v2354, %v2458
        %v2460 = vpop.f32.mrb[0].mxu0
        %2461 = vmatprep.mubr.f32.mxu0 %v2088
        %2462 = vmatmul.mubr.f32.gmra.mrb[0].mxu0 %v2064
        %v2463 = vpop.f32.mrb[0].mxu0
        %v2464 = vadd.f32 %v2359, %v2463
        %v2465 = vpop.f32.mrb[0].mxu0
        %2466 = vmatprep.mubr.f32.mxu0 %v2094
        %2467 = vmatmul.mubr.f32.gmra.mrb[0].mxu0 %v2091
        %v2468 = vpop.f32.mrb[0].mxu0
        %v2469 = vadd.f32 %v2364, %v2468
        %v2470 = vpop.f32.mrb[0].mxu0
        %2471 = vdwg.mxu0
        %2472 = vmatprep.subr.mxu0 0.0
        %2473 = vmatpush1.msra.mxu0 %v2191
        %2474 = vmatprep.subr.mxu0 0.0
        %2475 = vmatpush1.msra.mxu0 %v2192
        %2476 = vmatprep.subr.mxu0 0.0
        %2477 = vmatpush1.msra.mxu0 %v2193
        %2478 = vmatprep.subr.mxu0 0.0
        %2479 = vmatpush1.msra.mxu0 %v2194
        %2480 = vmatprep.subr.mxu0 0.0
        %2481 = vmatpush1.msra.mxu0 %v2195
        %2482 = vmatprep.subr.mxu0 0.0
        %2483 = vmatpush1.msra.mxu0 %v2196
        %2484 = vmatprep.subr.mxu0 0.0
        %2485 = vmatpush1.msra.mxu0 %v2197
        %2486 = vmatprep.subr.mxu0 0.0
        %2487 = vmatpush1.msra.mxu0 %v2198
        %2488 = vmatprep.subr.mxu0 0.0
        %2489 = vmatpush1.msra.mxu0 %v2199
        %2490 = vmatprep.subr.mxu0 0.0
        %2491 = vmatpush1.msra.mxu0 %v2200
        %2492 = vmatprep.subr.mxu0 0.0
        %2493 = vmatpush1.msra.mxu0 %v2201
        %2494 = vmatprep.subr.mxu0 0.0
        %2495 = vmatpush1.msra.mxu0 %v2202
        %2496 = vmatprep.subr.mxu0 0.0
        %2497 = vmatpush1.msra.mxu0 %v2203
        %2498 = vmatprep.subr.mxu0 0.0
        %2499 = vmatpush1.msra.mxu0 %v2204
        %2500 = vmatprep.subr.mxu0 0.0
        %2501 = vmatpush1.msra.mxu0 %v2205
        %2502 = vmatprep.subr.mxu0 0.0
        %2503 = vmatpush1.msra.mxu0 %v2206
        %2504 = vmatprep.subr.mxu0 0.0
        %2505 = vmatpush1.msra.mxu0 %v2207
        %2506 = vmatprep.subr.mxu0 0.0
        %2507 = vmatpush1.msra.mxu0 %v2208
        %2508 = vmatprep.subr.mxu0 0.0
        %2509 = vmatpush1.msra.mxu0 %v2209
        %2510 = vmatprep.subr.mxu0 0.0
        %2511 = vmatpush1.msra.mxu0 %v2210
        %2512 = vmatprep.subr.mxu0 0.0
        %2513 = vmatpush1.msra.mxu0 %v2211
        %2514 = vmatprep.subr.mxu0 0.0
        %2515 = vmatpush1.msra.mxu0 %v2212
        %2516 = vmatprep.subr.mxu0 0.0
        %2517 = vmatpush1.msra.mxu0 %v2213
        %2518 = vmatprep.subr.mxu0 0.0
        %2519 = vmatpush1.msra.mxu0 %v2214
        %2520 = vmatprep.subr.mxu0 0.0
        %2521 = vmatpush1.msra.mxu0 %v2215
        %2522 = vmatprep.subr.mxu0 0.0
        %2523 = vmatpush1.msra.mxu0 %v2216
        %2524 = vmatprep.subr.mxu0 0.0
        %2525 = vmatpush1.msra.mxu0 %v2217
        %2526 = vmatprep.subr.mxu0 0.0
        %2527 = vmatpush1.msra.mxu0 %v2218
        %2528 = vmatprep.subr.mxu0 0.0
        %2529 = vmatpush1.msra.mxu0 %v2219
        %2530 = vmatprep.subr.mxu0 0.0
        %2531 = vmatpush1.msra.mxu0 %v2220
        %2532 = vmatprep.subr.mxu0 0.0
        %2533 = vmatpush1.msra.mxu0 %v2221
        %2534 = vmatprep.subr.mxu0 0.0
        %2535 = vmatpush1.msra.mxu0 %v2222
        %2536 = vmatprep.mubr.f32.mxu0 %v2083
        %2537 = vmatmul.mubr.f32.gmra.mrb[0].mxu0 %v2059
        %v2538 = vpop.f32.mrb[0].mxu0
        %v2539 = vadd.f32 %v2434, %v2538
        %v2540 = vpop.f32.mrb[0].mxu0
        %2541 = vmatprep.mubr.f32.mxu0 %v2084
        %2542 = vmatmul.mubr.f32.gmra.mrb[0].mxu0 %v2060
        %v2543 = vpop.f32.mrb[0].mxu0
        %v2544 = vadd.f32 %v2439, %v2543
        %v2545 = vpop.f32.mrb[0].mxu0
        %2546 = vmatprep.mubr.f32.mxu0 %v2085
        %2547 = vmatmul.mubr.f32.gmra.mrb[0].mxu0 %v2061
        %v2548 = vpop.f32.mrb[0].mxu0
        %v2549 = vadd.f32 %v2444, %v2548
        %v2550 = vpop.f32.mrb[0].mxu0
        %2551 = vmatprep.mubr.f32.mxu0 %v2086
        %2552 = vmatmul.mubr.f32.gmra.mrb[0].mxu0 %v2062
        %v2553 = vpop.f32.mrb[0].mxu0
        %v2554 = vadd.f32 %v2449, %v2553
        %v2555 = vpop.f32.mrb[0].mxu0
        %2556 = vmatprep.mubr.f32.mxu0 %v2087
        %2557 = vmatmul.mubr.f32.gmra.mrb[0].mxu0 %v2063
        %v2558 = vpop.f32.mrb[0].mxu0
        %v2559 = vadd.f32 %v2454, %v2558
        %v2560 = vpop.f32.mrb[0].mxu0
        %2561 = vmatprep.mubr.f32.mxu0 %v2088
        %2562 = vmatmul.mubr.f32.gmra.mrb[0].mxu0 %v2064
        %v2563 = vpop.f32.mrb[0].mxu0
        %v2564 = vadd.f32 %v2459, %v2563
        %v2565 = vpop.f32.mrb[0].mxu0
        %2566 = vmatprep.mubr.f32.mxu0 %v2094
        %2567 = vmatmul.mubr.f32.gmra.mrb[0].mxu0 %v2091
        %v2568 = vpop.f32.mrb[0].mxu0
        %v2569 = vadd.f32 %v2464, %v2568
        %v2570 = vpop.f32.mrb[0].mxu0
        %2571 = vmatprep.mubr.f32.mxu0 %v2126
        %2572 = vmatmul.mubr.f32.gmra.mrb[0].mxu0 %v2123
        %v2573 = vpop.f32.mrb[0].mxu0
        %v2574 = vadd.f32 %v2469, %v2573
        %v2575 = vpop.f32.mrb[0].mxu0
        %2576 = vdwg.mxu0
        %2577 = vmatprep.subr.mxu0 0.0
        %2578 = vmatpush1.msra.mxu0 %v2223
        %2579 = vmatprep.subr.mxu0 0.0
        %2580 = vmatpush1.msra.mxu0 %v2224
        %2581 = vmatprep.subr.mxu0 0.0
        %2582 = vmatpush1.msra.mxu0 %v2225
        %2583 = vmatprep.subr.mxu0 0.0
        %2584 = vmatpush1.msra.mxu0 %v2226
        %2585 = vmatprep.subr.mxu0 0.0
        %2586 = vmatpush1.msra.mxu0 %v2227
        %2587 = vmatprep.subr.mxu0 0.0
        %2588 = vmatpush1.msra.mxu0 %v2228
        %2589 = vmatprep.subr.mxu0 0.0
        %2590 = vmatpush1.msra.mxu0 %v2229
        %2591 = vmatprep.subr.mxu0 0.0
        %2592 = vmatpush1.msra.mxu0 %v2230
        %2593 = vmatprep.subr.mxu0 0.0
        %2594 = vmatpush1.msra.mxu0 %v2231
        %2595 = vmatprep.subr.mxu0 0.0
        %2596 = vmatpush1.msra.mxu0 %v2232
        %2597 = vmatprep.subr.mxu0 0.0
        %2598 = vmatpush1.msra.mxu0 %v2233
        %2599 = vmatprep.subr.mxu0 0.0
        %2600 = vmatpush1.msra.mxu0 %v2234
        %2601 = vmatprep.subr.mxu0 0.0
        %2602 = vmatpush1.msra.mxu0 %v2235
        %2603 = vmatprep.subr.mxu0 0.0
        %2604 = vmatpush1.msra.mxu0 %v2236
        %2605 = vmatprep.subr.mxu0 0.0
        %2606 = vmatpush1.msra.mxu0 %v2237
        %2607 = vmatprep.subr.mxu0 0.0
        %2608 = vmatpush1.msra.mxu0 %v2238
        %2609 = vmatprep.subr.mxu0 0.0
        %2610 = vmatpush1.msra.mxu0 %v2239
        %2611 = vmatprep.subr.mxu0 0.0
        %2612 = vmatpush1.msra.mxu0 %v2240
        %2613 = vmatprep.subr.mxu0 0.0
        %2614 = vmatpush1.msra.mxu0 %v2241
        %2615 = vmatprep.subr.mxu0 0.0
        %2616 = vmatpush1.msra.mxu0 %v2242
        %2617 = vmatprep.subr.mxu0 0.0
        %2618 = vmatpush1.msra.mxu0 %v2243
        %2619 = vmatprep.subr.mxu0 0.0
        %2620 = vmatpush1.msra.mxu0 %v2244
        %2621 = vmatprep.subr.mxu0 0.0
        %2622 = vmatpush1.msra.mxu0 %v2245
        %2623 = vmatprep.subr.mxu0 0.0
        %2624 = vmatpush1.msra.mxu0 %v2246
        %2625 = vmatprep.subr.mxu0 0.0
        %2626 = vmatpush1.msra.mxu0 %v2247
        %2627 = vmatprep.subr.mxu0 0.0
        %2628 = vmatpush1.msra.mxu0 %v2248
        %2629 = vmatprep.subr.mxu0 0.0
        %2630 = vmatpush1.msra.mxu0 %v2249
        %2631 = vmatprep.subr.mxu0 0.0
        %2632 = vmatpush1.msra.mxu0 %v2250
        %2633 = vmatprep.subr.mxu0 0.0
        %2634 = vmatpush1.msra.mxu0 %v2251
        %2635 = vmatprep.subr.mxu0 0.0
        %2636 = vmatpush1.msra.mxu0 %v2252
        %2637 = vmatprep.subr.mxu0 0.0
        %2638 = vmatpush1.msra.mxu0 %v2253
        %2639 = vmatprep.subr.mxu0 0.0
        %2640 = vmatpush1.msra.mxu0 %v2254
        %2641 = vmatprep.mubr.f32.mxu0 %v2084
        %2642 = vmatmul.mubr.f32.gmra.mrb[0].mxu0 %v2060
        %v2643 = vpop.f32.mrb[0].mxu0
        %v2644 = vadd.f32 %v2539, %v2643
        %v2645 = vpop.f32.mrb[0].mxu0
        %2646 = vmatprep.mubr.f32.mxu0 %v2085
        %2647 = vmatmul.mubr.f32.gmra.mrb[0].mxu0 %v2061
        %v2648 = vpop.f32.mrb[0].mxu0
        %v2649 = vadd.f32 %v2544, %v2648
        %v2650 = vpop.f32.mrb[0].mxu0
        %2651 = vmatprep.mubr.f32.mxu0 %v2086
        %2652 = vmatmul.mubr.f32.gmra.mrb[0].mxu0 %v2062
        %v2653 = vpop.f32.mrb[0].mxu0
        %v2654 = vadd.f32 %v2549, %v2653
        %v2655 = vpop.f32.mrb[0].mxu0
        %2656 = vmatprep.mubr.f32.mxu0 %v2087
        %2657 = vmatmul.mubr.f32.gmra.mrb[0].mxu0 %v2063
        %v2658 = vpop.f32.mrb[0].mxu0
        %v2659 = vadd.f32 %v2554, %v2658
        %v2660 = vpop.f32.mrb[0].mxu0
        %2661 = vmatprep.mubr.f32.mxu0 %v2088
        %2662 = vmatmul.mubr.f32.gmra.mrb[0].mxu0 %v2064
        %v2663 = vpop.f32.mrb[0].mxu0
        %v2664 = vadd.f32 %v2559, %v2663
        %v2665 = vpop.f32.mrb[0].mxu0
        %2666 = vmatprep.mubr.f32.mxu0 %v2094
        %2667 = vmatmul.mubr.f32.gmra.mrb[0].mxu0 %v2091
        %v2668 = vpop.f32.mrb[0].mxu0
        %v2669 = vadd.f32 %v2564, %v2668
        %v2670 = vpop.f32.mrb[0].mxu0
        %2671 = vmatprep.mubr.f32.mxu0 %v2126
        %2672 = vmatmul.mubr.f32.gmra.mrb[0].mxu0 %v2123
        %v2673 = vpop.f32.mrb[0].mxu0
        %v2674 = vadd.f32 %v2569, %v2673
        %v2675 = vpop.f32.mrb[0].mxu0
        %2676 = vmatprep.mubr.f32.mxu0 %v2081
        %2677 = vmatmul.mubr.f32.gmra.mrb[0].mxu0 %v2057
        %v2678 = vpop.f32.mrb[0].mxu0
        %v2679 = vadd.f32 %v2574, %v2678
        %v2680 = vpop.f32.mrb[0].mxu0
        %2681 = vdwg.mxu0
        %v2682 = vmax.f32 %v2644, 0.0
        %v2683 = vmax.f32 %v2649, 0.0
        %v2684 = vmax.f32 %v2654, 0.0
        %v2685 = vmax.f32 %v2659, 0.0
        %v2686 = vmax.f32 %v2664, 0.0
        %v2687 = vmax.f32 %v2669, 0.0
        %v2688 = vmax.f32 %v2674, 0.0
        %v2689 = vmax.f32 %v2679, 0.0
        %v2690 = vld [vmem:[%s5] sm:$0x1]
        %2691 = vset.pattern.permute.xlu0 0
        %2692 = vperm.xlu0 %2691, %v789
        %v2693 = vpop.permute.xlu0 %2692
        %2695 = vset.pattern.permute.xlu0 0
        %2696 = vperm.xlu0 %2695, %v790
        %v2697 = vpop.permute.xlu0 %2696
        %2699 = vset.pattern.permute.xlu0 0
        %2700 = vperm.xlu0 %2699, %v791
        %v2701 = vpop.permute.xlu0 %2700
        %2703 = vset.pattern.permute.xlu0 0
        %2704 = vperm.xlu0 %2703, %v792
        %v2705 = vpop.permute.xlu0 %2704
        %2707 = vset.pattern.permute.xlu0 0
        %2708 = vperm.xlu0 %2707, %v793
        %v2709 = vpop.permute.xlu0 %2708
        %2711 = vset.pattern.permute.xlu0 0
        %2712 = vperm.xlu0 %2711, %v794
        %v2713 = vpop.permute.xlu0 %2712
        %2715 = vset.pattern.permute.xlu0 0
        %2716 = vperm.xlu0 %2715, %v795
        %v2717 = vpop.permute.xlu0 %2716
        %2719 = vset.pattern.permute.xlu0 0
        %2720 = vperm.xlu0 %2719, %v796
        %v2721 = vpop.permute.xlu0 %2720
        %v2724 = vlaneseq
        %v2725 = vshrl.u32 %v2724, 7
        %v2726 = vsub.s32 0, %v2725
        %v2727 = vrot.slane %v2690, %v2726
        %v2729 = vmul.f32 %v2693, %v2727
        %v2730 = vmul.f32 %v2697, %v2727
        %v2731 = vmul.f32 %v2701, %v2727
        %v2732 = vmul.f32 %v2705, %v2727
        %v2733 = vmul.f32 %v2709, %v2727
        %v2734 = vmul.f32 %v2713, %v2727
        %v2735 = vmul.f32 %v2717, %v2727
        %v2736 = vmul.f32 %v2721, %v2727
        %v2737 = vadd.f32 %v2682, %v2729
        %v2738 = vadd.f32 %v2683, %v2730
        %v2739 = vadd.f32 %v2684, %v2731
        %v2740 = vadd.f32 %v2685, %v2732
        %v2741 = vadd.f32 %v2686, %v2733
        %v2742 = vadd.f32 %v2687, %v2734
        %v2743 = vadd.f32 %v2688, %v2735
        %v2744 = vadd.f32 %v2689, %v2736
        %v2745 = vld [vmem:[%s6] sm:$0x1]
        %v2747 = vlaneseq
        %v2748 = vshrl.u32 %v2747, 7
        %v2749 = vsub.s32 0, %v2748
        %v2750 = vrot.slane %v2745, %v2749
        %v2752 = vadd.f32 %v2737, %v2750
        %v2753 = vadd.f32 %v2738, %v2750
        %v2754 = vadd.f32 %v2739, %v2750
        %v2755 = vadd.f32 %v2740, %v2750
        %v2756 = vadd.f32 %v2741, %v2750
        %v2757 = vadd.f32 %v2742, %v2750
        %v2758 = vadd.f32 %v2743, %v2750
        %v2759 = vadd.f32 %v2744, %v2750
        %v2768 = vrot.slane %v2752, 1
        %v2769 = vrot.slane %v2753, 1
        %v2770 = vsel %vm805, %v2768, %v2769
        %v2771 = vrot.slane %v2754, 1
        %v2772 = vsel %vm805, %v2769, %v2771
        %v2773 = vrot.slane %v2755, 1
        %v2774 = vsel %vm805, %v2771, %v2773
        %v2775 = vrot.slane %v2756, 1
        %v2776 = vsel %vm805, %v2773, %v2775
        %v2777 = vrot.slane %v2757, 1
        %v2778 = vsel %vm805, %v2775, %v2777
        %v2779 = vrot.slane %v2758, 1
        %v2780 = vsel %vm805, %v2777, %v2779
        %v2781 = vrot.slane %v2759, 1
        %v2782 = vsel %vm805, %v2779, %v2781
        %v2791 = vmax.f32 %v2752, %v2770
        %v2792 = vmax.f32 %v2753, %v2772
        %v2793 = vmax.f32 %v2754, %v2774
        %v2794 = vmax.f32 %v2755, %v2776
        %v2795 = vmax.f32 %v2756, %v2778
        %v2796 = vmax.f32 %v2757, %v2780
        %v2797 = vmax.f32 %v2758, %v2782
        %v2798 = vmax.f32 %v2759, %v2781
        %v2807 = vrot.slane %v2791, 2
        %v2808 = vrot.slane %v2792, 2
        %v2809 = vsel %vm846, %v2807, %v2808
        %v2810 = vrot.slane %v2793, 2
        %v2811 = vsel %vm846, %v2808, %v2810
        %v2812 = vrot.slane %v2794, 2
        %v2813 = vsel %vm846, %v2810, %v2812
        %v2814 = vrot.slane %v2795, 2
        %v2815 = vsel %vm846, %v2812, %v2814
        %v2816 = vrot.slane %v2796, 2
        %v2817 = vsel %vm846, %v2814, %v2816
        %v2818 = vrot.slane %v2797, 2
        %v2819 = vsel %vm846, %v2816, %v2818
        %v2820 = vrot.slane %v2798, 2
        %v2821 = vsel %vm846, %v2818, %v2820
        %v2830 = vmax.f32 %v2791, %v2809
        %v2831 = vmax.f32 %v2792, %v2811
        %v2832 = vmax.f32 %v2793, %v2813
        %v2833 = vmax.f32 %v2794, %v2815
        %v2834 = vmax.f32 %v2795, %v2817
        %v2835 = vmax.f32 %v2796, %v2819
        %v2836 = vmax.f32 %v2797, %v2821
        %v2837 = vmax.f32 %v2798, %v2820
        %v2846 = vrot.slane %v2830, 4
        %v2847 = vrot.slane %v2831, 4
        %v2848 = vsel %vm928, %v2846, %v2847
        %v2849 = vrot.slane %v2832, 4
        %v2850 = vsel %vm928, %v2847, %v2849
        %v2851 = vrot.slane %v2833, 4
        %v2852 = vsel %vm928, %v2849, %v2851
        %v2853 = vrot.slane %v2834, 4
        %v2854 = vsel %vm928, %v2851, %v2853
        %v2855 = vrot.slane %v2835, 4
        %v2856 = vsel %vm928, %v2853, %v2855
        %v2857 = vrot.slane %v2836, 4
        %v2858 = vsel %vm928, %v2855, %v2857
        %v2859 = vrot.slane %v2837, 4
        %v2860 = vsel %vm928, %v2857, %v2859
        %v2869 = vmax.f32 %v2830, %v2848
        %v2870 = vmax.f32 %v2831, %v2850
        %v2871 = vmax.f32 %v2832, %v2852
        %v2872 = vmax.f32 %v2833, %v2854
        %v2873 = vmax.f32 %v2834, %v2856
        %v2874 = vmax.f32 %v2835, %v2858
        %v2875 = vmax.f32 %v2836, %v2860
        %v2876 = vmax.f32 %v2837, %v2859
        %v2877 = vlaneseq
        %v2878 = vshrl.u32 %v2877, 7
        %v2879 = vadd.s32 %v2878, 8
        %v2880 = vadd.s32 %v2878, 16
        %v2881 = vadd.s32 %v2878, 24
        %v2882 = vlaneseq
        %v2883 = vand.u32 %v2882, 127
        %v2884 = vmul.u32 %v2878, 2
        %v2885 = vmul.u32 %v2879, 2
        %v2886 = vmul.u32 %v2880, 2
        %v2887 = vmul.u32 %v2881, 2
        %vm2888 = vcmp.eq.s32.totalorder %v2883, %v2884
        %vm2889 = vcmp.eq.s32.totalorder %v2883, %v2885
        %vm2890 = vcmp.eq.s32.totalorder %v2883, %v2886
        %vm2891 = vcmp.eq.s32.totalorder %v2883, %v2887
        %v2892 = vsel %vm2888, 1, 0
        %v2893 = vsel %vm2889, 1, 0
        %v2894 = vsel %vm2890, 1, 0
        %v2895 = vsel %vm2891, 1, 0
        %v2896 = vcvt.s32.f32 %v2892
        %v2897 = vcvt.s32.f32 %v2893
        %v2898 = vcvt.s32.f32 %v2894
        %v2899 = vcvt.s32.f32 %v2895
        %vm2900 = vcmask 465920
        %v2902 = vsel %vm2900, %v2896, 0
        %v2905 = vsel %vm2900, %v2897, 0
        %v2908 = vsel %vm2900, %v2898, 0
        %v2911 = vsel %vm2900, %v2899, 0
        %v2914 = vsel %vm1051, %v2876, 0
        %2916 = vmatprep.subr.mxu0 0.0
        %2917 = vmatpush1.msra.mxu0 %v2869
        %2918 = vmatprep.subr.mxu0 0.0
        %2919 = vmatpush1.msra.mxu0 %v2870
        %2920 = vmatprep.subr.mxu0 0.0
        %2921 = vmatpush1.msra.mxu0 %v2871
        %2922 = vmatprep.subr.mxu0 0.0
        %2923 = vmatpush1.msra.mxu0 %v2872
        %2924 = vmatprep.subr.mxu0 0.0
        %2925 = vmatpush1.msra.mxu0 %v2873
        %2926 = vmatprep.subr.mxu0 0.0
        %2927 = vmatpush1.msra.mxu0 %v2874
        %2928 = vmatprep.subr.mxu0 0.0
        %2929 = vmatpush1.msra.mxu0 %v2875
        %2930 = vmatprep.subr.mxu0 0.0
        %2931 = vmatpush1.msra.mxu0 %v2914
        %2932 = vmatprep.subr.mxu0 0.0
        %2933 = vmatpush1.msra.mxu0 0.0
        %2934 = vmatprep.subr.mxu0 0.0
        %2935 = vmatpush1.msra.mxu0 0.0
        %2936 = vmatprep.subr.mxu0 0.0
        %2937 = vmatpush1.msra.mxu0 0.0
        %2938 = vmatprep.subr.mxu0 0.0
        %2939 = vmatpush1.msra.mxu0 0.0
        %2940 = vmatprep.subr.mxu0 0.0
        %2941 = vmatpush1.msra.mxu0 0.0
        %2942 = vmatprep.subr.mxu0 0.0
        %2943 = vmatpush1.msra.mxu0 0.0
        %2944 = vmatprep.subr.mxu0 0.0
        %2945 = vmatpush1.msra.mxu0 0.0
        %2946 = vmatprep.subr.mxu0 0.0
        %2947 = vmatpush1.msra.mxu0 0.0
        %2948 = vmatprep.subr.mxu0 0.0
        %2949 = vmatpush1.msra.mxu0 0.0
        %2950 = vmatprep.subr.mxu0 0.0
        %2951 = vmatpush1.msra.mxu0 0.0
        %2952 = vmatprep.subr.mxu0 0.0
        %2953 = vmatpush1.msra.mxu0 0.0
        %2954 = vmatprep.subr.mxu0 0.0
        %2955 = vmatpush1.msra.mxu0 0.0
        %2956 = vmatprep.subr.mxu0 0.0
        %2957 = vmatpush1.msra.mxu0 0.0
        %2958 = vmatprep.subr.mxu0 0.0
        %2959 = vmatpush1.msra.mxu0 0.0
        %2960 = vmatprep.subr.mxu0 0.0
        %2961 = vmatpush1.msra.mxu0 0.0
        %2962 = vmatprep.subr.mxu0 0.0
        %2963 = vmatpush1.msra.mxu0 0.0
        %2964 = vmatprep.subr.mxu0 0.0
        %2965 = vmatpush1.msra.mxu0 0.0
        %2966 = vmatprep.subr.mxu0 0.0
        %2967 = vmatpush1.msra.mxu0 0.0
        %2968 = vmatprep.subr.mxu0 0.0
        %2969 = vmatpush1.msra.mxu0 0.0
        %2970 = vmatprep.subr.mxu0 0.0
        %2971 = vmatpush1.msra.mxu0 0.0
        %2972 = vmatprep.subr.mxu0 0.0
        %2973 = vmatpush1.msra.mxu0 0.0
        %2974 = vmatprep.subr.mxu0 0.0
        %2975 = vmatpush1.msra.mxu0 0.0
        %2976 = vmatprep.subr.mxu0 0.0
        %2977 = vmatpush1.msra.mxu0 0.0
        %2978 = vmatprep.subr.mxu0 0.0
        %2979 = vmatpush1.msra.mxu0 0.0
        %2980 = vmatprep.mubr.f32.mxu0 0.0
        %2981 = vmatmul.mubr.f32.gmra.mrb[0].mxu0 %v2902
        %v2982 = vpop.f32.mrb[0].mxu0
        %v2983 = vadd.f32 0.0, %v2982
        %v2984 = vpop.f32.mrb[0].mxu0
        %2985 = vmatprep.mubr.f32.mxu0 0.0
        %2986 = vmatmul.mubr.f32.gmra.mrb[0].mxu0 %v2905
        %v2987 = vpop.f32.mrb[0].mxu0
        %v2988 = vadd.f32 0.0, %v2987
        %v2989 = vpop.f32.mrb[0].mxu0
        %2990 = vmatprep.mubr.f32.mxu0 0.0
        %2991 = vmatmul.mubr.f32.gmra.mrb[0].mxu0 %v2908
        %v2992 = vpop.f32.mrb[0].mxu0
        %v2993 = vadd.f32 0.0, %v2992
        %v2994 = vpop.f32.mrb[0].mxu0
        %2995 = vmatprep.mubr.f32.mxu0 0.0
        %2996 = vmatmul.mubr.f32.gmra.mrb[0].mxu0 %v2911
        %v2997 = vpop.f32.mrb[0].mxu0
        %v2998 = vadd.f32 0.0, %v2997
        %v2999 = vpop.f32.mrb[0].mxu0
        %3000 = vdwg.mxu0
        %v3001 = vsel %vm887, %v2998, 0.0
        %v3005 = vrot.slane %v2983, 1
        %v3006 = vsel %vm805, %v806, %v3005
        %v3007 = vrot.slane %v2988, 1
        %v3008 = vsel %vm805, %v3005, %v3007
        %v3009 = vrot.slane %v2993, 1
        %v3010 = vsel %vm805, %v3007, %v3009
        %3011 = vrot.lane.b32.xlu0 %v3006, 32
        %v3012 = vpop.permute.xlu0 %3011
        %3013 = vrot.lane.b32.xlu0 %v3008, 32
        %v3014 = vpop.permute.xlu0 %3013
        %3015 = vrot.lane.b32.xlu0 %v3010, 32
        %v3016 = vpop.permute.xlu0 %3015
        %3017 = vrot.lane.b32.xlu0 %v3009, 32
        %v3018 = vpop.permute.xlu0 %3017
        %v3023 = vrot.slane %v2983, 2
        %v3024 = vsel %vm846, %v847, %v3023
        %v3025 = vrot.slane %v2988, 2
        %v3026 = vsel %vm846, %v3023, %v3025
        %v3027 = vrot.slane %v2993, 2
        %v3028 = vsel %vm846, %v3025, %v3027
        %3029 = vrot.lane.b32.xlu0 %v3024, 64
        %v3030 = vpop.permute.xlu0 %3029
        %3031 = vrot.lane.b32.xlu0 %v3026, 64
        %v3032 = vpop.permute.xlu0 %3031
        %3033 = vrot.lane.b32.xlu0 %v3028, 64
        %v3034 = vpop.permute.xlu0 %3033
        %3035 = vrot.lane.b32.xlu0 %v3027, 64
        %v3036 = vpop.permute.xlu0 %3035
        %v3041 = vrot.slane %v2983, 3
        %v3042 = vsel %vm887, %v888, %v3041
        %v3043 = vrot.slane %v2988, 3
        %v3044 = vsel %vm887, %v3041, %v3043
        %v3045 = vrot.slane %v2993, 3
        %v3046 = vsel %vm887, %v3043, %v3045
        %3047 = vrot.lane.b32.xlu0 %v3042, 96
        %v3048 = vpop.permute.xlu0 %3047
        %3049 = vrot.lane.b32.xlu0 %v3044, 96
        %v3050 = vpop.permute.xlu0 %3049
        %3051 = vrot.lane.b32.xlu0 %v3046, 96
        %v3052 = vpop.permute.xlu0 %3051
        %3053 = vrot.lane.b32.xlu0 %v3045, 96
        %v3054 = vpop.permute.xlu0 %3053
        %v3060 = vrot.slane %v2983, 4
        %v3061 = vsel %vm928, %v929, %v3060
        %v3062 = vrot.slane %v2988, 4
        %v3063 = vsel %vm928, %v3060, %v3062
        %v3064 = vrot.slane %v2993, 4
        %v3065 = vsel %vm928, %v3062, %v3064
        %v3066 = vrot.slane %v3001, 4
        %v3067 = vsel %vm928, %v3064, %v3066
        %v3072 = vrot.slane %v2983, 5
        %v3073 = vsel %vm969, %v970, %v3072
        %v3074 = vrot.slane %v2988, 5
        %v3075 = vsel %vm969, %v3072, %v3074
        %v3076 = vrot.slane %v2993, 5
        %v3077 = vsel %vm969, %v3074, %v3076
        %v3078 = vrot.slane %v3001, 5
        %v3079 = vsel %vm969, %v3076, %v3078
        %3080 = vrot.lane.b32.xlu0 %v3073, 32
        %v3081 = vpop.permute.xlu0 %3080
        %3082 = vrot.lane.b32.xlu0 %v3075, 32
        %v3083 = vpop.permute.xlu0 %3082
        %3084 = vrot.lane.b32.xlu0 %v3077, 32
        %v3085 = vpop.permute.xlu0 %3084
        %3086 = vrot.lane.b32.xlu0 %v3079, 32
        %v3087 = vpop.permute.xlu0 %3086
        %v3092 = vrot.slane %v2983, 6
        %v3093 = vsel %vm1010, %v1011, %v3092
        %v3094 = vrot.slane %v2988, 6
        %v3095 = vsel %vm1010, %v3092, %v3094
        %v3096 = vrot.slane %v2993, 6
        %v3097 = vsel %vm1010, %v3094, %v3096
        %v3098 = vrot.slane %v3001, 6
        %v3099 = vsel %vm1010, %v3096, %v3098
        %3100 = vrot.lane.b32.xlu0 %v3093, 64
        %v3101 = vpop.permute.xlu0 %3100
        %3102 = vrot.lane.b32.xlu0 %v3095, 64
        %v3103 = vpop.permute.xlu0 %3102
        %3104 = vrot.lane.b32.xlu0 %v3097, 64
        %v3105 = vpop.permute.xlu0 %3104
        %3106 = vrot.lane.b32.xlu0 %v3099, 64
        %v3107 = vpop.permute.xlu0 %3106
        %v3112 = vrot.slane %v2983, 7
        %v3113 = vsel %vm1051, %v1052, %v3112
        %v3114 = vrot.slane %v2988, 7
        %v3115 = vsel %vm1051, %v3112, %v3114
        %v3116 = vrot.slane %v2993, 7
        %v3117 = vsel %vm1051, %v3114, %v3116
        %v3118 = vrot.slane %v3001, 7
        %v3119 = vsel %vm1051, %v3116, %v3118
        %3120 = vrot.lane.b32.xlu0 %v3113, 96
        %v3121 = vpop.permute.xlu0 %3120
        %3122 = vrot.lane.b32.xlu0 %v3115, 96
        %v3123 = vpop.permute.xlu0 %3122
        %3124 = vrot.lane.b32.xlu0 %v3117, 96
        %v3125 = vpop.permute.xlu0 %3124
        %3126 = vrot.lane.b32.xlu0 %v3119, 96
        %v3127 = vpop.permute.xlu0 %3126
        %v3132 = vrot.slane %v3001, 1
        %v3133 = vsel %vm805, %v3009, %v3132
        %3134 = vrot.lane.b32.xlu0 %v3133, 32
        %v3135 = vpop.permute.xlu0 %3134
        %3136 = vrot.lane.b32.xlu0 %v3132, 32
        %v3137 = vpop.permute.xlu0 %3136
        %v3140 = vrot.slane %v3001, 2
        %v3141 = vsel %vm846, %v3027, %v3140
        %3142 = vrot.lane.b32.xlu0 %v3141, 64
        %v3143 = vpop.permute.xlu0 %3142
        %3144 = vrot.lane.b32.xlu0 %v3140, 64
        %v3145 = vpop.permute.xlu0 %3144
        %v3148 = vrot.slane %v3001, 3
        %v3149 = vsel %vm887, %v3045, %v3148
        %3150 = vrot.lane.b32.xlu0 %v3149, 96
        %v3151 = vpop.permute.xlu0 %3150
        %3152 = vrot.lane.b32.xlu0 %v3148, 96
        %v3153 = vpop.permute.xlu0 %3152
        %v3156 = vsel %vm928, %v3066, %v929
        %v3158 = vsel %vm969, %v3078, %v970
        %3159 = vrot.lane.b32.xlu0 %v3158, 32
        %v3160 = vpop.permute.xlu0 %3159
        %v3162 = vsel %vm1010, %v3098, %v1011
        %3163 = vrot.lane.b32.xlu0 %v3162, 64
        %v3164 = vpop.permute.xlu0 %3163
        %v3166 = vsel %vm1051, %v3118, %v1052
        %3167 = vrot.lane.b32.xlu0 %v3166, 96
        %v3168 = vpop.permute.xlu0 %3167
        %v3170 = vsel %vm1610, 0.0, %v3012
        %v3171 = vsel %vm1610, %v2983, %v3014
        %v3172 = vsel %vm1610, %v2988, %v3016
        %v3173 = vsel %vm1610, %v2993, %v3018
        %v3174 = vsel %vm2047, %v3170, %v3030
        %v3175 = vsel %vm2047, %v3171, %v3032
        %v3176 = vsel %vm2047, %v3172, %v3034
        %v3177 = vsel %vm2047, %v3173, %v3036
        %v3178 = vsel %vm2056, %v3174, %v3048
        %v3179 = vsel %vm2056, %v3175, %v3050
        %v3180 = vsel %vm2056, %v3176, %v3052
        %v3181 = vsel %vm2056, %v3177, %v3054
        %v3182 = vsel %vm1610, %v3061, %v3081
        %v3183 = vsel %vm1610, %v3063, %v3083
        %v3184 = vsel %vm1610, %v3065, %v3085
        %v3185 = vsel %vm1610, %v3067, %v3087
        %v3186 = vsel %vm2047, %v3182, %v3101
        %v3187 = vsel %vm2047, %v3183, %v3103
        %v3188 = vsel %vm2047, %v3184, %v3105
        %v3189 = vsel %vm2047, %v3185, %v3107
        %v3190 = vsel %vm2056, %v3186, %v3121
        %v3191 = vsel %vm2056, %v3187, %v3123
        %v3192 = vsel %vm2056, %v3188, %v3125
        %v3193 = vsel %vm2056, %v3189, %v3127
        %v3194 = vsel %vm1610, %v2993, %v3135
        %v3195 = vsel %vm1610, %v3001, %v3137
        %v3196 = vsel %vm2047, %v3194, %v3143
        %v3197 = vsel %vm2047, %v3195, %v3145
        %v3198 = vsel %vm2056, %v3196, %v3151
        %v3199 = vsel %vm2056, %v3197, %v3153
        %v3200 = vsel %vm1610, %v3156, %v3160
        %v3201 = vsel %vm2047, %v3200, %v3164
        %v3202 = vsel %vm2056, %v3201, %v3168
        %v3203 = vld [vmem:[%s7] sm:$0xff]
        %v3204 = vld [vmem:[%s7 + $0x8] sm:$0xff]
        %v3205 = vld [vmem:[%s7 + $0x10] sm:$0xff]
        %v3206 = vld [vmem:[%s7 + $0x18] sm:$0xff]
        %v3207 = vld [vmem:[%s7 + $0x20] sm:$0xff]
        %v3208 = vld [vmem:[%s7 + $0x28] sm:$0xff]
        %v3209 = vld [vmem:[%s7 + $0x30] sm:$0xff]
        %v3210 = vld [vmem:[%s7 + $0x38] sm:$0xff]
        %v3211 = vld [vmem:[%s7 + $0x40] sm:$0xff]
        %v3212 = vld [vmem:[%s7 + $0x48] sm:$0xff]
        %v3213 = vld [vmem:[%s7 + $0x50] sm:$0xff]
        %v3214 = vld [vmem:[%s7 + $0x58] sm:$0xff]
        %v3215 = vld [vmem:[%s7 + $0x60] sm:$0xff]
        %v3216 = vld [vmem:[%s7 + $0x68] sm:$0xff]
        %v3217 = vld [vmem:[%s7 + $0x70] sm:$0xff]
        %v3218 = vld [vmem:[%s7 + $0x78] sm:$0xff]
        %v3219 = vld [vmem:[%s7 + $0x80] sm:$0xff]
        %v3220 = vld [vmem:[%s7 + $0x88] sm:$0xff]
        %v3221 = vld [vmem:[%s7 + $0x90] sm:$0xff]
        %v3222 = vld [vmem:[%s7 + $0x98] sm:$0xff]
        %v3223 = vld [vmem:[%s7 + $0xa0] sm:$0xff]
        %v3224 = vld [vmem:[%s7 + $0xa8] sm:$0xff]
        %v3225 = vld [vmem:[%s7 + $0xb0] sm:$0xff]
        %v3226 = vld [vmem:[%s7 + $0xb8] sm:$0xff]
        %v3227 = vld [vmem:[%s7 + $0xc0] sm:$0xff]
        %v3228 = vld [vmem:[%s7 + $0xc8] sm:$0xff]
        %v3229 = vld [vmem:[%s7 + $0xd0] sm:$0xff]
        %v3230 = vld [vmem:[%s7 + $0xd8] sm:$0xff]
        %v3231 = vld [vmem:[%s7 + $0xe0] sm:$0xff]
        %v3232 = vld [vmem:[%s7 + $0xe8] sm:$0xff]
        %v3233 = vld [vmem:[%s7 + $0xf0] sm:$0xff]
        %v3234 = vld [vmem:[%s7 + $0xf8] sm:$0xff]
        %v3235 = vld [vmem:[%s7 + $0x100] sm:$0xff]
        %v3236 = vld [vmem:[%s7 + $0x108] sm:$0xff]
        %v3237 = vld [vmem:[%s7 + $0x110] sm:$0xff]
        %v3238 = vld [vmem:[%s7 + $0x118] sm:$0xff]
        %v3239 = vld [vmem:[%s7 + $0x120] sm:$0xff]
        %v3240 = vld [vmem:[%s7 + $0x128] sm:$0xff]
        %v3241 = vld [vmem:[%s7 + $0x130] sm:$0xff]
        %v3242 = vld [vmem:[%s7 + $0x138] sm:$0xff]
        %v3243 = vld [vmem:[%s7 + $0x140] sm:$0xff]
        %v3244 = vld [vmem:[%s7 + $0x148] sm:$0xff]
        %v3245 = vld [vmem:[%s7 + $0x150] sm:$0xff]
        %v3246 = vld [vmem:[%s7 + $0x158] sm:$0xff]
        %v3247 = vld [vmem:[%s7 + $0x160] sm:$0xff]
        %v3248 = vld [vmem:[%s7 + $0x168] sm:$0xff]
        %v3249 = vld [vmem:[%s7 + $0x170] sm:$0xff]
        %v3250 = vld [vmem:[%s7 + $0x178] sm:$0xff]
        %v3251 = vld [vmem:[%s7 + $0x180] sm:$0xff]
        %v3252 = vld [vmem:[%s7 + $0x188] sm:$0xff]
        %v3253 = vld [vmem:[%s7 + $0x190] sm:$0xff]
        %v3254 = vld [vmem:[%s7 + $0x198] sm:$0xff]
        %v3255 = vld [vmem:[%s7 + $0x1a0] sm:$0xff]
        %v3256 = vld [vmem:[%s7 + $0x1a8] sm:$0xff]
        %v3257 = vld [vmem:[%s7 + $0x1b0] sm:$0xff]
        %v3258 = vld [vmem:[%s7 + $0x1b8] sm:$0xff]
        %v3259 = vld [vmem:[%s7 + $0x1c0] sm:$0xff]
        %v3260 = vld [vmem:[%s7 + $0x1c8] sm:$0xff]
        %v3261 = vld [vmem:[%s7 + $0x1d0] sm:$0xff]
        %v3262 = vld [vmem:[%s7 + $0x1d8] sm:$0xff]
        %v3263 = vld [vmem:[%s7 + $0x1e0] sm:$0xff]
        %v3264 = vld [vmem:[%s7 + $0x1e8] sm:$0xff]
        %v3265 = vld [vmem:[%s7 + $0x1f0] sm:$0xff]
        %v3266 = vld [vmem:[%s7 + $0x1f8] sm:$0xff]
        %v3267 = vld [vmem:[%s8] sm:$0x1]
        %v3269 = vlaneseq
        %v3270 = vshrl.u32 %v3269, 7
        %v3271 = vsub.s32 0, %v3270
        %v3272 = vrot.slane %v3267, %v3271
        %3274 = vmatprep.subr.mxu0 0.0
        %3275 = vmatpush1.msra.mxu0 %v3203
        %3276 = vmatprep.subr.mxu0 0.0
        %3277 = vmatpush1.msra.mxu0 %v3204
        %3278 = vmatprep.subr.mxu0 0.0
        %3279 = vmatpush1.msra.mxu0 %v3205
        %3280 = vmatprep.subr.mxu0 0.0
        %3281 = vmatpush1.msra.mxu0 %v3206
        %3282 = vmatprep.subr.mxu0 0.0
        %3283 = vmatpush1.msra.mxu0 %v3207
        %3284 = vmatprep.subr.mxu0 0.0
        %3285 = vmatpush1.msra.mxu0 %v3208
        %3286 = vmatprep.subr.mxu0 0.0
        %3287 = vmatpush1.msra.mxu0 %v3209
        %3288 = vmatprep.subr.mxu0 0.0
        %3289 = vmatpush1.msra.mxu0 %v3210
        %3290 = vmatprep.subr.mxu0 0.0
        %3291 = vmatpush1.msra.mxu0 %v3211
        %3292 = vmatprep.subr.mxu0 0.0
        %3293 = vmatpush1.msra.mxu0 %v3212
        %3294 = vmatprep.subr.mxu0 0.0
        %3295 = vmatpush1.msra.mxu0 %v3213
        %3296 = vmatprep.subr.mxu0 0.0
        %3297 = vmatpush1.msra.mxu0 %v3214
        %3298 = vmatprep.subr.mxu0 0.0
        %3299 = vmatpush1.msra.mxu0 %v3215
        %3300 = vmatprep.subr.mxu0 0.0
        %3301 = vmatpush1.msra.mxu0 %v3216
        %3302 = vmatprep.subr.mxu0 0.0
        %3303 = vmatpush1.msra.mxu0 %v3217
        %3304 = vmatprep.subr.mxu0 0.0
        %3305 = vmatpush1.msra.mxu0 %v3218
        %3306 = vmatprep.subr.mxu0 0.0
        %3307 = vmatpush1.msra.mxu0 %v3219
        %3308 = vmatprep.subr.mxu0 0.0
        %3309 = vmatpush1.msra.mxu0 %v3220
        %3310 = vmatprep.subr.mxu0 0.0
        %3311 = vmatpush1.msra.mxu0 %v3221
        %3312 = vmatprep.subr.mxu0 0.0
        %3313 = vmatpush1.msra.mxu0 %v3222
        %3314 = vmatprep.subr.mxu0 0.0
        %3315 = vmatpush1.msra.mxu0 %v3223
        %3316 = vmatprep.subr.mxu0 0.0
        %3317 = vmatpush1.msra.mxu0 %v3224
        %3318 = vmatprep.subr.mxu0 0.0
        %3319 = vmatpush1.msra.mxu0 %v3225
        %3320 = vmatprep.subr.mxu0 0.0
        %3321 = vmatpush1.msra.mxu0 %v3226
        %3322 = vmatprep.subr.mxu0 0.0
        %3323 = vmatpush1.msra.mxu0 %v3227
        %3324 = vmatprep.subr.mxu0 0.0
        %3325 = vmatpush1.msra.mxu0 %v3228
        %3326 = vmatprep.subr.mxu0 0.0
        %3327 = vmatpush1.msra.mxu0 %v3229
        %3328 = vmatprep.subr.mxu0 0.0
        %3329 = vmatpush1.msra.mxu0 %v3230
        %3330 = vmatprep.subr.mxu0 0.0
        %3331 = vmatpush1.msra.mxu0 %v3231
        %3332 = vmatprep.subr.mxu0 0.0
        %3333 = vmatpush1.msra.mxu0 %v3232
        %3334 = vmatprep.subr.mxu0 0.0
        %3335 = vmatpush1.msra.mxu0 %v3233
        %3336 = vmatprep.subr.mxu0 0.0
        %3337 = vmatpush1.msra.mxu0 %v3234
        %3338 = vmatprep.mubr.f32.mxu0 %v3190
        %3339 = vmatmul.mubr.f32.gmra.mrb[0].mxu0 %v3178
        %v3340 = vpop.f32.mrb[0].mxu0
        %v3341 = vadd.f32 %v3272, %v3340
        %v3342 = vpop.f32.mrb[0].mxu0
        %3343 = vmatprep.mubr.f32.mxu0 %v3191
        %3344 = vmatmul.mubr.f32.gmra.mrb[0].mxu0 %v3179
        %v3345 = vpop.f32.mrb[0].mxu0
        %v3346 = vadd.f32 %v3272, %v3345
        %v3347 = vpop.f32.mrb[0].mxu0
        %3348 = vmatprep.mubr.f32.mxu0 %v3192
        %3349 = vmatmul.mubr.f32.gmra.mrb[0].mxu0 %v3180
        %v3350 = vpop.f32.mrb[0].mxu0
        %v3351 = vadd.f32 %v3272, %v3350
        %v3352 = vpop.f32.mrb[0].mxu0
        %3353 = vmatprep.mubr.f32.mxu0 %v3193
        %3354 = vmatmul.mubr.f32.gmra.mrb[0].mxu0 %v3181
        %v3355 = vpop.f32.mrb[0].mxu0
        %v3356 = vadd.f32 %v3272, %v3355
        %v3357 = vpop.f32.mrb[0].mxu0
        %3358 = vdwg.mxu0
        %3359 = vmatprep.subr.mxu0 0.0
        %3360 = vmatpush1.msra.mxu0 %v3235
        %3361 = vmatprep.subr.mxu0 0.0
        %3362 = vmatpush1.msra.mxu0 %v3236
        %3363 = vmatprep.subr.mxu0 0.0
        %3364 = vmatpush1.msra.mxu0 %v3237
        %3365 = vmatprep.subr.mxu0 0.0
        %3366 = vmatpush1.msra.mxu0 %v3238
        %3367 = vmatprep.subr.mxu0 0.0
        %3368 = vmatpush1.msra.mxu0 %v3239
        %3369 = vmatprep.subr.mxu0 0.0
        %3370 = vmatpush1.msra.mxu0 %v3240
        %3371 = vmatprep.subr.mxu0 0.0
        %3372 = vmatpush1.msra.mxu0 %v3241
        %3373 = vmatprep.subr.mxu0 0.0
        %3374 = vmatpush1.msra.mxu0 %v3242
        %3375 = vmatprep.subr.mxu0 0.0
        %3376 = vmatpush1.msra.mxu0 %v3243
        %3377 = vmatprep.subr.mxu0 0.0
        %3378 = vmatpush1.msra.mxu0 %v3244
        %3379 = vmatprep.subr.mxu0 0.0
        %3380 = vmatpush1.msra.mxu0 %v3245
        %3381 = vmatprep.subr.mxu0 0.0
        %3382 = vmatpush1.msra.mxu0 %v3246
        %3383 = vmatprep.subr.mxu0 0.0
        %3384 = vmatpush1.msra.mxu0 %v3247
        %3385 = vmatprep.subr.mxu0 0.0
        %3386 = vmatpush1.msra.mxu0 %v3248
        %3387 = vmatprep.subr.mxu0 0.0
        %3388 = vmatpush1.msra.mxu0 %v3249
        %3389 = vmatprep.subr.mxu0 0.0
        %3390 = vmatpush1.msra.mxu0 %v3250
        %3391 = vmatprep.subr.mxu0 0.0
        %3392 = vmatpush1.msra.mxu0 %v3251
        %3393 = vmatprep.subr.mxu0 0.0
        %3394 = vmatpush1.msra.mxu0 %v3252
        %3395 = vmatprep.subr.mxu0 0.0
        %3396 = vmatpush1.msra.mxu0 %v3253
        %3397 = vmatprep.subr.mxu0 0.0
        %3398 = vmatpush1.msra.mxu0 %v3254
        %3399 = vmatprep.subr.mxu0 0.0
        %3400 = vmatpush1.msra.mxu0 %v3255
        %3401 = vmatprep.subr.mxu0 0.0
        %3402 = vmatpush1.msra.mxu0 %v3256
        %3403 = vmatprep.subr.mxu0 0.0
        %3404 = vmatpush1.msra.mxu0 %v3257
        %3405 = vmatprep.subr.mxu0 0.0
        %3406 = vmatpush1.msra.mxu0 %v3258
        %3407 = vmatprep.subr.mxu0 0.0
        %3408 = vmatpush1.msra.mxu0 %v3259
        %3409 = vmatprep.subr.mxu0 0.0
        %3410 = vmatpush1.msra.mxu0 %v3260
        %3411 = vmatprep.subr.mxu0 0.0
        %3412 = vmatpush1.msra.mxu0 %v3261
        %3413 = vmatprep.subr.mxu0 0.0
        %3414 = vmatpush1.msra.mxu0 %v3262
        %3415 = vmatprep.subr.mxu0 0.0
        %3416 = vmatpush1.msra.mxu0 %v3263
        %3417 = vmatprep.subr.mxu0 0.0
        %3418 = vmatpush1.msra.mxu0 %v3264
        %3419 = vmatprep.subr.mxu0 0.0
        %3420 = vmatpush1.msra.mxu0 %v3265
        %3421 = vmatprep.subr.mxu0 0.0
        %3422 = vmatpush1.msra.mxu0 %v3266
        %3423 = vmatprep.mubr.f32.mxu0 %v3191
        %3424 = vmatmul.mubr.f32.gmra.mrb[0].mxu0 %v3179
        %v3425 = vpop.f32.mrb[0].mxu0
        %v3426 = vadd.f32 %v3341, %v3425
        %v3427 = vpop.f32.mrb[0].mxu0
        %3428 = vmatprep.mubr.f32.mxu0 %v3192
        %3429 = vmatmul.mubr.f32.gmra.mrb[0].mxu0 %v3180
        %v3430 = vpop.f32.mrb[0].mxu0
        %v3431 = vadd.f32 %v3346, %v3430
        %v3432 = vpop.f32.mrb[0].mxu0
        %3433 = vmatprep.mubr.f32.mxu0 %v3193
        %3434 = vmatmul.mubr.f32.gmra.mrb[0].mxu0 %v3198
        %v3435 = vpop.f32.mrb[0].mxu0
        %v3436 = vadd.f32 %v3351, %v3435
        %v3437 = vpop.f32.mrb[0].mxu0
        %3438 = vmatprep.mubr.f32.mxu0 %v3202
        %3439 = vmatmul.mubr.f32.gmra.mrb[0].mxu0 %v3199
        %v3440 = vpop.f32.mrb[0].mxu0
        %v3441 = vadd.f32 %v3356, %v3440
        %v3442 = vpop.f32.mrb[0].mxu0
        %3443 = vdwg.mxu0
        %v3444 = vmax.f32 %v3426, 0.0
        %v3445 = vmax.f32 %v3431, 0.0
        %v3446 = vmax.f32 %v3436, 0.0
        %v3447 = vmax.f32 %v3441, 0.0
        %v3448 = vsel %vm887, %v3447, 0.0
        %v3452 = vrot.slane %v3444, 1
        %v3453 = vsel %vm805, %v806, %v3452
        %v3454 = vrot.slane %v3445, 1
        %v3455 = vsel %vm805, %v3452, %v3454
        %v3456 = vrot.slane %v3446, 1
        %v3457 = vsel %vm805, %v3454, %v3456
        %3458 = vrot.lane.b32.xlu0 %v3453, 64
        %v3459 = vpop.permute.xlu0 %3458
        %3460 = vrot.lane.b32.xlu0 %v3455, 64
        %v3461 = vpop.permute.xlu0 %3460
        %3462 = vrot.lane.b32.xlu0 %v3457, 64
        %v3463 = vpop.permute.xlu0 %3462
        %3464 = vrot.lane.b32.xlu0 %v3456, 64
        %v3465 = vpop.permute.xlu0 %3464
        %v3470 = vrot.slane %v3444, 2
        %v3471 = vsel %vm846, %v847, %v3470
        %v3472 = vrot.slane %v3445, 2
        %v3473 = vsel %vm846, %v3470, %v3472
        %v3474 = vrot.slane %v3446, 2
        %v3475 = vsel %vm846, %v3472, %v3474
        %v3480 = vrot.slane %v3444, 3
        %v3481 = vsel %vm887, %v888, %v3480
        %v3482 = vrot.slane %v3445, 3
        %v3483 = vsel %vm887, %v3480, %v3482
        %v3484 = vrot.slane %v3446, 3
        %v3485 = vsel %vm887, %v3482, %v3484
        %3486 = vrot.lane.b32.xlu0 %v3481, 64
        %v3487 = vpop.permute.xlu0 %3486
        %3488 = vrot.lane.b32.xlu0 %v3483, 64
        %v3489 = vpop.permute.xlu0 %3488
        %3490 = vrot.lane.b32.xlu0 %v3485, 64
        %v3491 = vpop.permute.xlu0 %3490
        %3492 = vrot.lane.b32.xlu0 %v3484, 64
        %v3493 = vpop.permute.xlu0 %3492
        %v3499 = vrot.slane %v3444, 4
        %v3500 = vsel %vm928, %v929, %v3499
        %v3501 = vrot.slane %v3445, 4
        %v3502 = vsel %vm928, %v3499, %v3501
        %v3503 = vrot.slane %v3446, 4
        %v3504 = vsel %vm928, %v3501, %v3503
        %v3505 = vrot.slane %v3448, 4
        %v3506 = vsel %vm928, %v3503, %v3505
        %v3511 = vrot.slane %v3444, 5
        %v3512 = vsel %vm969, %v970, %v3511
        %v3513 = vrot.slane %v3445, 5
        %v3514 = vsel %vm969, %v3511, %v3513
        %v3515 = vrot.slane %v3446, 5
        %v3516 = vsel %vm969, %v3513, %v3515
        %v3517 = vrot.slane %v3448, 5
        %v3518 = vsel %vm969, %v3515, %v3517
        %3519 = vrot.lane.b32.xlu0 %v3512, 64
        %v3520 = vpop.permute.xlu0 %3519
        %3521 = vrot.lane.b32.xlu0 %v3514, 64
        %v3522 = vpop.permute.xlu0 %3521
        %3523 = vrot.lane.b32.xlu0 %v3516, 64
        %v3524 = vpop.permute.xlu0 %3523
        %3525 = vrot.lane.b32.xlu0 %v3518, 64
        %v3526 = vpop.permute.xlu0 %3525
        %v3531 = vrot.slane %v3444, 6
        %v3532 = vsel %vm1010, %v1011, %v3531
        %v3533 = vrot.slane %v3445, 6
        %v3534 = vsel %vm1010, %v3531, %v3533
        %v3535 = vrot.slane %v3446, 6
        %v3536 = vsel %vm1010, %v3533, %v3535
        %v3537 = vrot.slane %v3448, 6
        %v3538 = vsel %vm1010, %v3535, %v3537
        %v3543 = vrot.slane %v3444, 7
        %v3544 = vsel %vm1051, %v1052, %v3543
        %v3545 = vrot.slane %v3445, 7
        %v3546 = vsel %vm1051, %v3543, %v3545
        %v3547 = vrot.slane %v3446, 7
        %v3548 = vsel %vm1051, %v3545, %v3547
        %v3549 = vrot.slane %v3448, 7
        %v3550 = vsel %vm1051, %v3547, %v3549
        %3551 = vrot.lane.b32.xlu0 %v3544, 64
        %v3552 = vpop.permute.xlu0 %3551
        %3553 = vrot.lane.b32.xlu0 %v3546, 64
        %v3554 = vpop.permute.xlu0 %3553
        %3555 = vrot.lane.b32.xlu0 %v3548, 64
        %v3556 = vpop.permute.xlu0 %3555
        %3557 = vrot.lane.b32.xlu0 %v3550, 64
        %v3558 = vpop.permute.xlu0 %3557
        %v3563 = vrot.slane %v3448, 1
        %v3564 = vsel %vm805, %v3456, %v3563
        %3565 = vrot.lane.b32.xlu0 %v3564, 64
        %v3566 = vpop.permute.xlu0 %3565
        %3567 = vrot.lane.b32.xlu0 %v3563, 64
        %v3568 = vpop.permute.xlu0 %3567
        %v3571 = vrot.slane %v3448, 2
        %v3572 = vsel %vm846, %v3474, %v3571
        %v3575 = vrot.slane %v3448, 3
        %v3576 = vsel %vm887, %v3484, %v3575
        %3577 = vrot.lane.b32.xlu0 %v3576, 64
        %v3578 = vpop.permute.xlu0 %3577
        %3579 = vrot.lane.b32.xlu0 %v3575, 64
        %v3580 = vpop.permute.xlu0 %3579
        %v3583 = vsel %vm928, %v3505, %v929
        %v3585 = vsel %vm969, %v3517, %v970
        %3586 = vrot.lane.b32.xlu0 %v3585, 64
        %v3587 = vpop.permute.xlu0 %3586
        %v3589 = vsel %vm1010, %v3537, %v1011
        %v3591 = vsel %vm1051, %v3549, %v1052
        %3592 = vrot.lane.b32.xlu0 %v3591, 64
        %v3593 = vpop.permute.xlu0 %3592
        %v3595 = vsel %vm2047, 0.0, %v3459
        %v3596 = vsel %vm2047, %v3444, %v3461
        %v3597 = vsel %vm2047, %v3445, %v3463
        %v3598 = vsel %vm2047, %v3446, %v3465
        %v3599 = vsel %vm2047, %v3471, %v3487
        %v3600 = vsel %vm2047, %v3473, %v3489
        %v3601 = vsel %vm2047, %v3475, %v3491
        %v3602 = vsel %vm2047, %v3474, %v3493
        %v3603 = vsel %vm2047, %v3500, %v3520
        %v3604 = vsel %vm2047, %v3502, %v3522
        %v3605 = vsel %vm2047, %v3504, %v3524
        %v3606 = vsel %vm2047, %v3506, %v3526
        %v3607 = vsel %vm2047, %v3532, %v3552
        %v3608 = vsel %vm2047, %v3534, %v3554
        %v3609 = vsel %vm2047, %v3536, %v3556
        %v3610 = vsel %vm2047, %v3538, %v3558
        %v3611 = vsel %vm2047, %v3446, %v3566
        %v3612 = vsel %vm2047, %v3448, %v3568
        %v3613 = vsel %vm2047, %v3572, %v3578
        %v3614 = vsel %vm2047, %v3571, %v3580
        %v3615 = vsel %vm2047, %v3583, %v3587
        %v3616 = vsel %vm2047, %v3589, %v3593
        %v3617 = vld [vmem:[#allocation2] sm:$0xff]
        %v3618 = vld [vmem:[#allocation2 + $0x8] sm:$0xff]
        %v3619 = vld [vmem:[#allocation2 + $0x10] sm:$0xff]
        %v3620 = vld [vmem:[#allocation2 + $0x18] sm:$0xff]
        %v3621 = vld [vmem:[#allocation2 + $0x20] sm:$0xff]
        %v3622 = vld [vmem:[#allocation2 + $0x28] sm:$0xff]
        %v3623 = vld [vmem:[#allocation2 + $0x30] sm:$0xff]
        %v3624 = vld [vmem:[#allocation2 + $0x38] sm:$0xff]
        %v3625 = vld [vmem:[#allocation2 + $0x40] sm:$0xff]
        %v3626 = vld [vmem:[#allocation2 + $0x48] sm:$0xff]
        %v3627 = vld [vmem:[#allocation2 + $0x50] sm:$0xff]
        %v3628 = vld [vmem:[#allocation2 + $0x58] sm:$0xff]
        %v3629 = vld [vmem:[#allocation2 + $0x60] sm:$0xff]
        %v3630 = vld [vmem:[#allocation2 + $0x68] sm:$0xff]
        %v3631 = vld [vmem:[#allocation2 + $0x70] sm:$0xff]
        %v3632 = vld [vmem:[#allocation2 + $0x78] sm:$0xff]
        %v3633 = vld [vmem:[#allocation2 + $0x80] sm:$0xff]
        %v3634 = vld [vmem:[#allocation2 + $0x88] sm:$0xff]
        %v3635 = vld [vmem:[#allocation2 + $0x90] sm:$0xff]
        %v3636 = vld [vmem:[#allocation2 + $0x98] sm:$0xff]
        %v3637 = vld [vmem:[#allocation2 + $0xa0] sm:$0xff]
        %v3638 = vld [vmem:[#allocation2 + $0xa8] sm:$0xff]
        %v3639 = vld [vmem:[#allocation2 + $0xb0] sm:$0xff]
        %v3640 = vld [vmem:[#allocation2 + $0xb8] sm:$0xff]
        %v3641 = vld [vmem:[#allocation2 + $0xc0] sm:$0xff]
        %v3642 = vld [vmem:[#allocation2 + $0xc8] sm:$0xff]
        %v3643 = vld [vmem:[#allocation2 + $0xd0] sm:$0xff]
        %v3644 = vld [vmem:[#allocation2 + $0xd8] sm:$0xff]
        %v3645 = vld [vmem:[#allocation2 + $0xe0] sm:$0xff]
        %v3646 = vld [vmem:[#allocation2 + $0xe8] sm:$0xff]
        %v3647 = vld [vmem:[#allocation2 + $0xf0] sm:$0xff]
        %v3648 = vld [vmem:[#allocation2 + $0xf8] sm:$0xff]
        %v3649 = vld [vmem:[#allocation2 + $0x100] sm:$0xff]
        %v3650 = vld [vmem:[#allocation2 + $0x108] sm:$0xff]
        %v3651 = vld [vmem:[#allocation2 + $0x110] sm:$0xff]
        %v3652 = vld [vmem:[#allocation2 + $0x118] sm:$0xff]
        %v3653 = vld [vmem:[#allocation2 + $0x120] sm:$0xff]
        %v3654 = vld [vmem:[#allocation2 + $0x128] sm:$0xff]
        %v3655 = vld [vmem:[#allocation2 + $0x130] sm:$0xff]
        %v3656 = vld [vmem:[#allocation2 + $0x138] sm:$0xff]
        %v3657 = vld [vmem:[#allocation2 + $0x140] sm:$0xff]
        %v3658 = vld [vmem:[#allocation2 + $0x148] sm:$0xff]
        %v3659 = vld [vmem:[#allocation2 + $0x150] sm:$0xff]
        %v3660 = vld [vmem:[#allocation2 + $0x158] sm:$0xff]
        %v3661 = vld [vmem:[#allocation2 + $0x160] sm:$0xff]
        %v3662 = vld [vmem:[#allocation2 + $0x168] sm:$0xff]
        %v3663 = vld [vmem:[#allocation2 + $0x170] sm:$0xff]
        %v3664 = vld [vmem:[#allocation2 + $0x178] sm:$0xff]
        %v3665 = vld [vmem:[#allocation2 + $0x180] sm:$0xff]
        %v3666 = vld [vmem:[#allocation2 + $0x188] sm:$0xff]
        %v3667 = vld [vmem:[#allocation2 + $0x190] sm:$0xff]
        %v3668 = vld [vmem:[#allocation2 + $0x198] sm:$0xff]
        %v3669 = vld [vmem:[#allocation2 + $0x1a0] sm:$0xff]
        %v3670 = vld [vmem:[#allocation2 + $0x1a8] sm:$0xff]
        %v3671 = vld [vmem:[#allocation2 + $0x1b0] sm:$0xff]
        %v3672 = vld [vmem:[#allocation2 + $0x1b8] sm:$0xff]
        %v3673 = vld [vmem:[#allocation2 + $0x1c0] sm:$0xff]
        %v3674 = vld [vmem:[#allocation2 + $0x1c8] sm:$0xff]
        %v3675 = vld [vmem:[#allocation2 + $0x1d0] sm:$0xff]
        %v3676 = vld [vmem:[#allocation2 + $0x1d8] sm:$0xff]
        %v3677 = vld [vmem:[#allocation2 + $0x1e0] sm:$0xff]
        %v3678 = vld [vmem:[#allocation2 + $0x1e8] sm:$0xff]
        %v3679 = vld [vmem:[#allocation2 + $0x1f0] sm:$0xff]
        %v3680 = vld [vmem:[#allocation2 + $0x1f8] sm:$0xff]
        %v3681 = vld [vmem:[#allocation2 + $0x200] sm:$0xff]
        %v3682 = vld [vmem:[#allocation2 + $0x208] sm:$0xff]
        %v3683 = vld [vmem:[#allocation2 + $0x210] sm:$0xff]
        %v3684 = vld [vmem:[#allocation2 + $0x218] sm:$0xff]
        %v3685 = vld [vmem:[#allocation2 + $0x220] sm:$0xff]
        %v3686 = vld [vmem:[#allocation2 + $0x228] sm:$0xff]
        %v3687 = vld [vmem:[#allocation2 + $0x230] sm:$0xff]
        %v3688 = vld [vmem:[#allocation2 + $0x238] sm:$0xff]
        %v3689 = vld [vmem:[#allocation2 + $0x240] sm:$0xff]
        %v3690 = vld [vmem:[#allocation2 + $0x248] sm:$0xff]
        %v3691 = vld [vmem:[#allocation2 + $0x250] sm:$0xff]
        %v3692 = vld [vmem:[#allocation2 + $0x258] sm:$0xff]
        %v3693 = vld [vmem:[#allocation2 + $0x260] sm:$0xff]
        %v3694 = vld [vmem:[#allocation2 + $0x268] sm:$0xff]
        %v3695 = vld [vmem:[#allocation2 + $0x270] sm:$0xff]
        %v3696 = vld [vmem:[#allocation2 + $0x278] sm:$0xff]
        %v3697 = vld [vmem:[#allocation2 + $0x280] sm:$0xff]
        %v3698 = vld [vmem:[#allocation2 + $0x288] sm:$0xff]
        %v3699 = vld [vmem:[#allocation2 + $0x290] sm:$0xff]
        %v3700 = vld [vmem:[#allocation2 + $0x298] sm:$0xff]
        %v3701 = vld [vmem:[#allocation2 + $0x2a0] sm:$0xff]
        %v3702 = vld [vmem:[#allocation2 + $0x2a8] sm:$0xff]
        %v3703 = vld [vmem:[#allocation2 + $0x2b0] sm:$0xff]
        %v3704 = vld [vmem:[#allocation2 + $0x2b8] sm:$0xff]
        %v3705 = vld [vmem:[#allocation2 + $0x2c0] sm:$0xff]
        %v3706 = vld [vmem:[#allocation2 + $0x2c8] sm:$0xff]
        %v3707 = vld [vmem:[#allocation2 + $0x2d0] sm:$0xff]
        %v3708 = vld [vmem:[#allocation2 + $0x2d8] sm:$0xff]
        %v3709 = vld [vmem:[#allocation2 + $0x2e0] sm:$0xff]
        %v3710 = vld [vmem:[#allocation2 + $0x2e8] sm:$0xff]
        %v3711 = vld [vmem:[#allocation2 + $0x2f0] sm:$0xff]
        %v3712 = vld [vmem:[#allocation2 + $0x2f8] sm:$0xff]
        %v3713 = vld [vmem:[#allocation2 + $0x300] sm:$0xff]
        %v3714 = vld [vmem:[#allocation2 + $0x308] sm:$0xff]
        %v3715 = vld [vmem:[#allocation2 + $0x310] sm:$0xff]
        %v3716 = vld [vmem:[#allocation2 + $0x318] sm:$0xff]
        %v3717 = vld [vmem:[#allocation2 + $0x320] sm:$0xff]
        %v3718 = vld [vmem:[#allocation2 + $0x328] sm:$0xff]
        %v3719 = vld [vmem:[#allocation2 + $0x330] sm:$0xff]
        %v3720 = vld [vmem:[#allocation2 + $0x338] sm:$0xff]
        %v3721 = vld [vmem:[#allocation2 + $0x340] sm:$0xff]
        %v3722 = vld [vmem:[#allocation2 + $0x348] sm:$0xff]
        %v3723 = vld [vmem:[#allocation2 + $0x350] sm:$0xff]
        %v3724 = vld [vmem:[#allocation2 + $0x358] sm:$0xff]
        %v3725 = vld [vmem:[#allocation2 + $0x360] sm:$0xff]
        %v3726 = vld [vmem:[#allocation2 + $0x368] sm:$0xff]
        %v3727 = vld [vmem:[#allocation2 + $0x370] sm:$0xff]
        %v3728 = vld [vmem:[#allocation2 + $0x378] sm:$0xff]
        %v3729 = vld [vmem:[#allocation2 + $0x380] sm:$0xff]
        %v3730 = vld [vmem:[#allocation2 + $0x388] sm:$0xff]
        %v3731 = vld [vmem:[#allocation2 + $0x390] sm:$0xff]
        %v3732 = vld [vmem:[#allocation2 + $0x398] sm:$0xff]
        %v3733 = vld [vmem:[#allocation2 + $0x3a0] sm:$0xff]
        %v3734 = vld [vmem:[#allocation2 + $0x3a8] sm:$0xff]
        %v3735 = vld [vmem:[#allocation2 + $0x3b0] sm:$0xff]
        %v3736 = vld [vmem:[#allocation2 + $0x3b8] sm:$0xff]
        %v3737 = vld [vmem:[#allocation2 + $0x3c0] sm:$0xff]
        %v3738 = vld [vmem:[#allocation2 + $0x3c8] sm:$0xff]
        %v3739 = vld [vmem:[#allocation2 + $0x3d0] sm:$0xff]
        %v3740 = vld [vmem:[#allocation2 + $0x3d8] sm:$0xff]
        %v3741 = vld [vmem:[#allocation2 + $0x3e0] sm:$0xff]
        %v3742 = vld [vmem:[#allocation2 + $0x3e8] sm:$0xff]
        %v3743 = vld [vmem:[#allocation2 + $0x3f0] sm:$0xff]
        %v3744 = vld [vmem:[#allocation2 + $0x3f8] sm:$0xff]
        %v3745 = vld [vmem:[%s10] sm:$0x1]
        %v3747 = vlaneseq
        %v3748 = vshrl.u32 %v3747, 7
        %v3749 = vsub.s32 0, %v3748
        %v3750 = vrot.slane %v3745, %v3749
        %3752 = vmatprep.subr.mxu0 0.0
        %3753 = vmatpush1.msra.mxu0 %v3617
        %3754 = vmatprep.subr.mxu0 0.0
        %3755 = vmatpush1.msra.mxu0 %v3618
        %3756 = vmatprep.subr.mxu0 0.0
        %3757 = vmatpush1.msra.mxu0 %v3619
        %3758 = vmatprep.subr.mxu0 0.0
        %3759 = vmatpush1.msra.mxu0 %v3620
        %3760 = vmatprep.subr.mxu0 0.0
        %3761 = vmatpush1.msra.mxu0 %v3621
        %3762 = vmatprep.subr.mxu0 0.0
        %3763 = vmatpush1.msra.mxu0 %v3622
        %3764 = vmatprep.subr.mxu0 0.0
        %3765 = vmatpush1.msra.mxu0 %v3623
        %3766 = vmatprep.subr.mxu0 0.0
        %3767 = vmatpush1.msra.mxu0 %v3624
        %3768 = vmatprep.subr.mxu0 0.0
        %3769 = vmatpush1.msra.mxu0 %v3625
        %3770 = vmatprep.subr.mxu0 0.0
        %3771 = vmatpush1.msra.mxu0 %v3626
        %3772 = vmatprep.subr.mxu0 0.0
        %3773 = vmatpush1.msra.mxu0 %v3627
        %3774 = vmatprep.subr.mxu0 0.0
        %3775 = vmatpush1.msra.mxu0 %v3628
        %3776 = vmatprep.subr.mxu0 0.0
        %3777 = vmatpush1.msra.mxu0 %v3629
        %3778 = vmatprep.subr.mxu0 0.0
        %3779 = vmatpush1.msra.mxu0 %v3630
        %3780 = vmatprep.subr.mxu0 0.0
        %3781 = vmatpush1.msra.mxu0 %v3631
        %3782 = vmatprep.subr.mxu0 0.0
        %3783 = vmatpush1.msra.mxu0 %v3632
        %3784 = vmatprep.subr.mxu0 0.0
        %3785 = vmatpush1.msra.mxu0 %v3633
        %3786 = vmatprep.subr.mxu0 0.0
        %3787 = vmatpush1.msra.mxu0 %v3634
        %3788 = vmatprep.subr.mxu0 0.0
        %3789 = vmatpush1.msra.mxu0 %v3635
        %3790 = vmatprep.subr.mxu0 0.0
        %3791 = vmatpush1.msra.mxu0 %v3636
        %3792 = vmatprep.subr.mxu0 0.0
        %3793 = vmatpush1.msra.mxu0 %v3637
        %3794 = vmatprep.subr.mxu0 0.0
        %3795 = vmatpush1.msra.mxu0 %v3638
        %3796 = vmatprep.subr.mxu0 0.0
        %3797 = vmatpush1.msra.mxu0 %v3639
        %3798 = vmatprep.subr.mxu0 0.0
        %3799 = vmatpush1.msra.mxu0 %v3640
        %3800 = vmatprep.subr.mxu0 0.0
        %3801 = vmatpush1.msra.mxu0 %v3641
        %3802 = vmatprep.subr.mxu0 0.0
        %3803 = vmatpush1.msra.mxu0 %v3642
        %3804 = vmatprep.subr.mxu0 0.0
        %3805 = vmatpush1.msra.mxu0 %v3643
        %3806 = vmatprep.subr.mxu0 0.0
        %3807 = vmatpush1.msra.mxu0 %v3644
        %3808 = vmatprep.subr.mxu0 0.0
        %3809 = vmatpush1.msra.mxu0 %v3645
        %3810 = vmatprep.subr.mxu0 0.0
        %3811 = vmatpush1.msra.mxu0 %v3646
        %3812 = vmatprep.subr.mxu0 0.0
        %3813 = vmatpush1.msra.mxu0 %v3647
        %3814 = vmatprep.subr.mxu0 0.0
        %3815 = vmatpush1.msra.mxu0 %v3648
        %3816 = vmatprep.mubr.f32.mxu0 %v3599
        %3817 = vmatmul.mubr.f32.gmra.mrb[0].mxu0 %v3595
        %v3818 = vpop.f32.mrb[0].mxu0
        %v3819 = vadd.f32 %v3750, %v3818
        %v3820 = vpop.f32.mrb[0].mxu0
        %3821 = vmatprep.mubr.f32.mxu0 %v3600
        %3822 = vmatmul.mubr.f32.gmra.mrb[0].mxu0 %v3596
        %v3823 = vpop.f32.mrb[0].mxu0
        %v3824 = vadd.f32 %v3750, %v3823
        %v3825 = vpop.f32.mrb[0].mxu0
        %3826 = vmatprep.mubr.f32.mxu0 %v3601
        %3827 = vmatmul.mubr.f32.gmra.mrb[0].mxu0 %v3597
        %v3828 = vpop.f32.mrb[0].mxu0
        %v3829 = vadd.f32 %v3750, %v3828
        %v3830 = vpop.f32.mrb[0].mxu0
        %3831 = vmatprep.mubr.f32.mxu0 %v3602
        %3832 = vmatmul.mubr.f32.gmra.mrb[0].mxu0 %v3598
        %v3833 = vpop.f32.mrb[0].mxu0
        %v3834 = vadd.f32 %v3750, %v3833
        %v3835 = vpop.f32.mrb[0].mxu0
        %3836 = vdwg.mxu0
        %3837 = vmatprep.subr.mxu0 0.0
        %3838 = vmatpush1.msra.mxu0 %v3649
        %3839 = vmatprep.subr.mxu0 0.0
        %3840 = vmatpush1.msra.mxu0 %v3650
        %3841 = vmatprep.subr.mxu0 0.0
        %3842 = vmatpush1.msra.mxu0 %v3651
        %3843 = vmatprep.subr.mxu0 0.0
        %3844 = vmatpush1.msra.mxu0 %v3652
        %3845 = vmatprep.subr.mxu0 0.0
        %3846 = vmatpush1.msra.mxu0 %v3653
        %3847 = vmatprep.subr.mxu0 0.0
        %3848 = vmatpush1.msra.mxu0 %v3654
        %3849 = vmatprep.subr.mxu0 0.0
        %3850 = vmatpush1.msra.mxu0 %v3655
        %3851 = vmatprep.subr.mxu0 0.0
        %3852 = vmatpush1.msra.mxu0 %v3656
        %3853 = vmatprep.subr.mxu0 0.0
        %3854 = vmatpush1.msra.mxu0 %v3657
        %3855 = vmatprep.subr.mxu0 0.0
        %3856 = vmatpush1.msra.mxu0 %v3658
        %3857 = vmatprep.subr.mxu0 0.0
        %3858 = vmatpush1.msra.mxu0 %v3659
        %3859 = vmatprep.subr.mxu0 0.0
        %3860 = vmatpush1.msra.mxu0 %v3660
        %3861 = vmatprep.subr.mxu0 0.0
        %3862 = vmatpush1.msra.mxu0 %v3661
        %3863 = vmatprep.subr.mxu0 0.0
        %3864 = vmatpush1.msra.mxu0 %v3662
        %3865 = vmatprep.subr.mxu0 0.0
        %3866 = vmatpush1.msra.mxu0 %v3663
        %3867 = vmatprep.subr.mxu0 0.0
        %3868 = vmatpush1.msra.mxu0 %v3664
        %3869 = vmatprep.subr.mxu0 0.0
        %3870 = vmatpush1.msra.mxu0 %v3665
        %3871 = vmatprep.subr.mxu0 0.0
        %3872 = vmatpush1.msra.mxu0 %v3666
        %3873 = vmatprep.subr.mxu0 0.0
        %3874 = vmatpush1.msra.mxu0 %v3667
        %3875 = vmatprep.subr.mxu0 0.0
        %3876 = vmatpush1.msra.mxu0 %v3668
        %3877 = vmatprep.subr.mxu0 0.0
        %3878 = vmatpush1.msra.mxu0 %v3669
        %3879 = vmatprep.subr.mxu0 0.0
        %3880 = vmatpush1.msra.mxu0 %v3670
        %3881 = vmatprep.subr.mxu0 0.0
        %3882 = vmatpush1.msra.mxu0 %v3671
        %3883 = vmatprep.subr.mxu0 0.0
        %3884 = vmatpush1.msra.mxu0 %v3672
        %3885 = vmatprep.subr.mxu0 0.0
        %3886 = vmatpush1.msra.mxu0 %v3673
        %3887 = vmatprep.subr.mxu0 0.0
        %3888 = vmatpush1.msra.mxu0 %v3674
        %3889 = vmatprep.subr.mxu0 0.0
        %3890 = vmatpush1.msra.mxu0 %v3675
        %3891 = vmatprep.subr.mxu0 0.0
        %3892 = vmatpush1.msra.mxu0 %v3676
        %3893 = vmatprep.subr.mxu0 0.0
        %3894 = vmatpush1.msra.mxu0 %v3677
        %3895 = vmatprep.subr.mxu0 0.0
        %3896 = vmatpush1.msra.mxu0 %v3678
        %3897 = vmatprep.subr.mxu0 0.0
        %3898 = vmatpush1.msra.mxu0 %v3679
        %3899 = vmatprep.subr.mxu0 0.0
        %3900 = vmatpush1.msra.mxu0 %v3680
        %3901 = vmatprep.mubr.f32.mxu0 %v3607
        %3902 = vmatmul.mubr.f32.gmra.mrb[0].mxu0 %v3603
        %v3903 = vpop.f32.mrb[0].mxu0
        %v3904 = vadd.f32 %v3819, %v3903
        %v3905 = vpop.f32.mrb[0].mxu0
        %3906 = vmatprep.mubr.f32.mxu0 %v3608
        %3907 = vmatmul.mubr.f32.gmra.mrb[0].mxu0 %v3604
        %v3908 = vpop.f32.mrb[0].mxu0
        %v3909 = vadd.f32 %v3824, %v3908
        %v3910 = vpop.f32.mrb[0].mxu0
        %3911 = vmatprep.mubr.f32.mxu0 %v3609
        %3912 = vmatmul.mubr.f32.gmra.mrb[0].mxu0 %v3605
        %v3913 = vpop.f32.mrb[0].mxu0
        %v3914 = vadd.f32 %v3829, %v3913
        %v3915 = vpop.f32.mrb[0].mxu0
        %3916 = vmatprep.mubr.f32.mxu0 %v3610
        %3917 = vmatmul.mubr.f32.gmra.mrb[0].mxu0 %v3606
        %v3918 = vpop.f32.mrb[0].mxu0
        %v3919 = vadd.f32 %v3834, %v3918
        %v3920 = vpop.f32.mrb[0].mxu0
        %3921 = vdwg.mxu0
        %3922 = vmatprep.subr.mxu0 0.0
        %3923 = vmatpush1.msra.mxu0 %v3681
        %3924 = vmatprep.subr.mxu0 0.0
        %3925 = vmatpush1.msra.mxu0 %v3682
        %3926 = vmatprep.subr.mxu0 0.0
        %3927 = vmatpush1.msra.mxu0 %v3683
        %3928 = vmatprep.subr.mxu0 0.0
        %3929 = vmatpush1.msra.mxu0 %v3684
        %3930 = vmatprep.subr.mxu0 0.0
        %3931 = vmatpush1.msra.mxu0 %v3685
        %3932 = vmatprep.subr.mxu0 0.0
        %3933 = vmatpush1.msra.mxu0 %v3686
        %3934 = vmatprep.subr.mxu0 0.0
        %3935 = vmatpush1.msra.mxu0 %v3687
        %3936 = vmatprep.subr.mxu0 0.0
        %3937 = vmatpush1.msra.mxu0 %v3688
        %3938 = vmatprep.subr.mxu0 0.0
        %3939 = vmatpush1.msra.mxu0 %v3689
        %3940 = vmatprep.subr.mxu0 0.0
        %3941 = vmatpush1.msra.mxu0 %v3690
        %3942 = vmatprep.subr.mxu0 0.0
        %3943 = vmatpush1.msra.mxu0 %v3691
        %3944 = vmatprep.subr.mxu0 0.0
        %3945 = vmatpush1.msra.mxu0 %v3692
        %3946 = vmatprep.subr.mxu0 0.0
        %3947 = vmatpush1.msra.mxu0 %v3693
        %3948 = vmatprep.subr.mxu0 0.0
        %3949 = vmatpush1.msra.mxu0 %v3694
        %3950 = vmatprep.subr.mxu0 0.0
        %3951 = vmatpush1.msra.mxu0 %v3695
        %3952 = vmatprep.subr.mxu0 0.0
        %3953 = vmatpush1.msra.mxu0 %v3696
        %3954 = vmatprep.subr.mxu0 0.0
        %3955 = vmatpush1.msra.mxu0 %v3697
        %3956 = vmatprep.subr.mxu0 0.0
        %3957 = vmatpush1.msra.mxu0 %v3698
        %3958 = vmatprep.subr.mxu0 0.0
        %3959 = vmatpush1.msra.mxu0 %v3699
        %3960 = vmatprep.subr.mxu0 0.0
        %3961 = vmatpush1.msra.mxu0 %v3700
        %3962 = vmatprep.subr.mxu0 0.0
        %3963 = vmatpush1.msra.mxu0 %v3701
        %3964 = vmatprep.subr.mxu0 0.0
        %3965 = vmatpush1.msra.mxu0 %v3702
        %3966 = vmatprep.subr.mxu0 0.0
        %3967 = vmatpush1.msra.mxu0 %v3703
        %3968 = vmatprep.subr.mxu0 0.0
        %3969 = vmatpush1.msra.mxu0 %v3704
        %3970 = vmatprep.subr.mxu0 0.0
        %3971 = vmatpush1.msra.mxu0 %v3705
        %3972 = vmatprep.subr.mxu0 0.0
        %3973 = vmatpush1.msra.mxu0 %v3706
        %3974 = vmatprep.subr.mxu0 0.0
        %3975 = vmatpush1.msra.mxu0 %v3707
        %3976 = vmatprep.subr.mxu0 0.0
        %3977 = vmatpush1.msra.mxu0 %v3708
        %3978 = vmatprep.subr.mxu0 0.0
        %3979 = vmatpush1.msra.mxu0 %v3709
        %3980 = vmatprep.subr.mxu0 0.0
        %3981 = vmatpush1.msra.mxu0 %v3710
        %3982 = vmatprep.subr.mxu0 0.0
        %3983 = vmatpush1.msra.mxu0 %v3711
        %3984 = vmatprep.subr.mxu0 0.0
        %3985 = vmatpush1.msra.mxu0 %v3712
        %3986 = vmatprep.mubr.f32.mxu0 %v3600
        %3987 = vmatmul.mubr.f32.gmra.mrb[0].mxu0 %v3596
        %v3988 = vpop.f32.mrb[0].mxu0
        %v3989 = vadd.f32 %v3904, %v3988
        %v3990 = vpop.f32.mrb[0].mxu0
        %3991 = vmatprep.mubr.f32.mxu0 %v3601
        %3992 = vmatmul.mubr.f32.gmra.mrb[0].mxu0 %v3597
        %v3993 = vpop.f32.mrb[0].mxu0
        %v3994 = vadd.f32 %v3909, %v3993
        %v3995 = vpop.f32.mrb[0].mxu0
        %3996 = vmatprep.mubr.f32.mxu0 %v3613
        %3997 = vmatmul.mubr.f32.gmra.mrb[0].mxu0 %v3611
        %v3998 = vpop.f32.mrb[0].mxu0
        %v3999 = vadd.f32 %v3914, %v3998
        %v4000 = vpop.f32.mrb[0].mxu0
        %4001 = vmatprep.mubr.f32.mxu0 %v3614
        %4002 = vmatmul.mubr.f32.gmra.mrb[0].mxu0 %v3612
        %v4003 = vpop.f32.mrb[0].mxu0
        %v4004 = vadd.f32 %v3919, %v4003
        %v4005 = vpop.f32.mrb[0].mxu0
        %4006 = vdwg.mxu0
        %4007 = vmatprep.subr.mxu0 0.0
        %4008 = vmatpush1.msra.mxu0 %v3713
        %4009 = vmatprep.subr.mxu0 0.0
        %4010 = vmatpush1.msra.mxu0 %v3714
        %4011 = vmatprep.subr.mxu0 0.0
        %4012 = vmatpush1.msra.mxu0 %v3715
        %4013 = vmatprep.subr.mxu0 0.0
        %4014 = vmatpush1.msra.mxu0 %v3716
        %4015 = vmatprep.subr.mxu0 0.0
        %4016 = vmatpush1.msra.mxu0 %v3717
        %4017 = vmatprep.subr.mxu0 0.0
        %4018 = vmatpush1.msra.mxu0 %v3718
        %4019 = vmatprep.subr.mxu0 0.0
        %4020 = vmatpush1.msra.mxu0 %v3719
        %4021 = vmatprep.subr.mxu0 0.0
        %4022 = vmatpush1.msra.mxu0 %v3720
        %4023 = vmatprep.subr.mxu0 0.0
        %4024 = vmatpush1.msra.mxu0 %v3721
        %4025 = vmatprep.subr.mxu0 0.0
        %4026 = vmatpush1.msra.mxu0 %v3722
        %4027 = vmatprep.subr.mxu0 0.0
        %4028 = vmatpush1.msra.mxu0 %v3723
        %4029 = vmatprep.subr.mxu0 0.0
        %4030 = vmatpush1.msra.mxu0 %v3724
        %4031 = vmatprep.subr.mxu0 0.0
        %4032 = vmatpush1.msra.mxu0 %v3725
        %4033 = vmatprep.subr.mxu0 0.0
        %4034 = vmatpush1.msra.mxu0 %v3726
        %4035 = vmatprep.subr.mxu0 0.0
        %4036 = vmatpush1.msra.mxu0 %v3727
        %4037 = vmatprep.subr.mxu0 0.0
        %4038 = vmatpush1.msra.mxu0 %v3728
        %4039 = vmatprep.subr.mxu0 0.0
        %4040 = vmatpush1.msra.mxu0 %v3729
        %4041 = vmatprep.subr.mxu0 0.0
        %4042 = vmatpush1.msra.mxu0 %v3730
        %4043 = vmatprep.subr.mxu0 0.0
        %4044 = vmatpush1.msra.mxu0 %v3731
        %4045 = vmatprep.subr.mxu0 0.0
        %4046 = vmatpush1.msra.mxu0 %v3732
        %4047 = vmatprep.subr.mxu0 0.0
        %4048 = vmatpush1.msra.mxu0 %v3733
        %4049 = vmatprep.subr.mxu0 0.0
        %4050 = vmatpush1.msra.mxu0 %v3734
        %4051 = vmatprep.subr.mxu0 0.0
        %4052 = vmatpush1.msra.mxu0 %v3735
        %4053 = vmatprep.subr.mxu0 0.0
        %4054 = vmatpush1.msra.mxu0 %v3736
        %4055 = vmatprep.subr.mxu0 0.0
        %4056 = vmatpush1.msra.mxu0 %v3737
        %4057 = vmatprep.subr.mxu0 0.0
        %4058 = vmatpush1.msra.mxu0 %v3738
        %4059 = vmatprep.subr.mxu0 0.0
        %4060 = vmatpush1.msra.mxu0 %v3739
        %4061 = vmatprep.subr.mxu0 0.0
        %4062 = vmatpush1.msra.mxu0 %v3740
        %4063 = vmatprep.subr.mxu0 0.0
        %4064 = vmatpush1.msra.mxu0 %v3741
        %4065 = vmatprep.subr.mxu0 0.0
        %4066 = vmatpush1.msra.mxu0 %v3742
        %4067 = vmatprep.subr.mxu0 0.0
        %4068 = vmatpush1.msra.mxu0 %v3743
        %4069 = vmatprep.subr.mxu0 0.0
        %4070 = vmatpush1.msra.mxu0 %v3744
        %4071 = vmatprep.mubr.f32.mxu0 %v3608
        %4072 = vmatmul.mubr.f32.gmra.mrb[0].mxu0 %v3604
        %v4073 = vpop.f32.mrb[0].mxu0
        %v4074 = vadd.f32 %v3989, %v4073
        %v4075 = vpop.f32.mrb[0].mxu0
        %4076 = vmatprep.mubr.f32.mxu0 %v3609
        %4077 = vmatmul.mubr.f32.gmra.mrb[0].mxu0 %v3605
        %v4078 = vpop.f32.mrb[0].mxu0
        %v4079 = vadd.f32 %v3994, %v4078
        %v4080 = vpop.f32.mrb[0].mxu0
        %4081 = vmatprep.mubr.f32.mxu0 %v3610
        %4082 = vmatmul.mubr.f32.gmra.mrb[0].mxu0 %v3606
        %v4083 = vpop.f32.mrb[0].mxu0
        %v4084 = vadd.f32 %v3999, %v4083
        %v4085 = vpop.f32.mrb[0].mxu0
        %4086 = vmatprep.mubr.f32.mxu0 %v3616
        %4087 = vmatmul.mubr.f32.gmra.mrb[0].mxu0 %v3615
        %v4088 = vpop.f32.mrb[0].mxu0
        %v4089 = vadd.f32 %v4004, %v4088
        %v4090 = vpop.f32.mrb[0].mxu0
        %4091 = vdwg.mxu0
        %v4092 = vmax.f32 %v4074, 0.0
        %v4093 = vmax.f32 %v4079, 0.0
        %v4094 = vmax.f32 %v4084, 0.0
        %v4095 = vmax.f32 %v4089, 0.0
        %v4096 = vld [vmem:[%s11] sm:$0xff]
        %v4097 = vld [vmem:[%s11 + $0x8] sm:$0xff]
        %v4098 = vld [vmem:[%s11 + $0x10] sm:$0xff]
        %v4099 = vld [vmem:[%s11 + $0x18] sm:$0xff]
        %v4100 = vsel %vm1610, %v2983, 0
        %v4102 = vsel %vm1610, %v2988, 0
        %v4104 = vsel %vm1610, %v2993, 0
        %v4107 = vsel %vm1610, %v2998, 0
        %4109 = vmatprep.subr.mxu0 0.0
        %4110 = vmatpush1.msra.mxu0 %v4096
        %4111 = vmatprep.subr.mxu0 0.0
        %4112 = vmatpush1.msra.mxu0 %v4097
        %4113 = vmatprep.subr.mxu0 0.0
        %4114 = vmatpush1.msra.mxu0 %v4098
        %4115 = vmatprep.subr.mxu0 0.0
        %4116 = vmatpush1.msra.mxu0 %v4099
        %4117 = vmatprep.subr.mxu0 0.0
        %4118 = vmatpush1.msra.mxu0 0.0
        %4119 = vmatprep.subr.mxu0 0.0
        %4120 = vmatpush1.msra.mxu0 0.0
        %4121 = vmatprep.subr.mxu0 0.0
        %4122 = vmatpush1.msra.mxu0 0.0
        %4123 = vmatprep.subr.mxu0 0.0
        %4124 = vmatpush1.msra.mxu0 0.0
        %4125 = vmatprep.subr.mxu0 0.0
        %4126 = vmatpush1.msra.mxu0 0.0
        %4127 = vmatprep.subr.mxu0 0.0
        %4128 = vmatpush1.msra.mxu0 0.0
        %4129 = vmatprep.subr.mxu0 0.0
        %4130 = vmatpush1.msra.mxu0 0.0
        %4131 = vmatprep.subr.mxu0 0.0
        %4132 = vmatpush1.msra.mxu0 0.0
        %4133 = vmatprep.subr.mxu0 0.0
        %4134 = vmatpush1.msra.mxu0 0.0
        %4135 = vmatprep.subr.mxu0 0.0
        %4136 = vmatpush1.msra.mxu0 0.0
        %4137 = vmatprep.subr.mxu0 0.0
        %4138 = vmatpush1.msra.mxu0 0.0
        %4139 = vmatprep.subr.mxu0 0.0
        %4140 = vmatpush1.msra.mxu0 0.0
        %4141 = vmatprep.subr.mxu0 0.0
        %4142 = vmatpush1.msra.mxu0 0.0
        %4143 = vmatprep.subr.mxu0 0.0
        %4144 = vmatpush1.msra.mxu0 0.0
        %4145 = vmatprep.subr.mxu0 0.0
        %4146 = vmatpush1.msra.mxu0 0.0
        %4147 = vmatprep.subr.mxu0 0.0
        %4148 = vmatpush1.msra.mxu0 0.0
        %4149 = vmatprep.subr.mxu0 0.0
        %4150 = vmatpush1.msra.mxu0 0.0
        %4151 = vmatprep.subr.mxu0 0.0
        %4152 = vmatpush1.msra.mxu0 0.0
        %4153 = vmatprep.subr.mxu0 0.0
        %4154 = vmatpush1.msra.mxu0 0.0
        %4155 = vmatprep.subr.mxu0 0.0
        %4156 = vmatpush1.msra.mxu0 0.0
        %4157 = vmatprep.subr.mxu0 0.0
        %4158 = vmatpush1.msra.mxu0 0.0
        %4159 = vmatprep.subr.mxu0 0.0
        %4160 = vmatpush1.msra.mxu0 0.0
        %4161 = vmatprep.subr.mxu0 0.0
        %4162 = vmatpush1.msra.mxu0 0.0
        %4163 = vmatprep.subr.mxu0 0.0
        %4164 = vmatpush1.msra.mxu0 0.0
        %4165 = vmatprep.subr.mxu0 0.0
        %4166 = vmatpush1.msra.mxu0 0.0
        %4167 = vmatprep.subr.mxu0 0.0
        %4168 = vmatpush1.msra.mxu0 0.0
        %4169 = vmatprep.subr.mxu0 0.0
        %4170 = vmatpush1.msra.mxu0 0.0
        %4171 = vmatprep.subr.mxu0 0.0
        %4172 = vmatpush1.msra.mxu0 0.0
        %4173 = vmatprep.mubr.f32.mxu0 0.0
        %4174 = vmatmul.mubr.f32.gmra.mrb[0].mxu0 %v4100
        %v4175 = vpop.f32.mrb[0].mxu0
        %v4176 = vadd.f32 0.0, %v4175
        %v4177 = vpop.f32.mrb[0].mxu0
        %4178 = vmatprep.mubr.f32.mxu0 0.0
        %4179 = vmatmul.mubr.f32.gmra.mrb[0].mxu0 %v4102
        %v4180 = vpop.f32.mrb[0].mxu0
        %v4181 = vadd.f32 0.0, %v4180
        %v4182 = vpop.f32.mrb[0].mxu0
        %4183 = vmatprep.mubr.f32.mxu0 0.0
        %4184 = vmatmul.mubr.f32.gmra.mrb[0].mxu0 %v4104
        %v4185 = vpop.f32.mrb[0].mxu0
        %v4186 = vadd.f32 0.0, %v4185
        %v4187 = vpop.f32.mrb[0].mxu0
        %4188 = vmatprep.mubr.f32.mxu0 0.0
        %4189 = vmatmul.mubr.f32.gmra.mrb[0].mxu0 %v4107
        %v4190 = vpop.f32.mrb[0].mxu0
        %v4191 = vadd.f32 0.0, %v4190
        %v4192 = vpop.f32.mrb[0].mxu0
        %4193 = vdwg.mxu0
        %v4194 = vadd.f32 %v4092, %v4176
        %v4195 = vadd.f32 %v4093, %v4181
        %v4196 = vadd.f32 %v4094, %v4186
        %v4197 = vadd.f32 %v4095, %v4191
        %v4198 = vld [vmem:[%s12] sm:$0x1]
        %v4200 = vlaneseq
        %v4201 = vshrl.u32 %v4200, 7
        %v4202 = vsub.s32 0, %v4201
        %v4203 = vrot.slane %v4198, %v4202
        %v4205 = vadd.f32 %v4194, %v4203
        %v4206 = vadd.f32 %v4195, %v4203
        %v4207 = vadd.f32 %v4196, %v4203
        %v4208 = vadd.f32 %v4197, %v4203
        %v4213 = vrot.slane %v4205, 1
        %v4214 = vrot.slane %v4206, 1
        %v4215 = vsel %vm805, %v4213, %v4214
        %v4216 = vrot.slane %v4207, 1
        %v4217 = vsel %vm805, %v4214, %v4216
        %v4218 = vrot.slane %v4208, 1
        %v4219 = vsel %vm805, %v4216, %v4218
        %v4224 = vmax.f32 %v4205, %v4215
        %v4225 = vmax.f32 %v4206, %v4217
        %v4226 = vmax.f32 %v4207, %v4219
        %v4227 = vmax.f32 %v4208, %v4218
        %v4232 = vrot.slane %v4224, 2
        %v4233 = vrot.slane %v4225, 2
        %v4234 = vsel %vm846, %v4232, %v4233
        %v4235 = vrot.slane %v4226, 2
        %v4236 = vsel %vm846, %v4233, %v4235
        %v4237 = vrot.slane %v4227, 2
        %v4238 = vsel %vm846, %v4235, %v4237
        %v4243 = vmax.f32 %v4224, %v4234
        %v4244 = vmax.f32 %v4225, %v4236
        %v4245 = vmax.f32 %v4226, %v4238
        %v4246 = vmax.f32 %v4227, %v4237
        %v4251 = vrot.slane %v4243, 4
        %v4252 = vrot.slane %v4244, 4
        %v4253 = vsel %vm928, %v4251, %v4252
        %v4254 = vrot.slane %v4245, 4
        %v4255 = vsel %vm928, %v4252, %v4254
        %v4256 = vrot.slane %v4246, 4
        %v4257 = vsel %vm928, %v4254, %v4256
        %v4261 = vmax.f32 %v4243, %v4253
        %v4262 = vmax.f32 %v4244, %v4255
        %v4263 = vmax.f32 %v4245, %v4257
        %vm4264 = vcmask 179200
        %v4265 = vsel %vm4264, %v2896, 0
        %v4267 = vsel %vm4264, %v2897, 0
        %v4270 = vsel %vm846, %v4263, 0
        %4272 = vmatprep.subr.mxu0 0.0
        %4273 = vmatpush1.msra.mxu0 %v4261
        %4274 = vmatprep.subr.mxu0 0.0
        %4275 = vmatpush1.msra.mxu0 %v4262
        %4276 = vmatprep.subr.mxu0 0.0
        %4277 = vmatpush1.msra.mxu0 %v4270
        %4278 = vmatprep.subr.mxu0 0.0
        %4279 = vmatpush1.msra.mxu0 0.0
        %4280 = vmatprep.subr.mxu0 0.0
        %4281 = vmatpush1.msra.mxu0 0.0
        %4282 = vmatprep.subr.mxu0 0.0
        %4283 = vmatpush1.msra.mxu0 0.0
        %4284 = vmatprep.subr.mxu0 0.0
        %4285 = vmatpush1.msra.mxu0 0.0
        %4286 = vmatprep.subr.mxu0 0.0
        %4287 = vmatpush1.msra.mxu0 0.0
        %4288 = vmatprep.subr.mxu0 0.0
        %4289 = vmatpush1.msra.mxu0 0.0
        %4290 = vmatprep.subr.mxu0 0.0
        %4291 = vmatpush1.msra.mxu0 0.0
        %4292 = vmatprep.subr.mxu0 0.0
        %4293 = vmatpush1.msra.mxu0 0.0
        %4294 = vmatprep.subr.mxu0 0.0
        %4295 = vmatpush1.msra.mxu0 0.0
        %4296 = vmatprep.subr.mxu0 0.0
        %4297 = vmatpush1.msra.mxu0 0.0
        %4298 = vmatprep.subr.mxu0 0.0
        %4299 = vmatpush1.msra.mxu0 0.0
        %4300 = vmatprep.subr.mxu0 0.0
        %4301 = vmatpush1.msra.mxu0 0.0
        %4302 = vmatprep.subr.mxu0 0.0
        %4303 = vmatpush1.msra.mxu0 0.0
        %4304 = vmatprep.subr.mxu0 0.0
        %4305 = vmatpush1.msra.mxu0 0.0
        %4306 = vmatprep.subr.mxu0 0.0
        %4307 = vmatpush1.msra.mxu0 0.0
        %4308 = vmatprep.subr.mxu0 0.0
        %4309 = vmatpush1.msra.mxu0 0.0
        %4310 = vmatprep.subr.mxu0 0.0
        %4311 = vmatpush1.msra.mxu0 0.0
        %4312 = vmatprep.subr.mxu0 0.0
        %4313 = vmatpush1.msra.mxu0 0.0
        %4314 = vmatprep.subr.mxu0 0.0
        %4315 = vmatpush1.msra.mxu0 0.0
        %4316 = vmatprep.subr.mxu0 0.0
        %4317 = vmatpush1.msra.mxu0 0.0
        %4318 = vmatprep.subr.mxu0 0.0
        %4319 = vmatpush1.msra.mxu0 0.0
        %4320 = vmatprep.subr.mxu0 0.0
        %4321 = vmatpush1.msra.mxu0 0.0
        %4322 = vmatprep.subr.mxu0 0.0
        %4323 = vmatpush1.msra.mxu0 0.0
        %4324 = vmatprep.subr.mxu0 0.0
        %4325 = vmatpush1.msra.mxu0 0.0
        %4326 = vmatprep.subr.mxu0 0.0
        %4327 = vmatpush1.msra.mxu0 0.0
        %4328 = vmatprep.subr.mxu0 0.0
        %4329 = vmatpush1.msra.mxu0 0.0
        %4330 = vmatprep.subr.mxu0 0.0
        %4331 = vmatpush1.msra.mxu0 0.0
        %4332 = vmatprep.subr.mxu0 0.0
        %4333 = vmatpush1.msra.mxu0 0.0
        %4334 = vmatprep.subr.mxu0 0.0
        %4335 = vmatpush1.msra.mxu0 0.0
        %4336 = vmatprep.mubr.f32.mxu0 0.0
        %4337 = vmatmul.mubr.f32.gmra.mrb[0].mxu0 %v4265
        %v4338 = vpop.f32.mrb[0].mxu0
        %v4339 = vadd.f32 0.0, %v4338
        %v4340 = vpop.f32.mrb[0].mxu0
        %4341 = vmatprep.mubr.f32.mxu0 0.0
        %4342 = vmatmul.mubr.f32.gmra.mrb[0].mxu0 %v4267
        %v4343 = vpop.f32.mrb[0].mxu0
        %v4344 = vadd.f32 0.0, %v4343
        %v4345 = vpop.f32.mrb[0].mxu0
        %4346 = vdwg.mxu0
        %v4349 = vrot.slane %v4339, 4
        %v4350 = vrot.slane %v4344, 4
        %v4351 = vsel %vm928, %v4349, %v4350
        %v4354 = vsel %vm928, 0.0, %v4349
        %v4355 = vsel %vm805, %v4351, 0.0
        %v4358 = vrot.slane %v4354, 1
        %v4359 = vrot.slane %v4355, 1
        %v4360 = vsel %vm805, %v4358, %v4359
        %4361 = vrot.lane.b32.xlu0 %v4360, 64
        %v4362 = vpop.permute.xlu0 %4361
        %4363 = vrot.lane.b32.xlu0 %v4359, 64
        %v4364 = vpop.permute.xlu0 %4363
        %v4367 = vrot.slane %v4354, 2
        %v4368 = vrot.slane %v4355, 2
        %v4369 = vsel %vm846, %v4367, %v4368
        %v4372 = vrot.slane %v4354, 3
        %v4373 = vrot.slane %v4355, 3
        %v4374 = vsel %vm887, %v4372, %v4373
        %4375 = vrot.lane.b32.xlu0 %v4374, 64
        %v4376 = vpop.permute.xlu0 %4375
        %4377 = vrot.lane.b32.xlu0 %v4373, 64
        %v4378 = vpop.permute.xlu0 %4377
        %v4381 = vrot.slane %v4354, 4
        %v4382 = vrot.slane %v4355, 4
        %v4383 = vsel %vm928, %v4381, %v4382
        %v4386 = vrot.slane %v4354, 5
        %v4387 = vrot.slane %v4355, 5
        %v4388 = vsel %vm969, %v4386, %v4387
        %4389 = vrot.lane.b32.xlu0 %v4388, 64
        %v4390 = vpop.permute.xlu0 %4389
        %4391 = vrot.lane.b32.xlu0 %v4387, 64
        %v4392 = vpop.permute.xlu0 %4391
        %v4395 = vrot.slane %v4354, 6
        %v4396 = vrot.slane %v4355, 6
        %v4397 = vsel %vm1010, %v4395, %v4396
        %v4398 = vsel %vm1010, %v4396, %v1011
        %v4401 = vrot.slane %v4354, 7
        %v4402 = vrot.slane %v4355, 7
        %v4403 = vsel %vm1051, %v4401, %v4402
        %v4404 = vsel %vm1051, %v4402, %v1052
        %4405 = vrot.lane.b32.xlu0 %v4403, 64
        %v4406 = vpop.permute.xlu0 %4405
        %4407 = vrot.lane.b32.xlu0 %v4404, 64
        %v4408 = vpop.permute.xlu0 %4407
        %v4411 = vsel %vm2047, %v4354, %v4362
        %v4412 = vsel %vm2047, %v4355, %v4364
        %v4413 = vsel %vm2047, %v4369, %v4376
        %v4414 = vsel %vm2047, %v4368, %v4378
        %v4415 = vsel %vm2047, %v4383, %v4390
        %v4416 = vsel %vm2047, %v4382, %v4392
        %v4417 = vsel %vm2047, %v4397, %v4406
        %v4418 = vsel %vm2047, %v4398, %v4408
        %v4419 = vld [vmem:[#allocation5] sm:$0xff]
        %v4420 = vld [vmem:[#allocation5 + $0x8] sm:$0xff]
        %v4421 = vld [vmem:[#allocation5 + $0x10] sm:$0xff]
        %v4422 = vld [vmem:[#allocation5 + $0x18] sm:$0xff]
        %v4423 = vld [vmem:[#allocation5 + $0x20] sm:$0xff]
        %v4424 = vld [vmem:[#allocation5 + $0x28] sm:$0xff]
        %v4425 = vld [vmem:[#allocation5 + $0x30] sm:$0xff]
        %v4426 = vld [vmem:[#allocation5 + $0x38] sm:$0xff]
        %v4427 = vld [vmem:[#allocation5 + $0x40] sm:$0xff]
        %v4428 = vld [vmem:[#allocation5 + $0x48] sm:$0xff]
        %v4429 = vld [vmem:[#allocation5 + $0x50] sm:$0xff]
        %v4430 = vld [vmem:[#allocation5 + $0x58] sm:$0xff]
        %v4431 = vld [vmem:[#allocation5 + $0x60] sm:$0xff]
        %v4432 = vld [vmem:[#allocation5 + $0x68] sm:$0xff]
        %v4433 = vld [vmem:[#allocation5 + $0x70] sm:$0xff]
        %v4434 = vld [vmem:[#allocation5 + $0x78] sm:$0xff]
        %v4435 = vld [vmem:[#allocation5 + $0x80] sm:$0xff]
        %v4436 = vld [vmem:[#allocation5 + $0x88] sm:$0xff]
        %v4437 = vld [vmem:[#allocation5 + $0x90] sm:$0xff]
        %v4438 = vld [vmem:[#allocation5 + $0x98] sm:$0xff]
        %v4439 = vld [vmem:[#allocation5 + $0xa0] sm:$0xff]
        %v4440 = vld [vmem:[#allocation5 + $0xa8] sm:$0xff]
        %v4441 = vld [vmem:[#allocation5 + $0xb0] sm:$0xff]
        %v4442 = vld [vmem:[#allocation5 + $0xb8] sm:$0xff]
        %v4443 = vld [vmem:[#allocation5 + $0xc0] sm:$0xff]
        %v4444 = vld [vmem:[#allocation5 + $0xc8] sm:$0xff]
        %v4445 = vld [vmem:[#allocation5 + $0xd0] sm:$0xff]
        %v4446 = vld [vmem:[#allocation5 + $0xd8] sm:$0xff]
        %v4447 = vld [vmem:[#allocation5 + $0xe0] sm:$0xff]
        %v4448 = vld [vmem:[#allocation5 + $0xe8] sm:$0xff]
        %v4449 = vld [vmem:[#allocation5 + $0xf0] sm:$0xff]
        %v4450 = vld [vmem:[#allocation5 + $0xf8] sm:$0xff]
        %v4451 = vld [vmem:[#allocation5 + $0x100] sm:$0xff]
        %v4452 = vld [vmem:[#allocation5 + $0x108] sm:$0xff]
        %v4453 = vld [vmem:[#allocation5 + $0x110] sm:$0xff]
        %v4454 = vld [vmem:[#allocation5 + $0x118] sm:$0xff]
        %v4455 = vld [vmem:[#allocation5 + $0x120] sm:$0xff]
        %v4456 = vld [vmem:[#allocation5 + $0x128] sm:$0xff]
        %v4457 = vld [vmem:[#allocation5 + $0x130] sm:$0xff]
        %v4458 = vld [vmem:[#allocation5 + $0x138] sm:$0xff]
        %v4459 = vld [vmem:[#allocation5 + $0x140] sm:$0xff]
        %v4460 = vld [vmem:[#allocation5 + $0x148] sm:$0xff]
        %v4461 = vld [vmem:[#allocation5 + $0x150] sm:$0xff]
        %v4462 = vld [vmem:[#allocation5 + $0x158] sm:$0xff]
        %v4463 = vld [vmem:[#allocation5 + $0x160] sm:$0xff]
        %v4464 = vld [vmem:[#allocation5 + $0x168] sm:$0xff]
        %v4465 = vld [vmem:[#allocation5 + $0x170] sm:$0xff]
        %v4466 = vld [vmem:[#allocation5 + $0x178] sm:$0xff]
        %v4467 = vld [vmem:[#allocation5 + $0x180] sm:$0xff]
        %v4468 = vld [vmem:[#allocation5 + $0x188] sm:$0xff]
        %v4469 = vld [vmem:[#allocation5 + $0x190] sm:$0xff]
        %v4470 = vld [vmem:[#allocation5 + $0x198] sm:$0xff]
        %v4471 = vld [vmem:[#allocation5 + $0x1a0] sm:$0xff]
        %v4472 = vld [vmem:[#allocation5 + $0x1a8] sm:$0xff]
        %v4473 = vld [vmem:[#allocation5 + $0x1b0] sm:$0xff]
        %v4474 = vld [vmem:[#allocation5 + $0x1b8] sm:$0xff]
        %v4475 = vld [vmem:[#allocation5 + $0x1c0] sm:$0xff]
        %v4476 = vld [vmem:[#allocation5 + $0x1c8] sm:$0xff]
        %v4477 = vld [vmem:[#allocation5 + $0x1d0] sm:$0xff]
        %v4478 = vld [vmem:[#allocation5 + $0x1d8] sm:$0xff]
        %v4479 = vld [vmem:[#allocation5 + $0x1e0] sm:$0xff]
        %v4480 = vld [vmem:[#allocation5 + $0x1e8] sm:$0xff]
        %v4481 = vld [vmem:[#allocation5 + $0x1f0] sm:$0xff]
        %v4482 = vld [vmem:[#allocation5 + $0x1f8] sm:$0xff]
        %v4483 = vld [vmem:[%s14] sm:$0x1]
        %v4485 = vlaneseq
        %v4486 = vshrl.u32 %v4485, 7
        %v4487 = vsub.s32 0, %v4486
        %v4488 = vrot.slane %v4483, %v4487
        %4490 = vmatprep.subr.mxu0 0.0
        %4491 = vmatpush1.msra.mxu0 %v4419
        %4492 = vmatprep.subr.mxu0 0.0
        %4493 = vmatpush1.msra.mxu0 %v4420
        %4494 = vmatprep.subr.mxu0 0.0
        %4495 = vmatpush1.msra.mxu0 %v4421
        %4496 = vmatprep.subr.mxu0 0.0
        %4497 = vmatpush1.msra.mxu0 %v4422
        %4498 = vmatprep.subr.mxu0 0.0
        %4499 = vmatpush1.msra.mxu0 %v4423
        %4500 = vmatprep.subr.mxu0 0.0
        %4501 = vmatpush1.msra.mxu0 %v4424
        %4502 = vmatprep.subr.mxu0 0.0
        %4503 = vmatpush1.msra.mxu0 %v4425
        %4504 = vmatprep.subr.mxu0 0.0
        %4505 = vmatpush1.msra.mxu0 %v4426
        %4506 = vmatprep.subr.mxu0 0.0
        %4507 = vmatpush1.msra.mxu0 %v4427
        %4508 = vmatprep.subr.mxu0 0.0
        %4509 = vmatpush1.msra.mxu0 %v4428
        %4510 = vmatprep.subr.mxu0 0.0
        %4511 = vmatpush1.msra.mxu0 %v4429
        %4512 = vmatprep.subr.mxu0 0.0
        %4513 = vmatpush1.msra.mxu0 %v4430
        %4514 = vmatprep.subr.mxu0 0.0
        %4515 = vmatpush1.msra.mxu0 %v4431
        %4516 = vmatprep.subr.mxu0 0.0
        %4517 = vmatpush1.msra.mxu0 %v4432
        %4518 = vmatprep.subr.mxu0 0.0
        %4519 = vmatpush1.msra.mxu0 %v4433
        %4520 = vmatprep.subr.mxu0 0.0
        %4521 = vmatpush1.msra.mxu0 %v4434
        %4522 = vmatprep.subr.mxu0 0.0
        %4523 = vmatpush1.msra.mxu0 %v4435
        %4524 = vmatprep.subr.mxu0 0.0
        %4525 = vmatpush1.msra.mxu0 %v4436
        %4526 = vmatprep.subr.mxu0 0.0
        %4527 = vmatpush1.msra.mxu0 %v4437
        %4528 = vmatprep.subr.mxu0 0.0
        %4529 = vmatpush1.msra.mxu0 %v4438
        %4530 = vmatprep.subr.mxu0 0.0
        %4531 = vmatpush1.msra.mxu0 %v4439
        %4532 = vmatprep.subr.mxu0 0.0
        %4533 = vmatpush1.msra.mxu0 %v4440
        %4534 = vmatprep.subr.mxu0 0.0
        %4535 = vmatpush1.msra.mxu0 %v4441
        %4536 = vmatprep.subr.mxu0 0.0
        %4537 = vmatpush1.msra.mxu0 %v4442
        %4538 = vmatprep.subr.mxu0 0.0
        %4539 = vmatpush1.msra.mxu0 %v4443
        %4540 = vmatprep.subr.mxu0 0.0
        %4541 = vmatpush1.msra.mxu0 %v4444
        %4542 = vmatprep.subr.mxu0 0.0
        %4543 = vmatpush1.msra.mxu0 %v4445
        %4544 = vmatprep.subr.mxu0 0.0
        %4545 = vmatpush1.msra.mxu0 %v4446
        %4546 = vmatprep.subr.mxu0 0.0
        %4547 = vmatpush1.msra.mxu0 %v4447
        %4548 = vmatprep.subr.mxu0 0.0
        %4549 = vmatpush1.msra.mxu0 %v4448
        %4550 = vmatprep.subr.mxu0 0.0
        %4551 = vmatpush1.msra.mxu0 %v4449
        %4552 = vmatprep.subr.mxu0 0.0
        %4553 = vmatpush1.msra.mxu0 %v4450
        %4554 = vmatprep.mubr.f32.mxu0 %v4413
        %4555 = vmatmul.mubr.f32.gmra.mrb[0].mxu0 %v4411
        %v4556 = vpop.f32.mrb[0].mxu0
        %v4557 = vadd.f32 %v4488, %v4556
        %v4558 = vpop.f32.mrb[0].mxu0
        %4559 = vmatprep.mubr.f32.mxu0 %v4414
        %4560 = vmatmul.mubr.f32.gmra.mrb[0].mxu0 %v4412
        %v4561 = vpop.f32.mrb[0].mxu0
        %v4562 = vadd.f32 %v4488, %v4561
        %v4563 = vpop.f32.mrb[0].mxu0
        %4564 = vdwg.mxu0
        %4565 = vmatprep.subr.mxu0 0.0
        %4566 = vmatpush1.msra.mxu0 %v4451
        %4567 = vmatprep.subr.mxu0 0.0
        %4568 = vmatpush1.msra.mxu0 %v4452
        %4569 = vmatprep.subr.mxu0 0.0
        %4570 = vmatpush1.msra.mxu0 %v4453
        %4571 = vmatprep.subr.mxu0 0.0
        %4572 = vmatpush1.msra.mxu0 %v4454
        %4573 = vmatprep.subr.mxu0 0.0
        %4574 = vmatpush1.msra.mxu0 %v4455
        %4575 = vmatprep.subr.mxu0 0.0
        %4576 = vmatpush1.msra.mxu0 %v4456
        %4577 = vmatprep.subr.mxu0 0.0
        %4578 = vmatpush1.msra.mxu0 %v4457
        %4579 = vmatprep.subr.mxu0 0.0
        %4580 = vmatpush1.msra.mxu0 %v4458
        %4581 = vmatprep.subr.mxu0 0.0
        %4582 = vmatpush1.msra.mxu0 %v4459
        %4583 = vmatprep.subr.mxu0 0.0
        %4584 = vmatpush1.msra.mxu0 %v4460
        %4585 = vmatprep.subr.mxu0 0.0
        %4586 = vmatpush1.msra.mxu0 %v4461
        %4587 = vmatprep.subr.mxu0 0.0
        %4588 = vmatpush1.msra.mxu0 %v4462
        %4589 = vmatprep.subr.mxu0 0.0
        %4590 = vmatpush1.msra.mxu0 %v4463
        %4591 = vmatprep.subr.mxu0 0.0
        %4592 = vmatpush1.msra.mxu0 %v4464
        %4593 = vmatprep.subr.mxu0 0.0
        %4594 = vmatpush1.msra.mxu0 %v4465
        %4595 = vmatprep.subr.mxu0 0.0
        %4596 = vmatpush1.msra.mxu0 %v4466
        %4597 = vmatprep.subr.mxu0 0.0
        %4598 = vmatpush1.msra.mxu0 %v4467
        %4599 = vmatprep.subr.mxu0 0.0
        %4600 = vmatpush1.msra.mxu0 %v4468
        %4601 = vmatprep.subr.mxu0 0.0
        %4602 = vmatpush1.msra.mxu0 %v4469
        %4603 = vmatprep.subr.mxu0 0.0
        %4604 = vmatpush1.msra.mxu0 %v4470
        %4605 = vmatprep.subr.mxu0 0.0
        %4606 = vmatpush1.msra.mxu0 %v4471
        %4607 = vmatprep.subr.mxu0 0.0
        %4608 = vmatpush1.msra.mxu0 %v4472
        %4609 = vmatprep.subr.mxu0 0.0
        %4610 = vmatpush1.msra.mxu0 %v4473
        %4611 = vmatprep.subr.mxu0 0.0
        %4612 = vmatpush1.msra.mxu0 %v4474
        %4613 = vmatprep.subr.mxu0 0.0
        %4614 = vmatpush1.msra.mxu0 %v4475
        %4615 = vmatprep.subr.mxu0 0.0
        %4616 = vmatpush1.msra.mxu0 %v4476
        %4617 = vmatprep.subr.mxu0 0.0
        %4618 = vmatpush1.msra.mxu0 %v4477
        %4619 = vmatprep.subr.mxu0 0.0
        %4620 = vmatpush1.msra.mxu0 %v4478
        %4621 = vmatprep.subr.mxu0 0.0
        %4622 = vmatpush1.msra.mxu0 %v4479
        %4623 = vmatprep.subr.mxu0 0.0
        %4624 = vmatpush1.msra.mxu0 %v4480
        %4625 = vmatprep.subr.mxu0 0.0
        %4626 = vmatpush1.msra.mxu0 %v4481
        %4627 = vmatprep.subr.mxu0 0.0
        %4628 = vmatpush1.msra.mxu0 %v4482
        %4629 = vmatprep.mubr.f32.mxu0 %v4417
        %4630 = vmatmul.mubr.f32.gmra.mrb[0].mxu0 %v4415
        %v4631 = vpop.f32.mrb[0].mxu0
        %v4632 = vadd.f32 %v4557, %v4631
        %v4633 = vpop.f32.mrb[0].mxu0
        %4634 = vmatprep.mubr.f32.mxu0 %v4418
        %4635 = vmatmul.mubr.f32.gmra.mrb[0].mxu0 %v4416
        %v4636 = vpop.f32.mrb[0].mxu0
        %v4637 = vadd.f32 %v4562, %v4636
        %v4638 = vpop.f32.mrb[0].mxu0
        %4639 = vdwg.mxu0
        %v4640 = vmax.f32 %v4632, 0.0
        %v4641 = vmax.f32 %v4637, 0.0
        %v4644 = vrot.slane %v4640, 4
        %v4645 = vrot.slane %v4641, 4
        %v4646 = vsel %vm928, %v4644, %v4645
        %v4649 = vsel %vm928, 0.0, %v4644
        %v4650 = vsel %vm805, %v4646, 0.0
        %v4653 = vrot.slane %v4649, 1
        %v4654 = vrot.slane %v4650, 1
        %v4655 = vsel %vm805, %v4653, %v4654
        %v4658 = vrot.slane %v4649, 2
        %v4659 = vrot.slane %v4650, 2
        %v4660 = vsel %vm846, %v4658, %v4659
        %v4663 = vrot.slane %v4649, 3
        %v4664 = vrot.slane %v4650, 3
        %v4665 = vsel %vm887, %v4663, %v4664
        %v4668 = vrot.slane %v4649, 4
        %v4669 = vrot.slane %v4650, 4
        %v4670 = vsel %vm928, %v4668, %v4669
        %v4673 = vrot.slane %v4649, 5
        %v4674 = vrot.slane %v4650, 5
        %v4675 = vsel %vm969, %v4673, %v4674
        %v4678 = vrot.slane %v4649, 6
        %v4679 = vrot.slane %v4650, 6
        %v4680 = vsel %vm1010, %v4678, %v4679
        %v4681 = vsel %vm1010, %v4679, %v1011
        %v4684 = vrot.slane %v4649, 7
        %v4685 = vrot.slane %v4650, 7
        %v4686 = vsel %vm1051, %v4684, %v4685
        %v4687 = vsel %vm1051, %v4685, %v1052
        %v4690 = vld [vmem:[#allocation7] sm:$0xff]
        %v4691 = vld [vmem:[#allocation7 + $0x8] sm:$0xff]
        %v4692 = vld [vmem:[#allocation7 + $0x10] sm:$0xff]
        %v4693 = vld [vmem:[#allocation7 + $0x18] sm:$0xff]
        %v4694 = vld [vmem:[#allocation7 + $0x20] sm:$0xff]
        %v4695 = vld [vmem:[#allocation7 + $0x28] sm:$0xff]
        %v4696 = vld [vmem:[#allocation7 + $0x30] sm:$0xff]
        %v4697 = vld [vmem:[#allocation7 + $0x38] sm:$0xff]
        %v4698 = vld [vmem:[#allocation7 + $0x40] sm:$0xff]
        %v4699 = vld [vmem:[#allocation7 + $0x48] sm:$0xff]
        %v4700 = vld [vmem:[#allocation7 + $0x50] sm:$0xff]
        %v4701 = vld [vmem:[#allocation7 + $0x58] sm:$0xff]
        %v4702 = vld [vmem:[#allocation7 + $0x60] sm:$0xff]
        %v4703 = vld [vmem:[#allocation7 + $0x68] sm:$0xff]
        %v4704 = vld [vmem:[#allocation7 + $0x70] sm:$0xff]
        %v4705 = vld [vmem:[#allocation7 + $0x78] sm:$0xff]
        %v4706 = vld [vmem:[#allocation7 + $0x80] sm:$0xff]
        %v4707 = vld [vmem:[#allocation7 + $0x88] sm:$0xff]
        %v4708 = vld [vmem:[#allocation7 + $0x90] sm:$0xff]
        %v4709 = vld [vmem:[#allocation7 + $0x98] sm:$0xff]
        %v4710 = vld [vmem:[#allocation7 + $0xa0] sm:$0xff]
        %v4711 = vld [vmem:[#allocation7 + $0xa8] sm:$0xff]
        %v4712 = vld [vmem:[#allocation7 + $0xb0] sm:$0xff]
        %v4713 = vld [vmem:[#allocation7 + $0xb8] sm:$0xff]
        %v4714 = vld [vmem:[#allocation7 + $0xc0] sm:$0xff]
        %v4715 = vld [vmem:[#allocation7 + $0xc8] sm:$0xff]
        %v4716 = vld [vmem:[#allocation7 + $0xd0] sm:$0xff]
        %v4717 = vld [vmem:[#allocation7 + $0xd8] sm:$0xff]
        %v4718 = vld [vmem:[#allocation7 + $0xe0] sm:$0xff]
        %v4719 = vld [vmem:[#allocation7 + $0xe8] sm:$0xff]
        %v4720 = vld [vmem:[#allocation7 + $0xf0] sm:$0xff]
        %v4721 = vld [vmem:[#allocation7 + $0xf8] sm:$0xff]
        %v4722 = vld [vmem:[#allocation7 + $0x100] sm:$0xff]
        %v4723 = vld [vmem:[#allocation7 + $0x108] sm:$0xff]
        %v4724 = vld [vmem:[#allocation7 + $0x110] sm:$0xff]
        %v4725 = vld [vmem:[#allocation7 + $0x118] sm:$0xff]
        %v4726 = vld [vmem:[#allocation7 + $0x120] sm:$0xff]
        %v4727 = vld [vmem:[#allocation7 + $0x128] sm:$0xff]
        %v4728 = vld [vmem:[#allocation7 + $0x130] sm:$0xff]
        %v4729 = vld [vmem:[#allocation7 + $0x138] sm:$0xff]
        %v4730 = vld [vmem:[#allocation7 + $0x140] sm:$0xff]
        %v4731 = vld [vmem:[#allocation7 + $0x148] sm:$0xff]
        %v4732 = vld [vmem:[#allocation7 + $0x150] sm:$0xff]
        %v4733 = vld [vmem:[#allocation7 + $0x158] sm:$0xff]
        %v4734 = vld [vmem:[#allocation7 + $0x160] sm:$0xff]
        %v4735 = vld [vmem:[#allocation7 + $0x168] sm:$0xff]
        %v4736 = vld [vmem:[#allocation7 + $0x170] sm:$0xff]
        %v4737 = vld [vmem:[#allocation7 + $0x178] sm:$0xff]
        %v4738 = vld [vmem:[#allocation7 + $0x180] sm:$0xff]
        %v4739 = vld [vmem:[#allocation7 + $0x188] sm:$0xff]
        %v4740 = vld [vmem:[#allocation7 + $0x190] sm:$0xff]
        %v4741 = vld [vmem:[#allocation7 + $0x198] sm:$0xff]
        %v4742 = vld [vmem:[#allocation7 + $0x1a0] sm:$0xff]
        %v4743 = vld [vmem:[#allocation7 + $0x1a8] sm:$0xff]
        %v4744 = vld [vmem:[#allocation7 + $0x1b0] sm:$0xff]
        %v4745 = vld [vmem:[#allocation7 + $0x1b8] sm:$0xff]
        %v4746 = vld [vmem:[#allocation7 + $0x1c0] sm:$0xff]
        %v4747 = vld [vmem:[#allocation7 + $0x1c8] sm:$0xff]
        %v4748 = vld [vmem:[#allocation7 + $0x1d0] sm:$0xff]
        %v4749 = vld [vmem:[#allocation7 + $0x1d8] sm:$0xff]
        %v4750 = vld [vmem:[#allocation7 + $0x1e0] sm:$0xff]
        %v4751 = vld [vmem:[#allocation7 + $0x1e8] sm:$0xff]
        %v4752 = vld [vmem:[#allocation7 + $0x1f0] sm:$0xff]
        %v4753 = vld [vmem:[#allocation7 + $0x1f8] sm:$0xff]
        %v4754 = vld [vmem:[#allocation7 + $0x200] sm:$0xff]
        %v4755 = vld [vmem:[#allocation7 + $0x208] sm:$0xff]
        %v4756 = vld [vmem:[#allocation7 + $0x210] sm:$0xff]
        %v4757 = vld [vmem:[#allocation7 + $0x218] sm:$0xff]
        %v4758 = vld [vmem:[#allocation7 + $0x220] sm:$0xff]
        %v4759 = vld [vmem:[#allocation7 + $0x228] sm:$0xff]
        %v4760 = vld [vmem:[#allocation7 + $0x230] sm:$0xff]
        %v4761 = vld [vmem:[#allocation7 + $0x238] sm:$0xff]
        %v4762 = vld [vmem:[#allocation7 + $0x240] sm:$0xff]
        %v4763 = vld [vmem:[#allocation7 + $0x248] sm:$0xff]
        %v4764 = vld [vmem:[#allocation7 + $0x250] sm:$0xff]
        %v4765 = vld [vmem:[#allocation7 + $0x258] sm:$0xff]
        %v4766 = vld [vmem:[#allocation7 + $0x260] sm:$0xff]
        %v4767 = vld [vmem:[#allocation7 + $0x268] sm:$0xff]
        %v4768 = vld [vmem:[#allocation7 + $0x270] sm:$0xff]
        %v4769 = vld [vmem:[#allocation7 + $0x278] sm:$0xff]
        %v4770 = vld [vmem:[#allocation7 + $0x280] sm:$0xff]
        %v4771 = vld [vmem:[#allocation7 + $0x288] sm:$0xff]
        %v4772 = vld [vmem:[#allocation7 + $0x290] sm:$0xff]
        %v4773 = vld [vmem:[#allocation7 + $0x298] sm:$0xff]
        %v4774 = vld [vmem:[#allocation7 + $0x2a0] sm:$0xff]
        %v4775 = vld [vmem:[#allocation7 + $0x2a8] sm:$0xff]
        %v4776 = vld [vmem:[#allocation7 + $0x2b0] sm:$0xff]
        %v4777 = vld [vmem:[#allocation7 + $0x2b8] sm:$0xff]
        %v4778 = vld [vmem:[#allocation7 + $0x2c0] sm:$0xff]
        %v4779 = vld [vmem:[#allocation7 + $0x2c8] sm:$0xff]
        %v4780 = vld [vmem:[#allocation7 + $0x2d0] sm:$0xff]
        %v4781 = vld [vmem:[#allocation7 + $0x2d8] sm:$0xff]
        %v4782 = vld [vmem:[#allocation7 + $0x2e0] sm:$0xff]
        %v4783 = vld [vmem:[#allocation7 + $0x2e8] sm:$0xff]
        %v4784 = vld [vmem:[#allocation7 + $0x2f0] sm:$0xff]
        %v4785 = vld [vmem:[#allocation7 + $0x2f8] sm:$0xff]
        %v4786 = vld [vmem:[#allocation7 + $0x300] sm:$0xff]
        %v4787 = vld [vmem:[#allocation7 + $0x308] sm:$0xff]
        %v4788 = vld [vmem:[#allocation7 + $0x310] sm:$0xff]
        %v4789 = vld [vmem:[#allocation7 + $0x318] sm:$0xff]
        %v4790 = vld [vmem:[#allocation7 + $0x320] sm:$0xff]
        %v4791 = vld [vmem:[#allocation7 + $0x328] sm:$0xff]
        %v4792 = vld [vmem:[#allocation7 + $0x330] sm:$0xff]
        %v4793 = vld [vmem:[#allocation7 + $0x338] sm:$0xff]
        %v4794 = vld [vmem:[#allocation7 + $0x340] sm:$0xff]
        %v4795 = vld [vmem:[#allocation7 + $0x348] sm:$0xff]
        %v4796 = vld [vmem:[#allocation7 + $0x350] sm:$0xff]
        %v4797 = vld [vmem:[#allocation7 + $0x358] sm:$0xff]
        %v4798 = vld [vmem:[#allocation7 + $0x360] sm:$0xff]
        %v4799 = vld [vmem:[#allocation7 + $0x368] sm:$0xff]
        %v4800 = vld [vmem:[#allocation7 + $0x370] sm:$0xff]
        %v4801 = vld [vmem:[#allocation7 + $0x378] sm:$0xff]
        %v4802 = vld [vmem:[#allocation7 + $0x380] sm:$0xff]
        %v4803 = vld [vmem:[#allocation7 + $0x388] sm:$0xff]
        %v4804 = vld [vmem:[#allocation7 + $0x390] sm:$0xff]
        %v4805 = vld [vmem:[#allocation7 + $0x398] sm:$0xff]
        %v4806 = vld [vmem:[#allocation7 + $0x3a0] sm:$0xff]
        %v4807 = vld [vmem:[#allocation7 + $0x3a8] sm:$0xff]
        %v4808 = vld [vmem:[#allocation7 + $0x3b0] sm:$0xff]
        %v4809 = vld [vmem:[#allocation7 + $0x3b8] sm:$0xff]
        %v4810 = vld [vmem:[#allocation7 + $0x3c0] sm:$0xff]
        %v4811 = vld [vmem:[#allocation7 + $0x3c8] sm:$0xff]
        %v4812 = vld [vmem:[#allocation7 + $0x3d0] sm:$0xff]
        %v4813 = vld [vmem:[#allocation7 + $0x3d8] sm:$0xff]
        %v4814 = vld [vmem:[#allocation7 + $0x3e0] sm:$0xff]
        %v4815 = vld [vmem:[#allocation7 + $0x3e8] sm:$0xff]
        %v4816 = vld [vmem:[#allocation7 + $0x3f0] sm:$0xff]
        %v4817 = vld [vmem:[#allocation7 + $0x3f8] sm:$0xff]
        %v4818 = vld [vmem:[%s16] sm:$0x1]
        %v4820 = vlaneseq
        %v4821 = vshrl.u32 %v4820, 7
        %v4822 = vsub.s32 0, %v4821
        %v4823 = vrot.slane %v4818, %v4822
        %4825 = vmatprep.subr.mxu0 0.0
        %4826 = vmatpush1.msra.mxu0 %v4690
        %4827 = vmatprep.subr.mxu0 0.0
        %4828 = vmatpush1.msra.mxu0 %v4691
        %4829 = vmatprep.subr.mxu0 0.0
        %4830 = vmatpush1.msra.mxu0 %v4692
        %4831 = vmatprep.subr.mxu0 0.0
        %4832 = vmatpush1.msra.mxu0 %v4693
        %4833 = vmatprep.subr.mxu0 0.0
        %4834 = vmatpush1.msra.mxu0 %v4694
        %4835 = vmatprep.subr.mxu0 0.0
        %4836 = vmatpush1.msra.mxu0 %v4695
        %4837 = vmatprep.subr.mxu0 0.0
        %4838 = vmatpush1.msra.mxu0 %v4696
        %4839 = vmatprep.subr.mxu0 0.0
        %4840 = vmatpush1.msra.mxu0 %v4697
        %4841 = vmatprep.subr.mxu0 0.0
        %4842 = vmatpush1.msra.mxu0 %v4698
        %4843 = vmatprep.subr.mxu0 0.0
        %4844 = vmatpush1.msra.mxu0 %v4699
        %4845 = vmatprep.subr.mxu0 0.0
        %4846 = vmatpush1.msra.mxu0 %v4700
        %4847 = vmatprep.subr.mxu0 0.0
        %4848 = vmatpush1.msra.mxu0 %v4701
        %4849 = vmatprep.subr.mxu0 0.0
        %4850 = vmatpush1.msra.mxu0 %v4702
        %4851 = vmatprep.subr.mxu0 0.0
        %4852 = vmatpush1.msra.mxu0 %v4703
        %4853 = vmatprep.subr.mxu0 0.0
        %4854 = vmatpush1.msra.mxu0 %v4704
        %4855 = vmatprep.subr.mxu0 0.0
        %4856 = vmatpush1.msra.mxu0 %v4705
        %4857 = vmatprep.subr.mxu0 0.0
        %4858 = vmatpush1.msra.mxu0 %v4706
        %4859 = vmatprep.subr.mxu0 0.0
        %4860 = vmatpush1.msra.mxu0 %v4707
        %4861 = vmatprep.subr.mxu0 0.0
        %4862 = vmatpush1.msra.mxu0 %v4708
        %4863 = vmatprep.subr.mxu0 0.0
        %4864 = vmatpush1.msra.mxu0 %v4709
        %4865 = vmatprep.subr.mxu0 0.0
        %4866 = vmatpush1.msra.mxu0 %v4710
        %4867 = vmatprep.subr.mxu0 0.0
        %4868 = vmatpush1.msra.mxu0 %v4711
        %4869 = vmatprep.subr.mxu0 0.0
        %4870 = vmatpush1.msra.mxu0 %v4712
        %4871 = vmatprep.subr.mxu0 0.0
        %4872 = vmatpush1.msra.mxu0 %v4713
        %4873 = vmatprep.subr.mxu0 0.0
        %4874 = vmatpush1.msra.mxu0 %v4714
        %4875 = vmatprep.subr.mxu0 0.0
        %4876 = vmatpush1.msra.mxu0 %v4715
        %4877 = vmatprep.subr.mxu0 0.0
        %4878 = vmatpush1.msra.mxu0 %v4716
        %4879 = vmatprep.subr.mxu0 0.0
        %4880 = vmatpush1.msra.mxu0 %v4717
        %4881 = vmatprep.subr.mxu0 0.0
        %4882 = vmatpush1.msra.mxu0 %v4718
        %4883 = vmatprep.subr.mxu0 0.0
        %4884 = vmatpush1.msra.mxu0 %v4719
        %4885 = vmatprep.subr.mxu0 0.0
        %4886 = vmatpush1.msra.mxu0 %v4720
        %4887 = vmatprep.subr.mxu0 0.0
        %4888 = vmatpush1.msra.mxu0 %v4721
        %4889 = vmatprep.mubr.f32.mxu0 %v4655
        %4890 = vmatmul.mubr.f32.gmra.mrb[0].mxu0 %v4649
        %v4891 = vpop.f32.mrb[0].mxu0
        %v4892 = vadd.f32 %v4823, %v4891
        %v4893 = vpop.f32.mrb[0].mxu0
        %4894 = vmatprep.mubr.f32.mxu0 %v4654
        %4895 = vmatmul.mubr.f32.gmra.mrb[0].mxu0 %v4650
        %v4896 = vpop.f32.mrb[0].mxu0
        %v4897 = vadd.f32 %v4823, %v4896
        %v4898 = vpop.f32.mrb[0].mxu0
        %4899 = vdwg.mxu0
        %4900 = vmatprep.subr.mxu0 0.0
        %4901 = vmatpush1.msra.mxu0 %v4722
        %4902 = vmatprep.subr.mxu0 0.0
        %4903 = vmatpush1.msra.mxu0 %v4723
        %4904 = vmatprep.subr.mxu0 0.0
        %4905 = vmatpush1.msra.mxu0 %v4724
        %4906 = vmatprep.subr.mxu0 0.0
        %4907 = vmatpush1.msra.mxu0 %v4725
        %4908 = vmatprep.subr.mxu0 0.0
        %4909 = vmatpush1.msra.mxu0 %v4726
        %4910 = vmatprep.subr.mxu0 0.0
        %4911 = vmatpush1.msra.mxu0 %v4727
        %4912 = vmatprep.subr.mxu0 0.0
        %4913 = vmatpush1.msra.mxu0 %v4728
        %4914 = vmatprep.subr.mxu0 0.0
        %4915 = vmatpush1.msra.mxu0 %v4729
        %4916 = vmatprep.subr.mxu0 0.0
        %4917 = vmatpush1.msra.mxu0 %v4730
        %4918 = vmatprep.subr.mxu0 0.0
        %4919 = vmatpush1.msra.mxu0 %v4731
        %4920 = vmatprep.subr.mxu0 0.0
        %4921 = vmatpush1.msra.mxu0 %v4732
        %4922 = vmatprep.subr.mxu0 0.0
        %4923 = vmatpush1.msra.mxu0 %v4733
        %4924 = vmatprep.subr.mxu0 0.0
        %4925 = vmatpush1.msra.mxu0 %v4734
        %4926 = vmatprep.subr.mxu0 0.0
        %4927 = vmatpush1.msra.mxu0 %v4735
        %4928 = vmatprep.subr.mxu0 0.0
        %4929 = vmatpush1.msra.mxu0 %v4736
        %4930 = vmatprep.subr.mxu0 0.0
        %4931 = vmatpush1.msra.mxu0 %v4737
        %4932 = vmatprep.subr.mxu0 0.0
        %4933 = vmatpush1.msra.mxu0 %v4738
        %4934 = vmatprep.subr.mxu0 0.0
        %4935 = vmatpush1.msra.mxu0 %v4739
        %4936 = vmatprep.subr.mxu0 0.0
        %4937 = vmatpush1.msra.mxu0 %v4740
        %4938 = vmatprep.subr.mxu0 0.0
        %4939 = vmatpush1.msra.mxu0 %v4741
        %4940 = vmatprep.subr.mxu0 0.0
        %4941 = vmatpush1.msra.mxu0 %v4742
        %4942 = vmatprep.subr.mxu0 0.0
        %4943 = vmatpush1.msra.mxu0 %v4743
        %4944 = vmatprep.subr.mxu0 0.0
        %4945 = vmatpush1.msra.mxu0 %v4744
        %4946 = vmatprep.subr.mxu0 0.0
        %4947 = vmatpush1.msra.mxu0 %v4745
        %4948 = vmatprep.subr.mxu0 0.0
        %4949 = vmatpush1.msra.mxu0 %v4746
        %4950 = vmatprep.subr.mxu0 0.0
        %4951 = vmatpush1.msra.mxu0 %v4747
        %4952 = vmatprep.subr.mxu0 0.0
        %4953 = vmatpush1.msra.mxu0 %v4748
        %4954 = vmatprep.subr.mxu0 0.0
        %4955 = vmatpush1.msra.mxu0 %v4749
        %4956 = vmatprep.subr.mxu0 0.0
        %4957 = vmatpush1.msra.mxu0 %v4750
        %4958 = vmatprep.subr.mxu0 0.0
        %4959 = vmatpush1.msra.mxu0 %v4751
        %4960 = vmatprep.subr.mxu0 0.0
        %4961 = vmatpush1.msra.mxu0 %v4752
        %4962 = vmatprep.subr.mxu0 0.0
        %4963 = vmatpush1.msra.mxu0 %v4753
        %4964 = vmatprep.mubr.f32.mxu0 %v4665
        %4965 = vmatmul.mubr.f32.gmra.mrb[0].mxu0 %v4660
        %v4966 = vpop.f32.mrb[0].mxu0
        %v4967 = vadd.f32 %v4892, %v4966
        %v4968 = vpop.f32.mrb[0].mxu0
        %4969 = vmatprep.mubr.f32.mxu0 %v4664
        %4970 = vmatmul.mubr.f32.gmra.mrb[0].mxu0 %v4659
        %v4971 = vpop.f32.mrb[0].mxu0
        %v4972 = vadd.f32 %v4897, %v4971
        %v4973 = vpop.f32.mrb[0].mxu0
        %4974 = vdwg.mxu0
        %4975 = vmatprep.subr.mxu0 0.0
        %4976 = vmatpush1.msra.mxu0 %v4754
        %4977 = vmatprep.subr.mxu0 0.0
        %4978 = vmatpush1.msra.mxu0 %v4755
        %4979 = vmatprep.subr.mxu0 0.0
        %4980 = vmatpush1.msra.mxu0 %v4756
        %4981 = vmatprep.subr.mxu0 0.0
        %4982 = vmatpush1.msra.mxu0 %v4757
        %4983 = vmatprep.subr.mxu0 0.0
        %4984 = vmatpush1.msra.mxu0 %v4758
        %4985 = vmatprep.subr.mxu0 0.0
        %4986 = vmatpush1.msra.mxu0 %v4759
        %4987 = vmatprep.subr.mxu0 0.0
        %4988 = vmatpush1.msra.mxu0 %v4760
        %4989 = vmatprep.subr.mxu0 0.0
        %4990 = vmatpush1.msra.mxu0 %v4761
        %4991 = vmatprep.subr.mxu0 0.0
        %4992 = vmatpush1.msra.mxu0 %v4762
        %4993 = vmatprep.subr.mxu0 0.0
        %4994 = vmatpush1.msra.mxu0 %v4763
        %4995 = vmatprep.subr.mxu0 0.0
        %4996 = vmatpush1.msra.mxu0 %v4764
        %4997 = vmatprep.subr.mxu0 0.0
        %4998 = vmatpush1.msra.mxu0 %v4765
        %4999 = vmatprep.subr.mxu0 0.0
        %5000 = vmatpush1.msra.mxu0 %v4766
        %5001 = vmatprep.subr.mxu0 0.0
        %5002 = vmatpush1.msra.mxu0 %v4767
        %5003 = vmatprep.subr.mxu0 0.0
        %5004 = vmatpush1.msra.mxu0 %v4768
        %5005 = vmatprep.subr.mxu0 0.0
        %5006 = vmatpush1.msra.mxu0 %v4769
        %5007 = vmatprep.subr.mxu0 0.0
        %5008 = vmatpush1.msra.mxu0 %v4770
        %5009 = vmatprep.subr.mxu0 0.0
        %5010 = vmatpush1.msra.mxu0 %v4771
        %5011 = vmatprep.subr.mxu0 0.0
        %5012 = vmatpush1.msra.mxu0 %v4772
        %5013 = vmatprep.subr.mxu0 0.0
        %5014 = vmatpush1.msra.mxu0 %v4773
        %5015 = vmatprep.subr.mxu0 0.0
        %5016 = vmatpush1.msra.mxu0 %v4774
        %5017 = vmatprep.subr.mxu0 0.0
        %5018 = vmatpush1.msra.mxu0 %v4775
        %5019 = vmatprep.subr.mxu0 0.0
        %5020 = vmatpush1.msra.mxu0 %v4776
        %5021 = vmatprep.subr.mxu0 0.0
        %5022 = vmatpush1.msra.mxu0 %v4777
        %5023 = vmatprep.subr.mxu0 0.0
        %5024 = vmatpush1.msra.mxu0 %v4778
        %5025 = vmatprep.subr.mxu0 0.0
        %5026 = vmatpush1.msra.mxu0 %v4779
        %5027 = vmatprep.subr.mxu0 0.0
        %5028 = vmatpush1.msra.mxu0 %v4780
        %5029 = vmatprep.subr.mxu0 0.0
        %5030 = vmatpush1.msra.mxu0 %v4781
        %5031 = vmatprep.subr.mxu0 0.0
        %5032 = vmatpush1.msra.mxu0 %v4782
        %5033 = vmatprep.subr.mxu0 0.0
        %5034 = vmatpush1.msra.mxu0 %v4783
        %5035 = vmatprep.subr.mxu0 0.0
        %5036 = vmatpush1.msra.mxu0 %v4784
        %5037 = vmatprep.subr.mxu0 0.0
        %5038 = vmatpush1.msra.mxu0 %v4785
        %5039 = vmatprep.mubr.f32.mxu0 %v4675
        %5040 = vmatmul.mubr.f32.gmra.mrb[0].mxu0 %v4670
        %v5041 = vpop.f32.mrb[0].mxu0
        %v5042 = vadd.f32 %v4967, %v5041
        %v5043 = vpop.f32.mrb[0].mxu0
        %5044 = vmatprep.mubr.f32.mxu0 %v4674
        %5045 = vmatmul.mubr.f32.gmra.mrb[0].mxu0 %v4669
        %v5046 = vpop.f32.mrb[0].mxu0
        %v5047 = vadd.f32 %v4972, %v5046
        %v5048 = vpop.f32.mrb[0].mxu0
        %5049 = vdwg.mxu0
        %5050 = vmatprep.subr.mxu0 0.0
        %5051 = vmatpush1.msra.mxu0 %v4786
        %5052 = vmatprep.subr.mxu0 0.0
        %5053 = vmatpush1.msra.mxu0 %v4787
        %5054 = vmatprep.subr.mxu0 0.0
        %5055 = vmatpush1.msra.mxu0 %v4788
        %5056 = vmatprep.subr.mxu0 0.0
        %5057 = vmatpush1.msra.mxu0 %v4789
        %5058 = vmatprep.subr.mxu0 0.0
        %5059 = vmatpush1.msra.mxu0 %v4790
        %5060 = vmatprep.subr.mxu0 0.0
        %5061 = vmatpush1.msra.mxu0 %v4791
        %5062 = vmatprep.subr.mxu0 0.0
        %5063 = vmatpush1.msra.mxu0 %v4792
        %5064 = vmatprep.subr.mxu0 0.0
        %5065 = vmatpush1.msra.mxu0 %v4793
        %5066 = vmatprep.subr.mxu0 0.0
        %5067 = vmatpush1.msra.mxu0 %v4794
        %5068 = vmatprep.subr.mxu0 0.0
        %5069 = vmatpush1.msra.mxu0 %v4795
        %5070 = vmatprep.subr.mxu0 0.0
        %5071 = vmatpush1.msra.mxu0 %v4796
        %5072 = vmatprep.subr.mxu0 0.0
        %5073 = vmatpush1.msra.mxu0 %v4797
        %5074 = vmatprep.subr.mxu0 0.0
        %5075 = vmatpush1.msra.mxu0 %v4798
        %5076 = vmatprep.subr.mxu0 0.0
        %5077 = vmatpush1.msra.mxu0 %v4799
        %5078 = vmatprep.subr.mxu0 0.0
        %5079 = vmatpush1.msra.mxu0 %v4800
        %5080 = vmatprep.subr.mxu0 0.0
        %5081 = vmatpush1.msra.mxu0 %v4801
        %5082 = vmatprep.subr.mxu0 0.0
        %5083 = vmatpush1.msra.mxu0 %v4802
        %5084 = vmatprep.subr.mxu0 0.0
        %5085 = vmatpush1.msra.mxu0 %v4803
        %5086 = vmatprep.subr.mxu0 0.0
        %5087 = vmatpush1.msra.mxu0 %v4804
        %5088 = vmatprep.subr.mxu0 0.0
        %5089 = vmatpush1.msra.mxu0 %v4805
        %5090 = vmatprep.subr.mxu0 0.0
        %5091 = vmatpush1.msra.mxu0 %v4806
        %5092 = vmatprep.subr.mxu0 0.0
        %5093 = vmatpush1.msra.mxu0 %v4807
        %5094 = vmatprep.subr.mxu0 0.0
        %5095 = vmatpush1.msra.mxu0 %v4808
        %5096 = vmatprep.subr.mxu0 0.0
        %5097 = vmatpush1.msra.mxu0 %v4809
        %5098 = vmatprep.subr.mxu0 0.0
        %5099 = vmatpush1.msra.mxu0 %v4810
        %5100 = vmatprep.subr.mxu0 0.0
        %5101 = vmatpush1.msra.mxu0 %v4811
        %5102 = vmatprep.subr.mxu0 0.0
        %5103 = vmatpush1.msra.mxu0 %v4812
        %5104 = vmatprep.subr.mxu0 0.0
        %5105 = vmatpush1.msra.mxu0 %v4813
        %5106 = vmatprep.subr.mxu0 0.0
        %5107 = vmatpush1.msra.mxu0 %v4814
        %5108 = vmatprep.subr.mxu0 0.0
        %5109 = vmatpush1.msra.mxu0 %v4815
        %5110 = vmatprep.subr.mxu0 0.0
        %5111 = vmatpush1.msra.mxu0 %v4816
        %5112 = vmatprep.subr.mxu0 0.0
        %5113 = vmatpush1.msra.mxu0 %v4817
        %5114 = vmatprep.mubr.f32.mxu0 %v4686
        %5115 = vmatmul.mubr.f32.gmra.mrb[0].mxu0 %v4680
        %v5116 = vpop.f32.mrb[0].mxu0
        %v5117 = vadd.f32 %v5042, %v5116
        %v5118 = vpop.f32.mrb[0].mxu0
        %5119 = vmatprep.mubr.f32.mxu0 %v4687
        %5120 = vmatmul.mubr.f32.gmra.mrb[0].mxu0 %v4681
        %v5121 = vpop.f32.mrb[0].mxu0
        %v5122 = vadd.f32 %v5047, %v5121
        %v5123 = vpop.f32.mrb[0].mxu0
        %5124 = vdwg.mxu0
        %v5125 = vmax.f32 %v5117, 0.0
        %v5126 = vmax.f32 %v5122, 0.0
        %v5127 = vld [vmem:[%s17] sm:$0xff]
        %v5128 = vld [vmem:[%s17 + $0x8] sm:$0xff]
        %v5129 = vld [vmem:[%s17 + $0x10] sm:$0xff]
        %v5130 = vld [vmem:[%s17 + $0x18] sm:$0xff]
        %v5131 = vld [vmem:[%s17 + $0x20] sm:$0xff]
        %v5132 = vld [vmem:[%s17 + $0x28] sm:$0xff]
        %v5133 = vld [vmem:[%s17 + $0x30] sm:$0xff]
        %v5134 = vld [vmem:[%s17 + $0x38] sm:$0xff]
        %v5135 = vsel %vm2047, %v4339, 0
        %v5137 = vsel %vm2047, %v4344, 0
        %5139 = vmatprep.subr.mxu0 0.0
        %5140 = vmatpush1.msra.mxu0 %v5127
        %5141 = vmatprep.subr.mxu0 0.0
        %5142 = vmatpush1.msra.mxu0 %v5128
        %5143 = vmatprep.subr.mxu0 0.0
        %5144 = vmatpush1.msra.mxu0 %v5129
        %5145 = vmatprep.subr.mxu0 0.0
        %5146 = vmatpush1.msra.mxu0 %v5130
        %5147 = vmatprep.subr.mxu0 0.0
        %5148 = vmatpush1.msra.mxu0 %v5131
        %5149 = vmatprep.subr.mxu0 0.0
        %5150 = vmatpush1.msra.mxu0 %v5132
        %5151 = vmatprep.subr.mxu0 0.0
        %5152 = vmatpush1.msra.mxu0 %v5133
        %5153 = vmatprep.subr.mxu0 0.0
        %5154 = vmatpush1.msra.mxu0 %v5134
        %5155 = vmatprep.subr.mxu0 0.0
        %5156 = vmatpush1.msra.mxu0 0.0
        %5157 = vmatprep.subr.mxu0 0.0
        %5158 = vmatpush1.msra.mxu0 0.0
        %5159 = vmatprep.subr.mxu0 0.0
        %5160 = vmatpush1.msra.mxu0 0.0
        %5161 = vmatprep.subr.mxu0 0.0
        %5162 = vmatpush1.msra.mxu0 0.0
        %5163 = vmatprep.subr.mxu0 0.0
        %5164 = vmatpush1.msra.mxu0 0.0
        %5165 = vmatprep.subr.mxu0 0.0
        %5166 = vmatpush1.msra.mxu0 0.0
        %5167 = vmatprep.subr.mxu0 0.0
        %5168 = vmatpush1.msra.mxu0 0.0
        %5169 = vmatprep.subr.mxu0 0.0
        %5170 = vmatpush1.msra.mxu0 0.0
        %5171 = vmatprep.subr.mxu0 0.0
        %5172 = vmatpush1.msra.mxu0 0.0
        %5173 = vmatprep.subr.mxu0 0.0
        %5174 = vmatpush1.msra.mxu0 0.0
        %5175 = vmatprep.subr.mxu0 0.0
        %5176 = vmatpush1.msra.mxu0 0.0
        %5177 = vmatprep.subr.mxu0 0.0
        %5178 = vmatpush1.msra.mxu0 0.0
        %5179 = vmatprep.subr.mxu0 0.0
        %5180 = vmatpush1.msra.mxu0 0.0
        %5181 = vmatprep.subr.mxu0 0.0
        %5182 = vmatpush1.msra.mxu0 0.0
        %5183 = vmatprep.subr.mxu0 0.0
        %5184 = vmatpush1.msra.mxu0 0.0
        %5185 = vmatprep.subr.mxu0 0.0
        %5186 = vmatpush1.msra.mxu0 0.0
        %5187 = vmatprep.subr.mxu0 0.0
        %5188 = vmatpush1.msra.mxu0 0.0
        %5189 = vmatprep.subr.mxu0 0.0
        %5190 = vmatpush1.msra.mxu0 0.0
        %5191 = vmatprep.subr.mxu0 0.0
        %5192 = vmatpush1.msra.mxu0 0.0
        %5193 = vmatprep.subr.mxu0 0.0
        %5194 = vmatpush1.msra.mxu0 0.0
        %5195 = vmatprep.subr.mxu0 0.0
        %5196 = vmatpush1.msra.mxu0 0.0
        %5197 = vmatprep.subr.mxu0 0.0
        %5198 = vmatpush1.msra.mxu0 0.0
        %5199 = vmatprep.subr.mxu0 0.0
        %5200 = vmatpush1.msra.mxu0 0.0
        %5201 = vmatprep.subr.mxu0 0.0
        %5202 = vmatpush1.msra.mxu0 0.0
        %5203 = vmatprep.mubr.f32.mxu0 0.0
        %5204 = vmatmul.mubr.f32.gmra.mrb[0].mxu0 %v5135
        %v5205 = vpop.f32.mrb[0].mxu0
        %v5206 = vadd.f32 0.0, %v5205
        %v5207 = vpop.f32.mrb[0].mxu0
        %5208 = vmatprep.mubr.f32.mxu0 0.0
        %5209 = vmatmul.mubr.f32.gmra.mrb[0].mxu0 %v5137
        %v5210 = vpop.f32.mrb[0].mxu0
        %v5211 = vadd.f32 0.0, %v5210
        %v5212 = vpop.f32.mrb[0].mxu0
        %5213 = vdwg.mxu0
        %v5214 = vadd.f32 %v5125, %v5206
        %v5215 = vadd.f32 %v5126, %v5211
        %v5216 = vld [vmem:[%s18] sm:$0x1]
        %v5218 = vlaneseq
        %v5219 = vshrl.u32 %v5218, 7
        %v5220 = vsub.s32 0, %v5219
        %v5221 = vrot.slane %v5216, %v5220
        %v5223 = vadd.f32 %v5214, %v5221
        %v5224 = vadd.f32 %v5215, %v5221
        %v5225 = vsel %vm969, %v5224, -inf
        %v5226 = vmax.f32 %v5223, %v5225
        %v5227 = vrot.slane %v5226, 4
        %v5228 = vmax.f32 %v5226, %v5227
        %v5229 = vrot.slane %v5228, 2
        %v5230 = vmax.f32 %v5228, %v5229
        %v5231 = vrot.slane %v5230, 1
        %v5232 = vmax.f32 %v5230, %v5231
        %5233 = vst [vmem:[%s783] sm:$0x1] %v5232
        %v5234 = vld [vmem:[%s19] sm:$0xff]
        %v5235 = vld [vmem:[%s19 + $0x8] sm:$0xff]
        %v5236 = vld [vmem:[%s19 + $0x10] sm:$0xff]
        %v5237 = vld [vmem:[%s19 + $0x18] sm:$0xff]
        %v5238 = vld [vmem:[%s19 + $0x20] sm:$0xff]
        %v5239 = vld [vmem:[%s19 + $0x28] sm:$0xff]
        %v5240 = vld [vmem:[%s19 + $0x30] sm:$0xff]
        %v5241 = vld [vmem:[%s19 + $0x38] sm:$0xff]
        %v5242 = vld [vmem:[%s19 + $0x40] sm:$0xff]
        %v5243 = vld [vmem:[%s19 + $0x48] sm:$0xff]
        %v5244 = vld [vmem:[%s19 + $0x50] sm:$0xff]
        %v5245 = vld [vmem:[%s19 + $0x58] sm:$0xff]
        %v5246 = vld [vmem:[%s19 + $0x60] sm:$0xff]
        %v5247 = vld [vmem:[%s19 + $0x68] sm:$0xff]
        %v5248 = vld [vmem:[%s19 + $0x70] sm:$0xff]
        %v5249 = vld [vmem:[%s19 + $0x78] sm:$0xff]
        %v5250 = vld [vmem:[%s19 + $0x80] sm:$0xff]
        %v5251 = vld [vmem:[%s19 + $0x88] sm:$0xff]
        %v5252 = vld [vmem:[%s19 + $0x90] sm:$0xff]
        %v5253 = vld [vmem:[%s19 + $0x98] sm:$0xff]
        %v5254 = vld [vmem:[%s19 + $0xa0] sm:$0xff]
        %v5255 = vld [vmem:[%s19 + $0xa8] sm:$0xff]
        %v5256 = vld [vmem:[%s19 + $0xb0] sm:$0xff]
        %v5257 = vld [vmem:[%s19 + $0xb8] sm:$0xff]
        %v5258 = vld [vmem:[%s19 + $0xc0] sm:$0xff]
        %v5259 = vld [vmem:[%s19 + $0xc8] sm:$0xff]
        %v5260 = vld [vmem:[%s19 + $0xd0] sm:$0xff]
        %v5261 = vld [vmem:[%s19 + $0xd8] sm:$0xff]
        %v5262 = vld [vmem:[%s19 + $0xe0] sm:$0xff]
        %v5263 = vld [vmem:[%s19 + $0xe8] sm:$0xff]
        %v5264 = vld [vmem:[%s19 + $0xf0] sm:$0xff]
        %v5265 = vld [vmem:[%s19 + $0xf8] sm:$0xff]
        %v5266 = vld [vmem:[%s19 + $0x100] sm:$0xff]
        %v5267 = vld [vmem:[%s19 + $0x108] sm:$0xff]
        %v5268 = vld [vmem:[%s19 + $0x110] sm:$0xff]
        %v5269 = vld [vmem:[%s19 + $0x118] sm:$0xff]
        %v5270 = vld [vmem:[%s19 + $0x120] sm:$0xff]
        %v5271 = vld [vmem:[%s19 + $0x128] sm:$0xff]
        %v5272 = vld [vmem:[%s19 + $0x130] sm:$0xff]
        %v5273 = vld [vmem:[%s19 + $0x138] sm:$0xff]
        %v5274 = vld [vmem:[%s19 + $0x140] sm:$0xff]
        %v5275 = vld [vmem:[%s19 + $0x148] sm:$0xff]
        %v5276 = vld [vmem:[%s19 + $0x150] sm:$0xff]
        %v5277 = vld [vmem:[%s19 + $0x158] sm:$0xff]
        %v5278 = vld [vmem:[%s19 + $0x160] sm:$0xff]
        %v5279 = vld [vmem:[%s19 + $0x168] sm:$0xff]
        %v5280 = vld [vmem:[%s19 + $0x170] sm:$0xff]
        %v5281 = vld [vmem:[%s19 + $0x178] sm:$0xff]
        %v5282 = vld [vmem:[%s20] sm:$0x7]
        %v5284 = vlaneseq
        %v5285 = vshrl.u32 %v5284, 7
        %v5286 = vsub.s32 0, %v5285
        %v5287 = vrot.slane %v5282, %v5286
        %v5288 = vlaneseq
        %v5289 = vshrl.u32 %v5288, 7
        %v5290 = vsub.s32 1, %v5289
        %v5291 = vrot.slane %v5282, %v5290
        %v5292 = vlaneseq
        %v5293 = vshrl.u32 %v5292, 7
        %v5294 = vsub.s32 2, %v5293
        %v5295 = vrot.slane %v5282, %v5294
        %5299 = vmatprep.subr.mxu0 %v5235
        %5300 = vmatpush1.msra.mxu0 %v5234
        %5301 = vmatprep.subr.mxu0 %v5238
        %5302 = vmatpush1.msra.mxu0 %v5237
        %5303 = vmatprep.subr.mxu0 %v5241
        %5304 = vmatpush1.msra.mxu0 %v5240
        %5305 = vmatprep.subr.mxu0 %v5244
        %5306 = vmatpush1.msra.mxu0 %v5243
        %5307 = vmatprep.subr.mxu0 %v5247
        %5308 = vmatpush1.msra.mxu0 %v5246
        %5309 = vmatprep.subr.mxu0 %v5250
        %5310 = vmatpush1.msra.mxu0 %v5249
        %5311 = vmatprep.subr.mxu0 %v5253
        %5312 = vmatpush1.msra.mxu0 %v5252
        %5313 = vmatprep.subr.mxu0 %v5256
        %5314 = vmatpush1.msra.mxu0 %v5255
        %5315 = vmatprep.subr.mxu0 %v5259
        %5316 = vmatpush1.msra.mxu0 %v5258
        %5317 = vmatprep.subr.mxu0 %v5262
        %5318 = vmatpush1.msra.mxu0 %v5261
        %5319 = vmatprep.subr.mxu0 %v5265
        %5320 = vmatpush1.msra.mxu0 %v5264
        %5321 = vmatprep.subr.mxu0 %v5268
        %5322 = vmatpush1.msra.mxu0 %v5267
        %5323 = vmatprep.subr.mxu0 %v5271
        %5324 = vmatpush1.msra.mxu0 %v5270
        %5325 = vmatprep.subr.mxu0 %v5274
        %5326 = vmatpush1.msra.mxu0 %v5273
        %5327 = vmatprep.subr.mxu0 %v5277
        %5328 = vmatpush1.msra.mxu0 %v5276
        %5329 = vmatprep.subr.mxu0 %v5280
        %5330 = vmatpush1.msra.mxu0 %v5279
        %5331 = vmatprep.subr.mxu0 0.0
        %5332 = vmatpush1.msra.mxu0 0.0
        %5333 = vmatprep.subr.mxu0 0.0
        %5334 = vmatpush1.msra.mxu0 0.0
        %5335 = vmatprep.subr.mxu0 0.0
        %5336 = vmatpush1.msra.mxu0 0.0
        %5337 = vmatprep.subr.mxu0 0.0
        %5338 = vmatpush1.msra.mxu0 0.0
        %5339 = vmatprep.subr.mxu0 0.0
        %5340 = vmatpush1.msra.mxu0 0.0
        %5341 = vmatprep.subr.mxu0 0.0
        %5342 = vmatpush1.msra.mxu0 0.0
        %5343 = vmatprep.subr.mxu0 0.0
        %5344 = vmatpush1.msra.mxu0 0.0
        %5345 = vmatprep.subr.mxu0 0.0
        %5346 = vmatpush1.msra.mxu0 0.0
        %5347 = vmatprep.subr.mxu0 0.0
        %5348 = vmatpush1.msra.mxu0 0.0
        %5349 = vmatprep.subr.mxu0 0.0
        %5350 = vmatpush1.msra.mxu0 0.0
        %5351 = vmatprep.subr.mxu0 0.0
        %5352 = vmatpush1.msra.mxu0 0.0
        %5353 = vmatprep.subr.mxu0 0.0
        %5354 = vmatpush1.msra.mxu0 0.0
        %5355 = vmatprep.subr.mxu0 0.0
        %5356 = vmatpush1.msra.mxu0 0.0
        %5357 = vmatprep.subr.mxu0 0.0
        %5358 = vmatpush1.msra.mxu0 0.0
        %5359 = vmatprep.subr.mxu0 0.0
        %5360 = vmatpush1.msra.mxu0 0.0
        %5361 = vmatprep.subr.mxu0 0.0
        %5362 = vmatpush1.msra.mxu0 0.0
        %5363 = vmatprep.mubr.f32.mxu0 0.0
        %5364 = vmatmul.mubr.f32.gmra.mrb[0].mxu0 %v5232
        %v5365 = vpop.f32.mrb[0].mxu0
        %v5366 = vadd.f32 %v5287, %v5365
        %v5367 = vpop.f32.mrb[0].mxu0
        %v5368 = vadd.f32 %v5291, %v5367
        %5369 = vdwg.mxu0
        %5370 = vmatprep.subr.mxu0 0.0
        %5371 = vmatpush1.msra.mxu0 %v5236
        %5372 = vmatprep.subr.mxu0 0.0
        %5373 = vmatpush1.msra.mxu0 %v5239
        %5374 = vmatprep.subr.mxu0 0.0
        %5375 = vmatpush1.msra.mxu0 %v5242
        %5376 = vmatprep.subr.mxu0 0.0
        %5377 = vmatpush1.msra.mxu0 %v5245
        %5378 = vmatprep.subr.mxu0 0.0
        %5379 = vmatpush1.msra.mxu0 %v5248
        %5380 = vmatprep.subr.mxu0 0.0
        %5381 = vmatpush1.msra.mxu0 %v5251
        %5382 = vmatprep.subr.mxu0 0.0
        %5383 = vmatpush1.msra.mxu0 %v5254
        %5384 = vmatprep.subr.mxu0 0.0
        %5385 = vmatpush1.msra.mxu0 %v5257
        %5386 = vmatprep.subr.mxu0 0.0
        %5387 = vmatpush1.msra.mxu0 %v5260
        %5388 = vmatprep.subr.mxu0 0.0
        %5389 = vmatpush1.msra.mxu0 %v5263
        %5390 = vmatprep.subr.mxu0 0.0
        %5391 = vmatpush1.msra.mxu0 %v5266
        %5392 = vmatprep.subr.mxu0 0.0
        %5393 = vmatpush1.msra.mxu0 %v5269
        %5394 = vmatprep.subr.mxu0 0.0
        %5395 = vmatpush1.msra.mxu0 %v5272
        %5396 = vmatprep.subr.mxu0 0.0
        %5397 = vmatpush1.msra.mxu0 %v5275
        %5398 = vmatprep.subr.mxu0 0.0
        %5399 = vmatpush1.msra.mxu0 %v5278
        %5400 = vmatprep.subr.mxu0 0.0
        %5401 = vmatpush1.msra.mxu0 %v5281
        %5402 = vmatprep.subr.mxu0 0.0
        %5403 = vmatpush1.msra.mxu0 0.0
        %5404 = vmatprep.subr.mxu0 0.0
        %5405 = vmatpush1.msra.mxu0 0.0
        %5406 = vmatprep.subr.mxu0 0.0
        %5407 = vmatpush1.msra.mxu0 0.0
        %5408 = vmatprep.subr.mxu0 0.0
        %5409 = vmatpush1.msra.mxu0 0.0
        %5410 = vmatprep.subr.mxu0 0.0
        %5411 = vmatpush1.msra.mxu0 0.0
        %5412 = vmatprep.subr.mxu0 0.0
        %5413 = vmatpush1.msra.mxu0 0.0
        %5414 = vmatprep.subr.mxu0 0.0
        %5415 = vmatpush1.msra.mxu0 0.0
        %5416 = vmatprep.subr.mxu0 0.0
        %5417 = vmatpush1.msra.mxu0 0.0
        %5418 = vmatprep.subr.mxu0 0.0
        %5419 = vmatpush1.msra.mxu0 0.0
        %5420 = vmatprep.subr.mxu0 0.0
        %5421 = vmatpush1.msra.mxu0 0.0
        %5422 = vmatprep.subr.mxu0 0.0
        %5423 = vmatpush1.msra.mxu0 0.0
        %5424 = vmatprep.subr.mxu0 0.0
        %5425 = vmatpush1.msra.mxu0 0.0
        %5426 = vmatprep.subr.mxu0 0.0
        %5427 = vmatpush1.msra.mxu0 0.0
        %5428 = vmatprep.subr.mxu0 0.0
        %5429 = vmatpush1.msra.mxu0 0.0
        %5430 = vmatprep.subr.mxu0 0.0
        %5431 = vmatpush1.msra.mxu0 0.0
        %5432 = vmatprep.subr.mxu0 0.0
        %5433 = vmatpush1.msra.mxu0 0.0
        %5434 = vmatprep.mubr.f32.mxu0 0.0
        %5435 = vmatmul.mubr.f32.gmra.mrb[0].mxu0 %v5232
        %v5436 = vpop.f32.mrb[0].mxu0
        %v5437 = vadd.f32 %v5295, %v5436
        %v5438 = vpop.f32.mrb[0].mxu0
        %5439 = vdwg.mxu0
        %vm5440 = vcmp.ge.f32.partialorder %v5366, 0.0
        %vm5441 = vcmp.ge.f32.partialorder %v5368, 0.0
        %vm5442 = vcmp.ge.f32.partialorder %v5437, 0.0
        %v5443 = vmul.f32 %v5366, 0.01
        %v5444 = vmul.f32 %v5368, 0.01
        %v5445 = vmul.f32 %v5437, 0.01
        %v5446 = vsel %vm5440, %v5366, %v5443
        %v5447 = vsel %vm5441, %v5368, %v5444
        %v5448 = vsel %vm5442, %v5437, %v5445
        %v5449 = vld [vmem:[%s21] sm:$0x7]
        %v5451 = vlaneseq
        %v5452 = vshrl.u32 %v5451, 7
        %v5453 = vsub.s32 0, %v5452
        %v5454 = vrot.slane %v5449, %v5453
        %v5455 = vlaneseq
        %v5456 = vshrl.u32 %v5455, 7
        %v5457 = vsub.s32 1, %v5456
        %v5458 = vrot.slane %v5449, %v5457
        %v5459 = vlaneseq
        %v5460 = vshrl.u32 %v5459, 7
        %v5461 = vsub.s32 2, %v5460
        %v5462 = vrot.slane %v5449, %v5461
        %v5466 = vmul.f32 %v5446, %v5454
        %v5467 = vmul.f32 %v5447, %v5458
        %v5468 = vmul.f32 %v5448, %v5462
        %v5469 = vsel %vm1051, %v5466, 0.0
        %5470 = vadd.xlane.f32.xlu0 %v5469
        %v5471 = vpop.xlane.xlu0 %5470
        %v5472 = vsel %vm1051, %v5467, 0.0
        %5473 = vadd.xlane.f32.xlu0 %v5472
        %v5474 = vpop.xlane.xlu0 %5473
        %v5475 = vsel %vm1051, %v5468, 0.0
        %5476 = vadd.xlane.f32.xlu0 %v5475
        %v5477 = vpop.xlane.xlu0 %5476
        %v5478 = vsel %vm1299, %v5471, %v5474
        %v5479 = vsel %vm1308, %v5478, %v5477
        %v5480 = vld [vmem:[%s22] sm:$0x1]
        %v5481 = vadd.f32 %v5479, %v5480
        %vm5482 = vcmask 16384
        %5483 = vst.msk [vmem:[%s777] sm:$0x1] %vm5482, %v5481
        %s5484 = sand.u32 %s540, 1
        %s5485 = scalar_lea.sflag [#allocation4], %s5484
        %s5486 = sand.u32 %s540, 1
        %s5487 = scalar_lea.vmem [#allocation8], %s5486
        %s5488 = sand.u32 %s566, 1
        %s5489 = scalar_lea.sflag [#allocation10], %s5488
        %s5490 = sand.u32 %s566, 1
        %s5491 = scalar_lea.vmem [#allocation9], %s5490
        // Predicated region
        $region125: #{ecg_network_forward.1} parent=111 // pred_check
          %p5492 = pneg %p550
        $region126: #{ecg_network_forward.1} parent=111 // pred_check_branch
          %5494 = sbr.rel (%p5492) target = $region128
        $region127: #{ecg_network_forward.1} parent=111 // pred_region
          %s5496 = ssub.s32 16, 16
          %5497 = vsyncadd %s5485, %s5496
          %s5498 = smul.addr %s44, 16
          %s5499 = scalar_lea.hbm %s23, %s5498
          %s5501 = sshll.u32 %s5487, 4
          %s5502 = int_to_ptr.vmem [resolvable:$true] %s5501
          %5504 = dma.vmem_to_hbm [thread:$0]  %s5502, 16, %s5499, %s5485
        $region128: #{ecg_network_forward.1} parent=111 // pred_fallthru
          _
        // Predicated region
        $region129: #{ecg_network_forward.1} parent=111 // pred_check
          %p5505 = pneg %p576
        $region130: #{ecg_network_forward.1} parent=111 // pred_check_branch
          %5507 = sbr.rel (%p5505) target = $region132
        $region131: #{ecg_network_forward.1} parent=111 // pred_region
          %s5509 = ssub.s32 16, 16
          %5510 = vsyncadd %s5489, %s5509
          %s5511 = smul.addr %s44, 16
          %s5512 = scalar_lea.hbm %s24, %s5511
          %s5514 = sshll.u32 %s5491, 4
          %s5515 = int_to_ptr.vmem [resolvable:$true] %s5514
          %5517 = dma.vmem_to_hbm [thread:$0]  %s5515, 16, %s5512, %s5489
        $region132: #{ecg_network_forward.1} parent=111 // pred_fallthru
          _
      $region112: #{ecg_network_forward.1} parent=5 // pred_fallthru
        _
      %p5518 = scmp.le.s32.totalorder 2, %s39
      // Predicated region
      $region133: #{ecg_network_forward.1} parent=5 // pred_check
        %p5519 = pneg %p5518
      $region134: #{ecg_network_forward.1} parent=5 // pred_check_branch
        %5521 = sbr.rel (%p5519) target = $region136
      $region135: #{ecg_network_forward.1} parent=5 // pred_region
        %s5522 = ssub.s32 %s39, 2
        // Predicated region
        $region137: #{ecg_network_forward.1} parent=135 // pred_check
          %p5523 = pneg %p556
        $region138: #{ecg_network_forward.1} parent=135 // pred_check_branch
          %5525 = sbr.rel (%p5523) target = $region140
        $region139: #{ecg_network_forward.1} parent=135 // pred_region
          %s5526 = sand.u32 %s541, 1
          %s5527 = scalar_lea.sflag [#allocation4], %s5526
          %s5528 = sand.u32 %s541, 1
          %s5529 = scalar_lea.vmem [#allocation8], %s5528
          %5530 = dma.done %s5527, 16
        $region140: #{ecg_network_forward.1} parent=135 // pred_fallthru
          _
        // Predicated region
        $region141: #{ecg_network_forward.1} parent=135 // pred_check
          %p5531 = pneg %p582
        $region142: #{ecg_network_forward.1} parent=135 // pred_check_branch
          %5533 = sbr.rel (%p5531) target = $region144
        $region143: #{ecg_network_forward.1} parent=135 // pred_region
          %s5534 = sand.u32 %s567, 1
          %s5535 = scalar_lea.sflag [#allocation10], %s5534
          %s5536 = sand.u32 %s567, 1
          %s5537 = scalar_lea.vmem [#allocation9], %s5536
          %5538 = dma.done %s5535, 16
        $region144: #{ecg_network_forward.1} parent=135 // pred_fallthru
          _
      $region136: #{ecg_network_forward.1} parent=5 // pred_fallthru
        _
    $region6: #{ecg_network_forward.1} parent=1 // loop_footer
      %s43 = sadd.s32 1, %s39
    $region7: #{ecg_network_forward.1} parent=1 // loop_footer_branch
      %38 = sbr.rel target = $region3
    $region8: #{ecg_network_forward.1} parent=1 // loop_exit
      _
    %5539 = vsyncpa [#allocation3], 1
    %s5540 = scalar_lea.sflag [#allocation3], 1
    %5541 = vsyncpa %s5540, 1
    %5542 = vsyncpa [#allocation6], 1
    %5543 = vsyncpa [#allocation4], 1
    %s5544 = scalar_lea.sflag [#allocation4], 1
    %5545 = vsyncpa %s5544, 1
    %5546 = vsyncpa [#allocation10], 1
    %s5547 = scalar_lea.sflag [#allocation10], 1
    %5548 = vsyncpa %s5547, 1

</llo_original>
